<compile_context>
chip_gen: v6e
topology: v6e:2x2x1
jax: 0.10.0
libtpu: 0.0.40
codegen_flags: <defaults>
</compile_context>

<pallas_src>
import math

import jax
import jax.numpy as jnp
import numpy as np
from jax.experimental import pallas as pl
from jax.experimental.pallas import tpu as pltpu

NEG_SLOPE = 0.01   # nn.LeakyReLU default negative_slope
C_PAD = 128        # lane-dense channel padding
TAPS = 3           # kernel size of layers 2..5
N_POOLED = 4       # layers 2..5 each pool their input


# ----------------------------------------------------------------------------
# Static shape helpers.
# ----------------------------------------------------------------------------
def _layer_lengths(input_length):
    """Conv output lengths of the 5 layers (static Python ints)."""
    l1 = (input_length - 5) // 2 + 1          # layer 1: k=5, stride=2
    ls = [l1]
    for _ in range(N_POOLED):                 # layers 2..5: pool(prev)//2 then conv k=3
        ls.append(ls[-1] // 2 - (TAPS - 1))
    assert ls[-1] >= 1, "input_length too short for 5 conv/pool stages"
    return ls


def _choose_batch_block(batch):
    """Largest Bb in {8,4,2} dividing batch while keeping >=2 grid steps (v7x)."""
    for bb in (8, 4, 2):
        if batch % bb == 0 and batch // bb >= 2:
            return bb
    return 1


# ----------------------------------------------------------------------------
# Host/wrapper-side layout plumbing (weights, selection matrices, layer-1 slab).
# ----------------------------------------------------------------------------
def _pad_bias(b):
    return jnp.zeros((1, C_PAD), jnp.float32).at[:, : b.shape[-1]].set(b)


def pack_params(params):
    """(K, C_in, C_out) conv params -> lane-dense bf16 matmul weights + f32 bias."""
    w1, b1 = params[0]
    k1, cin1, cout1 = w1.shape
    assert k1 * cin1 <= C_PAD and cout1 <= C_PAD
    w1p = (jnp.zeros((C_PAD, C_PAD), jnp.float32)
           .at[: k1 * cin1, :cout1].set(w1.reshape(k1 * cin1, cout1))
           .astype(jnp.bfloat16))
    packed = [(w1p, _pad_bias(b1))]
    for (w, b) in params[1:]:
        k, cin, cout = w.shape
        assert cin <= C_PAD and cout <= C_PAD
        wp = (jnp.zeros((k, C_PAD, C_PAD), jnp.float32)
              .at[:, :cin, :cout].set(w)
              .astype(jnp.bfloat16))
        packed.append((wp, _pad_bias(b)))
    return packed


def _im2col_stride2(x, K, L_conv):
    """(B, L, C) -> (B, L_conv, K*C) stride-2 tap slab for layer 1 (XLA side)."""
    cols = [x[:, k: k + 2 * (L_conv - 1) + 1: 2, :] for k in range(K)]
    return jnp.concatenate(cols, axis=-1)


def _pool_and_tap_mats(bb, l_prev, l_next, taps=TAPS):
    """Block-diagonal one-hot matrices (bf16, exact) for MaxPool1d(2) + conv taps.

    D_even/D_odd: (bb*l_pool, bb*l_prev)  select rows 2p / 2p+1 of the activation.
    T_k:          (bb*l_next, bb*l_pool)  select pooled row r+k for conv tap k.
    Block-diagonal per batch element so stacked elements never mix.
    """
    l_pool = l_prev // 2
    assert l_next == l_pool - (taps - 1)
    de = np.zeros((bb * l_pool, bb * l_prev), np.float32)
    do = np.zeros((bb * l_pool, bb * l_prev), np.float32)
    for b in range(bb):
        p = np.arange(l_pool)
        de[b * l_pool + p, b * l_prev + 2 * p] = 1.0
        do[b * l_pool + p, b * l_prev + 2 * p + 1] = 1.0
    t_mats = []
    for k in range(taps):
        t = np.zeros((bb * l_next, bb * l_pool), np.float32)
        for b in range(bb):
            r = np.arange(l_next)
            t[b * l_next + r, b * l_pool + r + k] = 1.0
        t_mats.append(jnp.asarray(t, jnp.bfloat16))
    return jnp.asarray(de, jnp.bfloat16), jnp.asarray(do, jnp.bfloat16), t_mats


def _mean_mat(bb, l_last):
    """(bb, bb*l_last) block-diagonal 1/l_last averaging matrix (f32, exact mean)."""
    m = np.zeros((bb, bb * l_last), np.float32)
    for b in range(bb):
        m[b, b * l_last:(b + 1) * l_last] = 1.0 / l_last
    return jnp.asarray(m)


# ----------------------------------------------------------------------------
# The fused kernel: Bb batch elements per grid step, everything in vregs/VMEM.
# ----------------------------------------------------------------------------
def _make_fused_kernel(has_mean_mat, num_pooled=N_POOLED, taps=TAPS):
    per = taps + 4   # refs per pooled layer: D_even, D_odd, T_0..T_{taps-1}, W, b

    def leaky(v):
        return jnp.where(v > 0, v, NEG_SLOPE * v)

    def kernel(*refs):
        x_ref, w1_ref, b1_ref = refs[0], refs[1], refs[2]
        o_ref = refs[-1]
        if has_mean_mat:
            mean_ref = refs[-2]
            groups = refs[3:-2]
        else:
            mean_ref = None
            groups = refs[3:-1]
        assert len(groups) == per * num_pooled

        # Layer 1: conv(k=5, s=2) as ONE lane-dense bf16 matmul on the prebuilt
        # slab (f32 accumulate), bias + LeakyReLU epilogue in f32.
        h = jnp.dot(x_ref[...], w1_ref[...], preferred_element_type=jnp.float32)
        h = leaky(h + b1_ref[...])

        for g in range(num_pooled):
            de_ref, do_ref = groups[per * g], groups[per * g + 1]
            t_refs = groups[per * g + 2: per * g + 2 + taps]
            w_ref = groups[per * g + 2 + taps]
            b_ref = groups[per * g + 3 + taps]

            h16 = h.astype(jnp.bfloat16)
            # MaxPool1d(2): one even + one odd precomputed one-hot selection
            # matmul (exact in bf16), pairwise max in f32 on the VPU.
            pe = jnp.dot(de_ref[...], h16, preferred_element_type=jnp.float32)
            po = jnp.dot(do_ref[...], h16, preferred_element_type=jnp.float32)
            pooled = jnp.maximum(pe, po).astype(jnp.bfloat16)
            # Conv1d(k=3): per-tap one-hot row shift + (128,128) bf16 conv matmul,
            # accumulated in f32 -- no (n, 3*128) im2col concat is materialized.
            acc = None
            for k in range(taps):
                tap = jnp.dot(t_refs[k][...], pooled,
                              preferred_element_type=jnp.float32).astype(jnp.bfloat16)
                part = jnp.dot(tap, w_ref[k], preferred_element_type=jnp.float32)
                acc = part if acc is None else acc + part
            h = acc + b_ref[...]
            if g < num_pooled - 1:          # final conv layer has no activation
                h = leaky(h)

        # Mean over the remaining length, per batch element.
        if mean_ref is not None:            # block-diagonal 1/L matrix (Bb > 1)
            o_ref[...] = jnp.dot(mean_ref[...], h, preferred_element_type=jnp.float32)
        else:                               # Bb == 1: plain reduction
            o_ref[...] = jnp.mean(h, axis=0, keepdims=True)

    return kernel


def cnn_predictor_forward(x, params, num_classes, batch_block=None):
    """x: (B, seq_len, num_features) -> (B, num_classes)."""
    B, L_in, C_in = x.shape
    lengths = _layer_lengths(L_in)
    L1 = lengths[0]
    assert 5 * C_in <= C_PAD and num_classes <= C_PAD

    Bb = _choose_batch_block(B) if batch_block is None else batch_block
    assert B % Bb == 0
    G = B // Bb
    has_mean_mat = Bb > 1

    packed = pack_params(params)

    # Layer-1 stride-2 im2col slab: pad to 128 lanes (lane-dense, unmasked DMA),
    # store bf16, stack Bb elements along the sublane axis per grid block.
    slab = _im2col_stride2(x, K=5, L_conv=L1)                       # (B, L1, 5*C_in)
    slab = jnp.pad(slab, ((0, 0), (0, 0), (0, C_PAD - slab.shape[-1])))
    slab = slab.astype(jnp.bfloat16).reshape(G, Bb * L1, C_PAD)

    inputs = [slab, packed[0][0], packed[0][1]]
    for i in range(N_POOLED):
        de, do, t_mats = _pool_and_tap_mats(Bb, lengths[i], lengths[i + 1])
        inputs += [de, do, *t_mats, packed[i + 1][0], packed[i + 1][1]]
    if has_mean_mat:
        inputs.append(_mean_mat(Bb, lengths[-1]))

    def _const_spec(a):
        zero = (0,) * a.ndim
        return pl.BlockSpec(a.shape, lambda i, z=zero: z)            # VMEM-resident

    in_specs = [pl.BlockSpec((None, Bb * L1, C_PAD), lambda i: (i, 0, 0))]
    in_specs += [_const_spec(a) for a in inputs[1:]]
    # TODO(synk): pipeline_mode=pl.Buffered(1) on the constant operands would halve
    # their double-buffer allocation; skipped since the footprint is already tiny.

    out_padded = pl.pallas_call(
        _make_fused_kernel(has_mean_mat),
        out_shape=jax.ShapeDtypeStruct((G, Bb, C_PAD), jnp.float32),
        grid=(G,),
        in_specs=in_specs,
        out_specs=pl.BlockSpec((None, Bb, C_PAD), lambda i: (i, 0, 0)),
        compiler_params=pltpu.CompilerParams(
            dimension_semantics=("parallel",),
            vmem_limit_bytes=32 * 1024 * 1024),
    )(*inputs)
    return out_padded.reshape(B, C_PAD)[:, :num_classes]


# ----------------------------------------------------------------------------
# Parameter construction (deterministic, PyTorch Conv1d-style uniform init).
# ----------------------------------------------------------------------------
def init_params(key, input_size, num_classes, filters=32):
    layer_defs = [
        (input_size, filters, 5),   # layer 1: k=5, stride=2
        (filters, filters, 3),      # layers 2-4: k=3, stride=1
        (filters, filters, 3),
        (filters, filters, 3),
        (filters, num_classes, 3),  # layer 5: k=3, no relu/pool
    ]
    params = []
    for (cin, cout, k) in layer_defs:
        key, kw, kb = jax.random.split(key, 3)
        bound = 1.0 / math.sqrt(cin * k)
        w = jax.random.uniform(kw, (k, cin, cout), jnp.float32, -bound, bound)
        b = jax.random.uniform(kb, (1, cout), jnp.float32, -bound, bound)
        params.append((w, b))
    return params


# ----------------------------------------------------------------------------
# Pure-JAX reference (mirrors the PyTorch forward exactly) for validation.
# ----------------------------------------------------------------------------
def reference_forward(x, params):
    h = jnp.transpose(x, (0, 2, 1))  # (B, C, L) like x.permute(0, 2, 1)

    def conv1d(h, w, b, stride):
        wt = jnp.transpose(w, (2, 1, 0))  # (C_out, C_in, K) torch layout
        out = jax.lax.conv_general_dilated(
            h, wt, window_strides=(stride,), padding="VALID",
            dimension_numbers=("NCH", "OIH", "NCH"))
        return out + b.reshape(1, -1, 1)

    for idx, (w, b) in enumerate(params[:4]):
        stride = 2 if idx == 0 else 1
        h = conv1d(h, w, b, stride)
        h = jnp.where(h > 0, h, NEG_SLOPE * h)                        # LeakyReLU
        L = h.shape[2]
        h = h[:, :, : (L // 2) * 2]
        h = h.reshape(h.shape[0], h.shape[1], L // 2, 2).max(axis=3)  # MaxPool1d(2)
    w, b = params[4]
    h = conv1d(h, w, b, 1)
    return jnp.mean(h, axis=2)


if __name__ == "__main__":
    # Small-but-valid shapes: 5 conv/pool stages need input_length >= ~155.
    batch_size = 2
    input_size = 4      # num input features
    input_length = 256  # seq_len
    num_classes = 3

    key = jax.random.PRNGKey(0)
    key, xkey = jax.random.split(key)
    x = jax.random.normal(xkey, (batch_size, input_length, input_size), jnp.float32)
    params = init_params(key, input_size, num_classes)

    fwd = jax.jit(lambda xx: cnn_predictor_forward(xx, params, num_classes))
    out = jax.block_until_ready(fwd(x))
    assert out.shape == (batch_size, num_classes), out.shape

    ref = jax.block_until_ready(reference_forward(x, params))
    # bf16 MXU operands (f32 accumulate/epilogue) -> 2e-2 tolerance.
    np.testing.assert_allclose(np.asarray(out), np.asarray(ref), rtol=2e-2, atol=2e-2)

    print("KERNEL_OK")
</pallas_src>

<mosaic_0001>
module attributes {stable_mosaic.version = 11 : i64} {
  func.func @kernel(%arg0: i32, %arg1: memref<1x126x128xbf16, #tpu.memory_space<vmem>>, %arg2: memref<128x128xbf16, #tpu.memory_space<vmem>>, %arg3: memref<1x128xf32, #tpu.memory_space<vmem>>, %arg4: memref<63x126xbf16, #tpu.memory_space<vmem>>, %arg5: memref<63x126xbf16, #tpu.memory_space<vmem>>, %arg6: memref<61x63xbf16, #tpu.memory_space<vmem>>, %arg7: memref<61x63xbf16, #tpu.memory_space<vmem>>, %arg8: memref<61x63xbf16, #tpu.memory_space<vmem>>, %arg9: memref<3x128x128xbf16, #tpu.memory_space<vmem>>, %arg10: memref<1x128xf32, #tpu.memory_space<vmem>>, %arg11: memref<30x61xbf16, #tpu.memory_space<vmem>>, %arg12: memref<30x61xbf16, #tpu.memory_space<vmem>>, %arg13: memref<28x30xbf16, #tpu.memory_space<vmem>>, %arg14: memref<28x30xbf16, #tpu.memory_space<vmem>>, %arg15: memref<28x30xbf16, #tpu.memory_space<vmem>>, %arg16: memref<3x128x128xbf16, #tpu.memory_space<vmem>>, %arg17: memref<1x128xf32, #tpu.memory_space<vmem>>, %arg18: memref<14x28xbf16, #tpu.memory_space<vmem>>, %arg19: memref<14x28xbf16, #tpu.memory_space<vmem>>, %arg20: memref<12x14xbf16, #tpu.memory_space<vmem>>, %arg21: memref<12x14xbf16, #tpu.memory_space<vmem>>, %arg22: memref<12x14xbf16, #tpu.memory_space<vmem>>, %arg23: memref<3x128x128xbf16, #tpu.memory_space<vmem>>, %arg24: memref<1x128xf32, #tpu.memory_space<vmem>>, %arg25: memref<6x12xbf16, #tpu.memory_space<vmem>>, %arg26: memref<6x12xbf16, #tpu.memory_space<vmem>>, %arg27: memref<4x6xbf16, #tpu.memory_space<vmem>>, %arg28: memref<4x6xbf16, #tpu.memory_space<vmem>>, %arg29: memref<4x6xbf16, #tpu.memory_space<vmem>>, %arg30: memref<3x128x128xbf16, #tpu.memory_space<vmem>>, %arg31: memref<1x128xf32, #tpu.memory_space<vmem>>, %arg32: memref<1x1x128xf32, #tpu.memory_space<vmem>>) attributes {dimension_semantics = [#tpu.dimension_semantics<parallel>], iteration_bounds = array<i64: 2>, scalar_prefetch = 0 : i64, scratch_operands = 0 : i64, tpu.core_type = #tpu.core_type<tc>, window_params = [{transform_indices = @transform_0, window_bounds = array<i64: 1, 126, 128>}, {pipeline_mode = #tpu.pipeline_mode<synchronous>, transform_indices = @transform_1, window_bounds = array<i64: 128, 128>}, {pipeline_mode = #tpu.pipeline_mode<synchronous>, transform_indices = @transform_2, window_bounds = array<i64: 1, 128>}, {pipeline_mode = #tpu.pipeline_mode<synchronous>, transform_indices = @transform_3, window_bounds = array<i64: 63, 126>}, {pipeline_mode = #tpu.pipeline_mode<synchronous>, transform_indices = @transform_4, window_bounds = array<i64: 63, 126>}, {pipeline_mode = #tpu.pipeline_mode<synchronous>, transform_indices = @transform_5, window_bounds = array<i64: 61, 63>}, {pipeline_mode = #tpu.pipeline_mode<synchronous>, transform_indices = @transform_6, window_bounds = array<i64: 61, 63>}, {pipeline_mode = #tpu.pipeline_mode<synchronous>, transform_indices = @transform_7, window_bounds = array<i64: 61, 63>}, {pipeline_mode = #tpu.pipeline_mode<synchronous>, transform_indices = @transform_8, window_bounds = array<i64: 3, 128, 128>}, {pipeline_mode = #tpu.pipeline_mode<synchronous>, transform_indices = @transform_9, window_bounds = array<i64: 1, 128>}, {pipeline_mode = #tpu.pipeline_mode<synchronous>, transform_indices = @transform_10, window_bounds = array<i64: 30, 61>}, {pipeline_mode = #tpu.pipeline_mode<synchronous>, transform_indices = @transform_11, window_bounds = array<i64: 30, 61>}, {pipeline_mode = #tpu.pipeline_mode<synchronous>, transform_indices = @transform_12, window_bounds = array<i64: 28, 30>}, {pipeline_mode = #tpu.pipeline_mode<synchronous>, transform_indices = @transform_13, window_bounds = array<i64: 28, 30>}, {pipeline_mode = #tpu.pipeline_mode<synchronous>, transform_indices = @transform_14, window_bounds = array<i64: 28, 30>}, {pipeline_mode = #tpu.pipeline_mode<synchronous>, transform_indices = @transform_15, window_bounds = array<i64: 3, 128, 128>}, {pipeline_mode = #tpu.pipeline_mode<synchronous>, transform_indices = @transform_16, window_bounds = array<i64: 1, 128>}, {pipeline_mode = #tpu.pipeline_mode<synchronous>, transform_indices = @transform_17, window_bounds = array<i64: 14, 28>}, {pipeline_mode = #tpu.pipeline_mode<synchronous>, transform_indices = @transform_18, window_bounds = array<i64: 14, 28>}, {pipeline_mode = #tpu.pipeline_mode<synchronous>, transform_indices = @transform_19, window_bounds = array<i64: 12, 14>}, {pipeline_mode = #tpu.pipeline_mode<synchronous>, transform_indices = @transform_20, window_bounds = array<i64: 12, 14>}, {pipeline_mode = #tpu.pipeline_mode<synchronous>, transform_indices = @transform_21, window_bounds = array<i64: 12, 14>}, {pipeline_mode = #tpu.pipeline_mode<synchronous>, transform_indices = @transform_22, window_bounds = array<i64: 3, 128, 128>}, {pipeline_mode = #tpu.pipeline_mode<synchronous>, transform_indices = @transform_23, window_bounds = array<i64: 1, 128>}, {pipeline_mode = #tpu.pipeline_mode<synchronous>, transform_indices = @transform_24, window_bounds = array<i64: 6, 12>}, {pipeline_mode = #tpu.pipeline_mode<synchronous>, transform_indices = @transform_25, window_bounds = array<i64: 6, 12>}, {pipeline_mode = #tpu.pipeline_mode<synchronous>, transform_indices = @transform_26, window_bounds = array<i64: 4, 6>}, {pipeline_mode = #tpu.pipeline_mode<synchronous>, transform_indices = @transform_27, window_bounds = array<i64: 4, 6>}, {pipeline_mode = #tpu.pipeline_mode<synchronous>, transform_indices = @transform_28, window_bounds = array<i64: 4, 6>}, {pipeline_mode = #tpu.pipeline_mode<synchronous>, transform_indices = @transform_29, window_bounds = array<i64: 3, 128, 128>}, {pipeline_mode = #tpu.pipeline_mode<synchronous>, transform_indices = @transform_30, window_bounds = array<i64: 1, 128>}, {transform_indices = @transform_31, window_bounds = array<i64: 1, 1, 128>}]} {
    %c0 = arith.constant 0 : index
    %c0_0 = arith.constant 0 : index
    %c0_1 = arith.constant 0 : index
    %0 = vector.load %arg1[%c0, %c0_0, %c0_1] : memref<1x126x128xbf16, #tpu.memory_space<vmem>>, vector<1x126x128xbf16>
    %1 = vector.shape_cast %0 : vector<1x126x128xbf16> to vector<126x128xbf16>
    %c0_2 = arith.constant 0 : index
    %c0_3 = arith.constant 0 : index
    %2 = vector.load %arg2[%c0_2, %c0_3] : memref<128x128xbf16, #tpu.memory_space<vmem>>, vector<128x128xbf16>
    %cst = arith.constant dense<0.000000e+00> : vector<126x128xf32>
    %3 = tpu.matmul %1, %2, %cst {dimension_numbers = #tpu.dot_dimension_numbers<[1], [0], [0], [1], [0, 0, 1, 1], [], []>} : vector<126x128xbf16>, vector<128x128xbf16>, vector<126x128xf32> -> vector<126x128xf32>
    %c0_4 = arith.constant 0 : index
    %c0_5 = arith.constant 0 : index
    %4 = vector.load %arg3[%c0_4, %c0_5] : memref<1x128xf32, #tpu.memory_space<vmem>>, vector<1x128xf32>
    %5 = vector.broadcast %4 : vector<1x128xf32> to vector<126x128xf32>
    %6 = arith.addf %3, %5 : vector<126x128xf32>
    %cst_6 = arith.constant 0.000000e+00 : f32
    %7 = vector.broadcast %cst_6 : f32 to vector<126x128xf32>
    %8 = arith.cmpf ogt, %6, %7 : vector<126x128xf32>
    %cst_7 = arith.constant 0.00999999977 : f32
    %9 = vector.broadcast %cst_7 : f32 to vector<126x128xf32>
    %10 = arith.mulf %9, %6 : vector<126x128xf32>
    %11 = arith.select %8, %6, %10 : vector<126x128xi1>, vector<126x128xf32>
    %12 = arith.truncf %11 : vector<126x128xf32> to vector<126x128xbf16>
    %c0_8 = arith.constant 0 : index
    %c0_9 = arith.constant 0 : index
    %13 = vector.load %arg4[%c0_8, %c0_9] : memref<63x126xbf16, #tpu.memory_space<vmem>>, vector<63x126xbf16>
    %cst_10 = arith.constant dense<0.000000e+00> : vector<63x128xf32>
    %14 = tpu.matmul %13, %12, %cst_10 {dimension_numbers = #tpu.dot_dimension_numbers<[1], [0], [0], [1], [0, 0, 1, 1], [], []>} : vector<63x126xbf16>, vector<126x128xbf16>, vector<63x128xf32> -> vector<63x128xf32>
    %c0_11 = arith.constant 0 : index
    %c0_12 = arith.constant 0 : index
    %15 = vector.load %arg5[%c0_11, %c0_12] : memref<63x126xbf16, #tpu.memory_space<vmem>>, vector<63x126xbf16>
    %cst_13 = arith.constant dense<0.000000e+00> : vector<63x128xf32>
    %16 = tpu.matmul %15, %12, %cst_13 {dimension_numbers = #tpu.dot_dimension_numbers<[1], [0], [0], [1], [0, 0, 1, 1], [], []>} : vector<63x126xbf16>, vector<126x128xbf16>, vector<63x128xf32> -> vector<63x128xf32>
    %17 = arith.maximumf %14, %16 : vector<63x128xf32>
    %18 = arith.truncf %17 : vector<63x128xf32> to vector<63x128xbf16>
    %c0_14 = arith.constant 0 : index
    %c0_15 = arith.constant 0 : index
    %19 = vector.load %arg6[%c0_14, %c0_15] : memref<61x63xbf16, #tpu.memory_space<vmem>>, vector<61x63xbf16>
    %cst_16 = arith.constant dense<0.000000e+00> : vector<61x128xf32>
    %20 = tpu.matmul %19, %18, %cst_16 {dimension_numbers = #tpu.dot_dimension_numbers<[1], [0], [0], [1], [0, 0, 1, 1], [], []>} : vector<61x63xbf16>, vector<63x128xbf16>, vector<61x128xf32> -> vector<61x128xf32>
    %21 = arith.truncf %20 : vector<61x128xf32> to vector<61x128xbf16>
    %c0_17 = arith.constant 0 : index
    %c0_18 = arith.constant 0 : index
    %c0_19 = arith.constant 0 : index
    %22 = vector.load %arg9[%c0_17, %c0_18, %c0_19] : memref<3x128x128xbf16, #tpu.memory_space<vmem>>, vector<1x128x128xbf16>
    %23 = vector.shape_cast %22 : vector<1x128x128xbf16> to vector<128x128xbf16>
    %cst_20 = arith.constant dense<0.000000e+00> : vector<61x128xf32>
    %24 = tpu.matmul %21, %23, %cst_20 {dimension_numbers = #tpu.dot_dimension_numbers<[1], [0], [0], [1], [0, 0, 1, 1], [], []>} : vector<61x128xbf16>, vector<128x128xbf16>, vector<61x128xf32> -> vector<61x128xf32>
    %c0_21 = arith.constant 0 : index
    %c0_22 = arith.constant 0 : index
    %25 = vector.load %arg7[%c0_21, %c0_22] : memref<61x63xbf16, #tpu.memory_space<vmem>>, vector<61x63xbf16>
    %cst_23 = arith.constant dense<0.000000e+00> : vector<61x128xf32>
    %26 = tpu.matmul %25, %18, %cst_23 {dimension_numbers = #tpu.dot_dimension_numbers<[1], [0], [0], [1], [0, 0, 1, 1], [], []>} : vector<61x63xbf16>, vector<63x128xbf16>, vector<61x128xf32> -> vector<61x128xf32>
    %27 = arith.truncf %26 : vector<61x128xf32> to vector<61x128xbf16>
    %c1 = arith.constant 1 : index
    %c0_24 = arith.constant 0 : index
    %c0_25 = arith.constant 0 : index
    %28 = vector.load %arg9[%c1, %c0_24, %c0_25] : memref<3x128x128xbf16, #tpu.memory_space<vmem>>, vector<1x128x128xbf16>
    %29 = vector.shape_cast %28 : vector<1x128x128xbf16> to vector<128x128xbf16>
    %cst_26 = arith.constant dense<0.000000e+00> : vector<61x128xf32>
    %30 = tpu.matmul %27, %29, %cst_26 {dimension_numbers = #tpu.dot_dimension_numbers<[1], [0], [0], [1], [0, 0, 1, 1], [], []>} : vector<61x128xbf16>, vector<128x128xbf16>, vector<61x128xf32> -> vector<61x128xf32>
    %31 = arith.addf %24, %30 : vector<61x128xf32>
    %c0_27 = arith.constant 0 : index
    %c0_28 = arith.constant 0 : index
    %32 = vector.load %arg8[%c0_27, %c0_28] : memref<61x63xbf16, #tpu.memory_space<vmem>>, vector<61x63xbf16>
    %cst_29 = arith.constant dense<0.000000e+00> : vector<61x128xf32>
    %33 = tpu.matmul %32, %18, %cst_29 {dimension_numbers = #tpu.dot_dimension_numbers<[1], [0], [0], [1], [0, 0, 1, 1], [], []>} : vector<61x63xbf16>, vector<63x128xbf16>, vector<61x128xf32> -> vector<61x128xf32>
    %34 = arith.truncf %33 : vector<61x128xf32> to vector<61x128xbf16>
    %c2 = arith.constant 2 : index
    %c0_30 = arith.constant 0 : index
    %c0_31 = arith.constant 0 : index
    %35 = vector.load %arg9[%c2, %c0_30, %c0_31] : memref<3x128x128xbf16, #tpu.memory_space<vmem>>, vector<1x128x128xbf16>
    %36 = vector.shape_cast %35 : vector<1x128x128xbf16> to vector<128x128xbf16>
    %cst_32 = arith.constant dense<0.000000e+00> : vector<61x128xf32>
    %37 = tpu.matmul %34, %36, %cst_32 {dimension_numbers = #tpu.dot_dimension_numbers<[1], [0], [0], [1], [0, 0, 1, 1], [], []>} : vector<61x128xbf16>, vector<128x128xbf16>, vector<61x128xf32> -> vector<61x128xf32>
    %38 = arith.addf %31, %37 : vector<61x128xf32>
    %c0_33 = arith.constant 0 : index
    %c0_34 = arith.constant 0 : index
    %39 = vector.load %arg10[%c0_33, %c0_34] : memref<1x128xf32, #tpu.memory_space<vmem>>, vector<1x128xf32>
    %40 = vector.broadcast %39 : vector<1x128xf32> to vector<61x128xf32>
    %41 = arith.addf %38, %40 : vector<61x128xf32>
    %cst_35 = arith.constant 0.000000e+00 : f32
    %42 = vector.broadcast %cst_35 : f32 to vector<61x128xf32>
    %43 = arith.cmpf ogt, %41, %42 : vector<61x128xf32>
    %cst_36 = arith.constant 0.00999999977 : f32
    %44 = vector.broadcast %cst_36 : f32 to vector<61x128xf32>
    %45 = arith.mulf %44, %41 : vector<61x128xf32>
    %46 = arith.select %43, %41, %45 : vector<61x128xi1>, vector<61x128xf32>
    %47 = arith.truncf %46 : vector<61x128xf32> to vector<61x128xbf16>
    %c0_37 = arith.constant 0 : index
    %c0_38 = arith.constant 0 : index
    %48 = vector.load %arg11[%c0_37, %c0_38] : memref<30x61xbf16, #tpu.memory_space<vmem>>, vector<30x61xbf16>
    %cst_39 = arith.constant dense<0.000000e+00> : vector<30x128xf32>
    %49 = tpu.matmul %48, %47, %cst_39 {dimension_numbers = #tpu.dot_dimension_numbers<[1], [0], [0], [1], [0, 0, 1, 1], [], []>} : vector<30x61xbf16>, vector<61x128xbf16>, vector<30x128xf32> -> vector<30x128xf32>
    %c0_40 = arith.constant 0 : index
    %c0_41 = arith.constant 0 : index
    %50 = vector.load %arg12[%c0_40, %c0_41] : memref<30x61xbf16, #tpu.memory_space<vmem>>, vector<30x61xbf16>
    %cst_42 = arith.constant dense<0.000000e+00> : vector<30x128xf32>
    %51 = tpu.matmul %50, %47, %cst_42 {dimension_numbers = #tpu.dot_dimension_numbers<[1], [0], [0], [1], [0, 0, 1, 1], [], []>} : vector<30x61xbf16>, vector<61x128xbf16>, vector<30x128xf32> -> vector<30x128xf32>
    %52 = arith.maximumf %49, %51 : vector<30x128xf32>
    %53 = arith.truncf %52 : vector<30x128xf32> to vector<30x128xbf16>
    %c0_43 = arith.constant 0 : index
    %c0_44 = arith.constant 0 : index
    %54 = vector.load %arg13[%c0_43, %c0_44] : memref<28x30xbf16, #tpu.memory_space<vmem>>, vector<28x30xbf16>
    %cst_45 = arith.constant dense<0.000000e+00> : vector<28x128xf32>
    %55 = tpu.matmul %54, %53, %cst_45 {dimension_numbers = #tpu.dot_dimension_numbers<[1], [0], [0], [1], [0, 0, 1, 1], [], []>} : vector<28x30xbf16>, vector<30x128xbf16>, vector<28x128xf32> -> vector<28x128xf32>
    %56 = arith.truncf %55 : vector<28x128xf32> to vector<28x128xbf16>
    %c0_46 = arith.constant 0 : index
    %c0_47 = arith.constant 0 : index
    %c0_48 = arith.constant 0 : index
    %57 = vector.load %arg16[%c0_46, %c0_47, %c0_48] : memref<3x128x128xbf16, #tpu.memory_space<vmem>>, vector<1x128x128xbf16>
    %58 = vector.shape_cast %57 : vector<1x128x128xbf16> to vector<128x128xbf16>
    %cst_49 = arith.constant dense<0.000000e+00> : vector<28x128xf32>
    %59 = tpu.matmul %56, %58, %cst_49 {dimension_numbers = #tpu.dot_dimension_numbers<[1], [0], [0], [1], [0, 0, 1, 1], [], []>} : vector<28x128xbf16>, vector<128x128xbf16>, vector<28x128xf32> -> vector<28x128xf32>
    %c0_50 = arith.constant 0 : index
    %c0_51 = arith.constant 0 : index
    %60 = vector.load %arg14[%c0_50, %c0_51] : memref<28x30xbf16, #tpu.memory_space<vmem>>, vector<28x30xbf16>
    %cst_52 = arith.constant dense<0.000000e+00> : vector<28x128xf32>
    %61 = tpu.matmul %60, %53, %cst_52 {dimension_numbers = #tpu.dot_dimension_numbers<[1], [0], [0], [1], [0, 0, 1, 1], [], []>} : vector<28x30xbf16>, vector<30x128xbf16>, vector<28x128xf32> -> vector<28x128xf32>
    %62 = arith.truncf %61 : vector<28x128xf32> to vector<28x128xbf16>
    %c1_53 = arith.constant 1 : index
    %c0_54 = arith.constant 0 : index
    %c0_55 = arith.constant 0 : index
    %63 = vector.load %arg16[%c1_53, %c0_54, %c0_55] : memref<3x128x128xbf16, #tpu.memory_space<vmem>>, vector<1x128x128xbf16>
    %64 = vector.shape_cast %63 : vector<1x128x128xbf16> to vector<128x128xbf16>
    %cst_56 = arith.constant dense<0.000000e+00> : vector<28x128xf32>
    %65 = tpu.matmul %62, %64, %cst_56 {dimension_numbers = #tpu.dot_dimension_numbers<[1], [0], [0], [1], [0, 0, 1, 1], [], []>} : vector<28x128xbf16>, vector<128x128xbf16>, vector<28x128xf32> -> vector<28x128xf32>
    %66 = arith.addf %59, %65 : vector<28x128xf32>
    %c0_57 = arith.constant 0 : index
    %c0_58 = arith.constant 0 : index
    %67 = vector.load %arg15[%c0_57, %c0_58] : memref<28x30xbf16, #tpu.memory_space<vmem>>, vector<28x30xbf16>
    %cst_59 = arith.constant dense<0.000000e+00> : vector<28x128xf32>
    %68 = tpu.matmul %67, %53, %cst_59 {dimension_numbers = #tpu.dot_dimension_numbers<[1], [0], [0], [1], [0, 0, 1, 1], [], []>} : vector<28x30xbf16>, vector<30x128xbf16>, vector<28x128xf32> -> vector<28x128xf32>
    %69 = arith.truncf %68 : vector<28x128xf32> to vector<28x128xbf16>
    %c2_60 = arith.constant 2 : index
    %c0_61 = arith.constant 0 : index
    %c0_62 = arith.constant 0 : index
    %70 = vector.load %arg16[%c2_60, %c0_61, %c0_62] : memref<3x128x128xbf16, #tpu.memory_space<vmem>>, vector<1x128x128xbf16>
    %71 = vector.shape_cast %70 : vector<1x128x128xbf16> to vector<128x128xbf16>
    %cst_63 = arith.constant dense<0.000000e+00> : vector<28x128xf32>
    %72 = tpu.matmul %69, %71, %cst_63 {dimension_numbers = #tpu.dot_dimension_numbers<[1], [0], [0], [1], [0, 0, 1, 1], [], []>} : vector<28x128xbf16>, vector<128x128xbf16>, vector<28x128xf32> -> vector<28x128xf32>
    %73 = arith.addf %66, %72 : vector<28x128xf32>
    %c0_64 = arith.constant 0 : index
    %c0_65 = arith.constant 0 : index
    %74 = vector.load %arg17[%c0_64, %c0_65] : memref<1x128xf32, #tpu.memory_space<vmem>>, vector<1x128xf32>
    %75 = vector.broadcast %74 : vector<1x128xf32> to vector<28x128xf32>
    %76 = arith.addf %73, %75 : vector<28x128xf32>
    %cst_66 = arith.constant 0.000000e+00 : f32
    %77 = vector.broadcast %cst_66 : f32 to vector<28x128xf32>
    %78 = arith.cmpf ogt, %76, %77 : vector<28x128xf32>
    %cst_67 = arith.constant 0.00999999977 : f32
    %79 = vector.broadcast %cst_67 : f32 to vector<28x128xf32>
    %80 = arith.mulf %79, %76 : vector<28x128xf32>
    %81 = arith.select %78, %76, %80 : vector<28x128xi1>, vector<28x128xf32>
    %82 = arith.truncf %81 : vector<28x128xf32> to vector<28x128xbf16>
    %c0_68 = arith.constant 0 : index
    %c0_69 = arith.constant 0 : index
    %83 = vector.load %arg18[%c0_68, %c0_69] : memref<14x28xbf16, #tpu.memory_space<vmem>>, vector<14x28xbf16>
    %cst_70 = arith.constant dense<0.000000e+00> : vector<14x128xf32>
    %84 = tpu.matmul %83, %82, %cst_70 {dimension_numbers = #tpu.dot_dimension_numbers<[1], [0], [0], [1], [0, 0, 1, 1], [], []>} : vector<14x28xbf16>, vector<28x128xbf16>, vector<14x128xf32> -> vector<14x128xf32>
    %c0_71 = arith.constant 0 : index
    %c0_72 = arith.constant 0 : index
    %85 = vector.load %arg19[%c0_71, %c0_72] : memref<14x28xbf16, #tpu.memory_space<vmem>>, vector<14x28xbf16>
    %cst_73 = arith.constant dense<0.000000e+00> : vector<14x128xf32>
    %86 = tpu.matmul %85, %82, %cst_73 {dimension_numbers = #tpu.dot_dimension_numbers<[1], [0], [0], [1], [0, 0, 1, 1], [], []>} : vector<14x28xbf16>, vector<28x128xbf16>, vector<14x128xf32> -> vector<14x128xf32>
    %87 = arith.maximumf %84, %86 : vector<14x128xf32>
    %88 = arith.truncf %87 : vector<14x128xf32> to vector<14x128xbf16>
    %c0_74 = arith.constant 0 : index
    %c0_75 = arith.constant 0 : index
    %89 = vector.load %arg20[%c0_74, %c0_75] : memref<12x14xbf16, #tpu.memory_space<vmem>>, vector<12x14xbf16>
    %cst_76 = arith.constant dense<0.000000e+00> : vector<12x128xf32>
    %90 = tpu.matmul %89, %88, %cst_76 {dimension_numbers = #tpu.dot_dimension_numbers<[1], [0], [0], [1], [0, 0, 1, 1], [], []>} : vector<12x14xbf16>, vector<14x128xbf16>, vector<12x128xf32> -> vector<12x128xf32>
    %91 = arith.truncf %90 : vector<12x128xf32> to vector<12x128xbf16>
    %c0_77 = arith.constant 0 : index
    %c0_78 = arith.constant 0 : index
    %c0_79 = arith.constant 0 : index
    %92 = vector.load %arg23[%c0_77, %c0_78, %c0_79] : memref<3x128x128xbf16, #tpu.memory_space<vmem>>, vector<1x128x128xbf16>
    %93 = vector.shape_cast %92 : vector<1x128x128xbf16> to vector<128x128xbf16>
    %cst_80 = arith.constant dense<0.000000e+00> : vector<12x128xf32>
    %94 = tpu.matmul %91, %93, %cst_80 {dimension_numbers = #tpu.dot_dimension_numbers<[1], [0], [0], [1], [0, 0, 1, 1], [], []>} : vector<12x128xbf16>, vector<128x128xbf16>, vector<12x128xf32> -> vector<12x128xf32>
    %c0_81 = arith.constant 0 : index
    %c0_82 = arith.constant 0 : index
    %95 = vector.load %arg21[%c0_81, %c0_82] : memref<12x14xbf16, #tpu.memory_space<vmem>>, vector<12x14xbf16>
    %cst_83 = arith.constant dense<0.000000e+00> : vector<12x128xf32>
    %96 = tpu.matmul %95, %88, %cst_83 {dimension_numbers = #tpu.dot_dimension_numbers<[1], [0], [0], [1], [0, 0, 1, 1], [], []>} : vector<12x14xbf16>, vector<14x128xbf16>, vector<12x128xf32> -> vector<12x128xf32>
    %97 = arith.truncf %96 : vector<12x128xf32> to vector<12x128xbf16>
    %c1_84 = arith.constant 1 : index
    %c0_85 = arith.constant 0 : index
    %c0_86 = arith.constant 0 : index
    %98 = vector.load %arg23[%c1_84, %c0_85, %c0_86] : memref<3x128x128xbf16, #tpu.memory_space<vmem>>, vector<1x128x128xbf16>
    %99 = vector.shape_cast %98 : vector<1x128x128xbf16> to vector<128x128xbf16>
    %cst_87 = arith.constant dense<0.000000e+00> : vector<12x128xf32>
    %100 = tpu.matmul %97, %99, %cst_87 {dimension_numbers = #tpu.dot_dimension_numbers<[1], [0], [0], [1], [0, 0, 1, 1], [], []>} : vector<12x128xbf16>, vector<128x128xbf16>, vector<12x128xf32> -> vector<12x128xf32>
    %101 = arith.addf %94, %100 : vector<12x128xf32>
    %c0_88 = arith.constant 0 : index
    %c0_89 = arith.constant 0 : index
    %102 = vector.load %arg22[%c0_88, %c0_89] : memref<12x14xbf16, #tpu.memory_space<vmem>>, vector<12x14xbf16>
    %cst_90 = arith.constant dense<0.000000e+00> : vector<12x128xf32>
    %103 = tpu.matmul %102, %88, %cst_90 {dimension_numbers = #tpu.dot_dimension_numbers<[1], [0], [0], [1], [0, 0, 1, 1], [], []>} : vector<12x14xbf16>, vector<14x128xbf16>, vector<12x128xf32> -> vector<12x128xf32>
    %104 = arith.truncf %103 : vector<12x128xf32> to vector<12x128xbf16>
    %c2_91 = arith.constant 2 : index
    %c0_92 = arith.constant 0 : index
    %c0_93 = arith.constant 0 : index
    %105 = vector.load %arg23[%c2_91, %c0_92, %c0_93] : memref<3x128x128xbf16, #tpu.memory_space<vmem>>, vector<1x128x128xbf16>
    %106 = vector.shape_cast %105 : vector<1x128x128xbf16> to vector<128x128xbf16>
    %cst_94 = arith.constant dense<0.000000e+00> : vector<12x128xf32>
    %107 = tpu.matmul %104, %106, %cst_94 {dimension_numbers = #tpu.dot_dimension_numbers<[1], [0], [0], [1], [0, 0, 1, 1], [], []>} : vector<12x128xbf16>, vector<128x128xbf16>, vector<12x128xf32> -> vector<12x128xf32>
    %108 = arith.addf %101, %107 : vector<12x128xf32>
    %c0_95 = arith.constant 0 : index
    %c0_96 = arith.constant 0 : index
    %109 = vector.load %arg24[%c0_95, %c0_96] : memref<1x128xf32, #tpu.memory_space<vmem>>, vector<1x128xf32>
    %110 = vector.broadcast %109 : vector<1x128xf32> to vector<12x128xf32>
    %111 = arith.addf %108, %110 : vector<12x128xf32>
    %cst_97 = arith.constant 0.000000e+00 : f32
    %112 = vector.broadcast %cst_97 : f32 to vector<12x128xf32>
    %113 = arith.cmpf ogt, %111, %112 : vector<12x128xf32>
    %cst_98 = arith.constant 0.00999999977 : f32
    %114 = vector.broadcast %cst_98 : f32 to vector<12x128xf32>
    %115 = arith.mulf %114, %111 : vector<12x128xf32>
    %116 = arith.select %113, %111, %115 : vector<12x128xi1>, vector<12x128xf32>
    %117 = arith.truncf %116 : vector<12x128xf32> to vector<12x128xbf16>
    %c0_99 = arith.constant 0 : index
    %c0_100 = arith.constant 0 : index
    %118 = vector.load %arg25[%c0_99, %c0_100] : memref<6x12xbf16, #tpu.memory_space<vmem>>, vector<6x12xbf16>
    %cst_101 = arith.constant dense<0.000000e+00> : vector<6x128xf32>
    %119 = tpu.matmul %118, %117, %cst_101 {dimension_numbers = #tpu.dot_dimension_numbers<[1], [0], [0], [1], [0, 0, 1, 1], [], []>} : vector<6x12xbf16>, vector<12x128xbf16>, vector<6x128xf32> -> vector<6x128xf32>
    %c0_102 = arith.constant 0 : index
    %c0_103 = arith.constant 0 : index
    %120 = vector.load %arg26[%c0_102, %c0_103] : memref<6x12xbf16, #tpu.memory_space<vmem>>, vector<6x12xbf16>
    %cst_104 = arith.constant dense<0.000000e+00> : vector<6x128xf32>
    %121 = tpu.matmul %120, %117, %cst_104 {dimension_numbers = #tpu.dot_dimension_numbers<[1], [0], [0], [1], [0, 0, 1, 1], [], []>} : vector<6x12xbf16>, vector<12x128xbf16>, vector<6x128xf32> -> vector<6x128xf32>
    %122 = arith.maximumf %119, %121 : vector<6x128xf32>
    %123 = arith.truncf %122 : vector<6x128xf32> to vector<6x128xbf16>
    %c0_105 = arith.constant 0 : index
    %c0_106 = arith.constant 0 : index
    %124 = vector.load %arg27[%c0_105, %c0_106] : memref<4x6xbf16, #tpu.memory_space<vmem>>, vector<4x6xbf16>
    %cst_107 = arith.constant dense<0.000000e+00> : vector<4x128xf32>
    %125 = tpu.matmul %124, %123, %cst_107 {dimension_numbers = #tpu.dot_dimension_numbers<[1], [0], [0], [1], [0, 0, 1, 1], [], []>} : vector<4x6xbf16>, vector<6x128xbf16>, vector<4x128xf32> -> vector<4x128xf32>
    %126 = arith.truncf %125 : vector<4x128xf32> to vector<4x128xbf16>
    %c0_108 = arith.constant 0 : index
    %c0_109 = arith.constant 0 : index
    %c0_110 = arith.constant 0 : index
    %127 = vector.load %arg30[%c0_108, %c0_109, %c0_110] : memref<3x128x128xbf16, #tpu.memory_space<vmem>>, vector<1x128x128xbf16>
    %128 = vector.shape_cast %127 : vector<1x128x128xbf16> to vector<128x128xbf16>
    %cst_111 = arith.constant dense<0.000000e+00> : vector<4x128xf32>
    %129 = tpu.matmul %126, %128, %cst_111 {dimension_numbers = #tpu.dot_dimension_numbers<[1], [0], [0], [1], [0, 0, 1, 1], [], []>} : vector<4x128xbf16>, vector<128x128xbf16>, vector<4x128xf32> -> vector<4x128xf32>
    %c0_112 = arith.constant 0 : index
    %c0_113 = arith.constant 0 : index
    %130 = vector.load %arg28[%c0_112, %c0_113] : memref<4x6xbf16, #tpu.memory_space<vmem>>, vector<4x6xbf16>
    %cst_114 = arith.constant dense<0.000000e+00> : vector<4x128xf32>
    %131 = tpu.matmul %130, %123, %cst_114 {dimension_numbers = #tpu.dot_dimension_numbers<[1], [0], [0], [1], [0, 0, 1, 1], [], []>} : vector<4x6xbf16>, vector<6x128xbf16>, vector<4x128xf32> -> vector<4x128xf32>
    %132 = arith.truncf %131 : vector<4x128xf32> to vector<4x128xbf16>
    %c1_115 = arith.constant 1 : index
    %c0_116 = arith.constant 0 : index
    %c0_117 = arith.constant 0 : index
    %133 = vector.load %arg30[%c1_115, %c0_116, %c0_117] : memref<3x128x128xbf16, #tpu.memory_space<vmem>>, vector<1x128x128xbf16>
    %134 = vector.shape_cast %133 : vector<1x128x128xbf16> to vector<128x128xbf16>
    %cst_118 = arith.constant dense<0.000000e+00> : vector<4x128xf32>
    %135 = tpu.matmul %132, %134, %cst_118 {dimension_numbers = #tpu.dot_dimension_numbers<[1], [0], [0], [1], [0, 0, 1, 1], [], []>} : vector<4x128xbf16>, vector<128x128xbf16>, vector<4x128xf32> -> vector<4x128xf32>
    %136 = arith.addf %129, %135 : vector<4x128xf32>
    %c0_119 = arith.constant 0 : index
    %c0_120 = arith.constant 0 : index
    %137 = vector.load %arg29[%c0_119, %c0_120] : memref<4x6xbf16, #tpu.memory_space<vmem>>, vector<4x6xbf16>
    %cst_121 = arith.constant dense<0.000000e+00> : vector<4x128xf32>
    %138 = tpu.matmul %137, %123, %cst_121 {dimension_numbers = #tpu.dot_dimension_numbers<[1], [0], [0], [1], [0, 0, 1, 1], [], []>} : vector<4x6xbf16>, vector<6x128xbf16>, vector<4x128xf32> -> vector<4x128xf32>
    %139 = arith.truncf %138 : vector<4x128xf32> to vector<4x128xbf16>
    %c2_122 = arith.constant 2 : index
    %c0_123 = arith.constant 0 : index
    %c0_124 = arith.constant 0 : index
    %140 = vector.load %arg30[%c2_122, %c0_123, %c0_124] : memref<3x128x128xbf16, #tpu.memory_space<vmem>>, vector<1x128x128xbf16>
    %141 = vector.shape_cast %140 : vector<1x128x128xbf16> to vector<128x128xbf16>
    %cst_125 = arith.constant dense<0.000000e+00> : vector<4x128xf32>
    %142 = tpu.matmul %139, %141, %cst_125 {dimension_numbers = #tpu.dot_dimension_numbers<[1], [0], [0], [1], [0, 0, 1, 1], [], []>} : vector<4x128xbf16>, vector<128x128xbf16>, vector<4x128xf32> -> vector<4x128xf32>
    %143 = arith.addf %136, %142 : vector<4x128xf32>
    %c0_126 = arith.constant 0 : index
    %c0_127 = arith.constant 0 : index
    %144 = vector.load %arg31[%c0_126, %c0_127] : memref<1x128xf32, #tpu.memory_space<vmem>>, vector<1x128xf32>
    %145 = vector.broadcast %144 : vector<1x128xf32> to vector<4x128xf32>
    %146 = arith.addf %143, %145 : vector<4x128xf32>
    %cst_128 = arith.constant dense<0.000000e+00> : vector<128xf32>
    %147 = vector.multi_reduction <add>, %146, %cst_128 [0] : vector<4x128xf32> to vector<128xf32>
    %148 = vector.shape_cast %147 : vector<128xf32> to vector<1x128xf32>
    %cst_129 = arith.constant 4.000000e+00 : f32
    %149 = vector.broadcast %cst_129 : f32 to vector<1x128xf32>
    %150 = arith.divf %148, %149 : vector<1x128xf32>
    %c0_130 = arith.constant 0 : index
    %c0_131 = arith.constant 0 : index
    %c0_132 = arith.constant 0 : index
    %151 = vector.load %arg32[%c0_130, %c0_131, %c0_132] : memref<1x1x128xf32, #tpu.memory_space<vmem>>, vector<1x1x128xf32>
    %152 = vector.shape_cast %151 : vector<1x1x128xf32> to vector<1x128xf32>
    %153 = vector.shape_cast %150 : vector<1x128xf32> to vector<1x1x128xf32>
    tpu.vector_store %arg32[%c0_130, %c0_131, %c0_132], %153 {strides = array<i32>} : memref<1x1x128xf32, #tpu.memory_space<vmem>>, vector<1x1x128xf32>,
    return
  }
  func.func @transform_0(%arg0: i32) -> (i32, i32, i32) {
    %c0_i32 = arith.constant 0 : i32
    %c0_i32_0 = arith.constant 0 : i32
    %c0_i32_1 = arith.constant 0 : i32
    return %arg0, %c0_i32, %c0_i32_0 : i32, i32, i32
  }
  func.func @transform_1(%arg0: i32) -> (i32, i32) {
    %c0_i32 = arith.constant 0 : i32
    %c0_i32_0 = arith.constant 0 : i32
    %c0_i32_1 = arith.constant 0 : i32
    return %c0_i32, %c0_i32_0 : i32, i32
  }
  func.func @transform_2(%arg0: i32) -> (i32, i32) {
    %c0_i32 = arith.constant 0 : i32
    %c0_i32_0 = arith.constant 0 : i32
    %c0_i32_1 = arith.constant 0 : i32
    return %c0_i32, %c0_i32_0 : i32, i32
  }
  func.func @transform_3(%arg0: i32) -> (i32, i32) {
    %c0_i32 = arith.constant 0 : i32
    %c0_i32_0 = arith.constant 0 : i32
    %c0_i32_1 = arith.constant 0 : i32
    return %c0_i32, %c0_i32_0 : i32, i32
  }
  func.func @transform_4(%arg0: i32) -> (i32, i32) {
    %c0_i32 = arith.constant 0 : i32
    %c0_i32_0 = arith.constant 0 : i32
    %c0_i32_1 = arith.constant 0 : i32
    return %c0_i32, %c0_i32_0 : i32, i32
  }
  func.func @transform_5(%arg0: i32) -> (i32, i32) {
    %c0_i32 = arith.constant 0 : i32
    %c0_i32_0 = arith.constant 0 : i32
    %c0_i32_1 = arith.constant 0 : i32
    return %c0_i32, %c0_i32_0 : i32, i32
  }
  func.func @transform_6(%arg0: i32) -> (i32, i32) {
    %c0_i32 = arith.constant 0 : i32
    %c0_i32_0 = arith.constant 0 : i32
    %c0_i32_1 = arith.constant 0 : i32
    return %c0_i32, %c0_i32_0 : i32, i32
  }
  func.func @transform_7(%arg0: i32) -> (i32, i32) {
    %c0_i32 = arith.constant 0 : i32
    %c0_i32_0 = arith.constant 0 : i32
    %c0_i32_1 = arith.constant 0 : i32
    return %c0_i32, %c0_i32_0 : i32, i32
  }
  func.func @transform_8(%arg0: i32) -> (i32, i32, i32) {
    %c0_i32 = arith.constant 0 : i32
    %c0_i32_0 = arith.constant 0 : i32
    %c0_i32_1 = arith.constant 0 : i32
    %c0_i32_2 = arith.constant 0 : i32
    return %c0_i32, %c0_i32_0, %c0_i32_1 : i32, i32, i32
  }
  func.func @transform_9(%arg0: i32) -> (i32, i32) {
    %c0_i32 = arith.constant 0 : i32
    %c0_i32_0 = arith.constant 0 : i32
    %c0_i32_1 = arith.constant 0 : i32
    return %c0_i32, %c0_i32_0 : i32, i32
  }
  func.func @transform_10(%arg0: i32) -> (i32, i32) {
    %c0_i32 = arith.constant 0 : i32
    %c0_i32_0 = arith.constant 0 : i32
    %c0_i32_1 = arith.constant 0 : i32
    return %c0_i32, %c0_i32_0 : i32, i32
  }
  func.func @transform_11(%arg0: i32) -> (i32, i32) {
    %c0_i32 = arith.constant 0 : i32
    %c0_i32_0 = arith.constant 0 : i32
    %c0_i32_1 = arith.constant 0 : i32
    return %c0_i32, %c0_i32_0 : i32, i32
  }
  func.func @transform_12(%arg0: i32) -> (i32, i32) {
    %c0_i32 = arith.constant 0 : i32
    %c0_i32_0 = arith.constant 0 : i32
    %c0_i32_1 = arith.constant 0 : i32
    return %c0_i32, %c0_i32_0 : i32, i32
  }
  func.func @transform_13(%arg0: i32) -> (i32, i32) {
    %c0_i32 = arith.constant 0 : i32
    %c0_i32_0 = arith.constant 0 : i32
    %c0_i32_1 = arith.constant 0 : i32
    return %c0_i32, %c0_i32_0 : i32, i32
  }
  func.func @transform_14(%arg0: i32) -> (i32, i32) {
    %c0_i32 = arith.constant 0 : i32
    %c0_i32_0 = arith.constant 0 : i32
    %c0_i32_1 = arith.constant 0 : i32
    return %c0_i32, %c0_i32_0 : i32, i32
  }
  func.func @transform_15(%arg0: i32) -> (i32, i32, i32) {
    %c0_i32 = arith.constant 0 : i32
    %c0_i32_0 = arith.constant 0 : i32
    %c0_i32_1 = arith.constant 0 : i32
    %c0_i32_2 = arith.constant 0 : i32
    return %c0_i32, %c0_i32_0, %c0_i32_1 : i32, i32, i32
  }
  func.func @transform_16(%arg0: i32) -> (i32, i32) {
    %c0_i32 = arith.constant 0 : i32
    %c0_i32_0 = arith.constant 0 : i32
    %c0_i32_1 = arith.constant 0 : i32
    return %c0_i32, %c0_i32_0 : i32, i32
  }
  func.func @transform_17(%arg0: i32) -> (i32, i32) {
    %c0_i32 = arith.constant 0 : i32
    %c0_i32_0 = arith.constant 0 : i32
    %c0_i32_1 = arith.constant 0 : i32
    return %c0_i32, %c0_i32_0 : i32, i32
  }
  func.func @transform_18(%arg0: i32) -> (i32, i32) {
    %c0_i32 = arith.constant 0 : i32
    %c0_i32_0 = arith.constant 0 : i32
    %c0_i32_1 = arith.constant 0 : i32
    return %c0_i32, %c0_i32_0 : i32, i32
  }
  func.func @transform_19(%arg0: i32) -> (i32, i32) {
    %c0_i32 = arith.constant 0 : i32
    %c0_i32_0 = arith.constant 0 : i32
    %c0_i32_1 = arith.constant 0 : i32
    return %c0_i32, %c0_i32_0 : i32, i32
  }
  func.func @transform_20(%arg0: i32) -> (i32, i32) {
    %c0_i32 = arith.constant 0 : i32
    %c0_i32_0 = arith.constant 0 : i32
    %c0_i32_1 = arith.constant 0 : i32
    return %c0_i32, %c0_i32_0 : i32, i32
  }
  func.func @transform_21(%arg0: i32) -> (i32, i32) {
    %c0_i32 = arith.constant 0 : i32
    %c0_i32_0 = arith.constant 0 : i32
    %c0_i32_1 = arith.constant 0 : i32
    return %c0_i32, %c0_i32_0 : i32, i32
  }
  func.func @transform_22(%arg0: i32) -> (i32, i32, i32) {
    %c0_i32 = arith.constant 0 : i32
    %c0_i32_0 = arith.constant 0 : i32
    %c0_i32_1 = arith.constant 0 : i32
    %c0_i32_2 = arith.constant 0 : i32
    return %c0_i32, %c0_i32_0, %c0_i32_1 : i32, i32, i32
  }
  func.func @transform_23(%arg0: i32) -> (i32, i32) {
    %c0_i32 = arith.constant 0 : i32
    %c0_i32_0 = arith.constant 0 : i32
    %c0_i32_1 = arith.constant 0 : i32
    return %c0_i32, %c0_i32_0 : i32, i32
  }
  func.func @transform_24(%arg0: i32) -> (i32, i32) {
    %c0_i32 = arith.constant 0 : i32
    %c0_i32_0 = arith.constant 0 : i32
    %c0_i32_1 = arith.constant 0 : i32
    return %c0_i32, %c0_i32_0 : i32, i32
  }
  func.func @transform_25(%arg0: i32) -> (i32, i32) {
    %c0_i32 = arith.constant 0 : i32
    %c0_i32_0 = arith.constant 0 : i32
    %c0_i32_1 = arith.constant 0 : i32
    return %c0_i32, %c0_i32_0 : i32, i32
  }
  func.func @transform_26(%arg0: i32) -> (i32, i32) {
    %c0_i32 = arith.constant 0 : i32
    %c0_i32_0 = arith.constant 0 : i32
    %c0_i32_1 = arith.constant 0 : i32
    return %c0_i32, %c0_i32_0 : i32, i32
  }
  func.func @transform_27(%arg0: i32) -> (i32, i32) {
    %c0_i32 = arith.constant 0 : i32
    %c0_i32_0 = arith.constant 0 : i32
    %c0_i32_1 = arith.constant 0 : i32
    return %c0_i32, %c0_i32_0 : i32, i32
  }
  func.func @transform_28(%arg0: i32) -> (i32, i32) {
    %c0_i32 = arith.constant 0 : i32
    %c0_i32_0 = arith.constant 0 : i32
    %c0_i32_1 = arith.constant 0 : i32
    return %c0_i32, %c0_i32_0 : i32, i32
  }
  func.func @transform_29(%arg0: i32) -> (i32, i32, i32) {
    %c0_i32 = arith.constant 0 : i32
    %c0_i32_0 = arith.constant 0 : i32
    %c0_i32_1 = arith.constant 0 : i32
    %c0_i32_2 = arith.constant 0 : i32
    return %c0_i32, %c0_i32_0, %c0_i32_1 : i32, i32, i32
  }
  func.func @transform_30(%arg0: i32) -> (i32, i32) {
    %c0_i32 = arith.constant 0 : i32
    %c0_i32_0 = arith.constant 0 : i32
    %c0_i32_1 = arith.constant 0 : i32
    return %c0_i32, %c0_i32_0 : i32, i32
  }
  func.func @transform_31(%arg0: i32) -> (i32, i32, i32) {
    %c0_i32 = arith.constant 0 : i32
    %c0_i32_0 = arith.constant 0 : i32
    %c0_i32_1 = arith.constant 0 : i32
    return %arg0, %c0_i32, %c0_i32_0 : i32, i32, i32
  }
}

</mosaic_0001>

<llo_original>
// kernel: _lambda_.1
$region0: #{_lambda_.1}
  #allocation0 [shape = 'u32[]', space=smem, size = 0x4, offset = 0x4, fixed_abs, tag = 'smem constant byte address 0x4 - core index']
  #allocation1 [shape = 'u32[144,128]{1,0:T(1,128)}', space=vmem, size = 0x12000, scoped, tag = 'internal scratch']
  %s0 = inlined_call_operand.smem [shape: u32[32], index: -1, kind: input, shape index: {}]
  %s1 = sld [smem:[%s0]]
  %s2 = scalar_lea.smem %s0, 1
  %s3 = sld [smem:[%s2]]
  %s4 = scalar_lea.smem %s0, 2
  %s5 = sld [smem:[%s4]]
  %s6 = scalar_lea.smem %s0, 3
  %s7 = sld [smem:[%s6]]
  %s8 = scalar_lea.smem %s0, 4
  %s9 = sld [smem:[%s8]]
  %s10 = scalar_lea.smem %s0, 5
  %s11 = sld [smem:[%s10]]
  %s12 = scalar_lea.smem %s0, 6
  %s13 = sld [smem:[%s12]]
  %s14 = scalar_lea.smem %s0, 7
  %s15 = sld [smem:[%s14]]
  %s16 = scalar_lea.smem %s0, 8
  %s17 = sld [smem:[%s16]]
  %s18 = scalar_lea.smem %s0, 9
  %s19 = sld [smem:[%s18]]
  %s20 = scalar_lea.smem %s0, 10
  %s21 = sld [smem:[%s20]]
  %s22 = scalar_lea.smem %s0, 11
  %s23 = sld [smem:[%s22]]
  %s24 = scalar_lea.smem %s0, 12
  %s25 = sld [smem:[%s24]]
  %s26 = scalar_lea.smem %s0, 13
  %s27 = sld [smem:[%s26]]
  %s28 = scalar_lea.smem %s0, 14
  %s29 = sld [smem:[%s28]]
  %s30 = scalar_lea.smem %s0, 15
  %s31 = sld [smem:[%s30]]
  %s32 = scalar_lea.smem %s0, 16
  %s33 = sld [smem:[%s32]]
  %s34 = scalar_lea.smem %s0, 17
  %s35 = sld [smem:[%s34]]
  %s36 = scalar_lea.smem %s0, 18
  %s37 = sld [smem:[%s36]]
  %s38 = scalar_lea.smem %s0, 19
  %s39 = sld [smem:[%s38]]
  %s40 = scalar_lea.smem %s0, 20
  %s41 = sld [smem:[%s40]]
  %s42 = scalar_lea.smem %s0, 21
  %s43 = sld [smem:[%s42]]
  %s44 = scalar_lea.smem %s0, 22
  %s45 = sld [smem:[%s44]]
  %s46 = scalar_lea.smem %s0, 23
  %s47 = sld [smem:[%s46]]
  %s48 = scalar_lea.smem %s0, 24
  %s49 = sld [smem:[%s48]]
  %s50 = scalar_lea.smem %s0, 25
  %s51 = sld [smem:[%s50]]
  %s52 = scalar_lea.smem %s0, 26
  %s53 = sld [smem:[%s52]]
  %s54 = scalar_lea.smem %s0, 27
  %s55 = sld [smem:[%s54]]
  %s56 = scalar_lea.smem %s0, 28
  %s57 = sld [smem:[%s56]]
  %s58 = scalar_lea.smem %s0, 29
  %s59 = sld [smem:[%s58]]
  %s60 = scalar_lea.smem %s0, 30
  %s61 = sld [smem:[%s60]]
  %s62 = scalar_lea.smem %s0, 31
  %s63 = sld [smem:[%s62]]
  %s64 = sld [smem:[#allocation0]]
  $region225: #{_lambda_.1} parent=0
    _
  %s66 = ssub.s32 1, %s64
  %s67 = scalar_select 0, %s66, %s64
  $region1: #{_lambda_.1} parent=0
    #allocation2 [shape = 'u8[16384]{0}', space=vmem, size = 0x4000, scoped, tag = 'input window, operand 7, single buffered']
    #allocation3 [shape = 's32[2]{0}', space=sflag, size = 0x8, scoped, tag = 'scoped memory for _lambda_.1']
    #allocation4 [shape = 's32[2]{0}', space=sflag, size = 0x8, scoped, tag = 'scoped memory for _lambda_.1']
    #allocation5 [shape = 'u8[8192]{0}', space=vmem, size = 0x2000, scoped, tag = 'input window, operand 11, single buffered']
    #allocation6 [shape = 's32[1]{0}', space=sflag, size = 0x4, scoped, tag = 'scoped memory for _lambda_.1']
    #allocation7 [shape = 'u8[8192]{0}', space=vmem, size = 0x2000, scoped, tag = 'input window, operand 12, single buffered']
    #allocation8 [shape = 'u8[8192]{0}', space=vmem, size = 0x2000, scoped, tag = 'input window, operand 13, single buffered']
    #allocation9 [shape = 's32[1]{0}', space=sflag, size = 0x4, scoped, tag = 'scoped memory for _lambda_.1']
    #allocation10 [shape = 'u8[8192]{0}', space=vmem, size = 0x2000, scoped, tag = 'input window, operand 14, single buffered']
    #allocation11 [shape = 'u8[4096]{0}', space=vmem, size = 0x1000, scoped, tag = 'input window, operand 17, single buffered']
    #allocation12 [shape = 's32[1]{0}', space=sflag, size = 0x4, scoped, tag = 'scoped memory for _lambda_.1']
    #allocation13 [shape = 'u8[4096]{0}', space=vmem, size = 0x1000, scoped, tag = 'input window, operand 18, single buffered']
    #allocation14 [shape = 'u8[4096]{0}', space=vmem, size = 0x1000, scoped, tag = 'input window, operand 19, single buffered']
    #allocation15 [shape = 's32[1]{0}', space=sflag, size = 0x4, scoped, tag = 'scoped memory for _lambda_.1']
    #allocation16 [shape = 'u8[4096]{0}', space=vmem, size = 0x1000, scoped, tag = 'input window, operand 20, single buffered']
    #allocation17 [shape = 'u8[4096]{0}', space=vmem, size = 0x1000, scoped, tag = 'input window, operand 21, single buffered']
    #allocation18 [shape = 's32[1]{0}', space=sflag, size = 0x4, scoped, tag = 'scoped memory for _lambda_.1']
    #allocation19 [shape = 'u8[98304]{0}', space=vmem, size = 0x18000, scoped, tag = 'input window, operand 22, single buffered']
    #allocation20 [shape = 'u8[2048]{0}', space=vmem, size = 0x800, scoped, tag = 'input window, operand 24, single buffered']
    #allocation21 [shape = 's32[1]{0}', space=sflag, size = 0x4, scoped, tag = 'scoped memory for _lambda_.1']
    #allocation22 [shape = 'u8[2048]{0}', space=vmem, size = 0x800, scoped, tag = 'input window, operand 25, single buffered']
    #allocation23 [shape = 'u8[1024]{0}', space=vmem, size = 0x400, scoped, tag = 'input window, operand 26, single buffered']
    #allocation24 [shape = 's32[1]{0}', space=sflag, size = 0x4, scoped, tag = 'scoped memory for _lambda_.1']
    #allocation25 [shape = 'u8[1024]{0}', space=vmem, size = 0x400, scoped, tag = 'input window, operand 27, single buffered']
    #allocation26 [shape = 'u8[1024]{0}', space=vmem, size = 0x400, scoped, tag = 'input window, operand 28, single buffered']
    #allocation27 [shape = 's32[1]{0}', space=sflag, size = 0x4, scoped, tag = 'scoped memory for _lambda_.1']
    #allocation28 [shape = 'u8[98304]{0}', space=vmem, size = 0x18000, scoped, tag = 'input window, operand 29, single buffered']
    #allocation29 [shape = 'u8[1024]{0}', space=vmem, size = 0x400, scoped, tag = 'output window, operand 0']
    %68 = vsyncpa [#allocation3], 0
    %69 = vsyncpa [#allocation6], 0
    %70 = vsyncpa [#allocation9], 0
    %71 = vsyncpa [#allocation12], 0
    %72 = vsyncpa [#allocation15], 0
    %73 = vsyncpa [#allocation18], 0
    %74 = vsyncpa [#allocation21], 0
    %75 = vsyncpa [#allocation24], 0
    %76 = vsyncpa [#allocation27], 0
    %77 = vsyncpa [#allocation4], 0
    %s78 = scalar_lea.sflag [#allocation4], 1
    %79 = vsyncpa %s78, 0
    loop: start=0, step=1, limit=4
    $region2: #{_lambda_.1} parent=1 // loop_pre_header
      _
    $region3: #{_lambda_.1} parent=1 // loop_header
      %s81 = sphi 0, %s85
      %p82 = scmp.ge.s32.totalorder %s81, 4
      %s91 = sphi 0, %s93
      %s94 = sphi 0, %s91
      %s95 = sphi 0, %s94
      %s111 = sphi 0, %s95
      %s115 = sphi 0, %s115
      %s117 = sphi 0, %s115
      %s118 = sphi 0, %s117
      %s132 = sphi 0, %s118
      %s136 = sphi 0, %s136
      %s138 = sphi 0, %s136
      %s139 = sphi 0, %s138
      %s153 = sphi 0, %s139
      %s157 = sphi 0, %s157
      %s159 = sphi 0, %s157
      %s160 = sphi 0, %s159
      %s174 = sphi 0, %s160
      %s178 = sphi 0, %s178
      %s180 = sphi 0, %s178
      %s181 = sphi 0, %s180
      %s195 = sphi 0, %s181
      %s199 = sphi 0, %s199
      %s201 = sphi 0, %s199
      %s202 = sphi 0, %s201
      %s216 = sphi 0, %s202
      %s220 = sphi 0, %s220
      %s222 = sphi 0, %s220
      %s223 = sphi 0, %s222
      %s237 = sphi 0, %s223
      %s241 = sphi 0, %s241
      %s243 = sphi 0, %s241
      %s244 = sphi 0, %s243
      %s258 = sphi 0, %s244
      %s262 = sphi 0, %s262
      %s264 = sphi 0, %s262
      %s265 = sphi 0, %s264
      %s279 = sphi 0, %s265
      %s283 = sphi 0, %s283
      %s285 = sphi 0, %s283
      %s286 = sphi 0, %s285
      %s300 = sphi 0, %s286
      %s304 = sphi 0, %s304
      %s306 = sphi 0, %s304
      %s307 = sphi 0, %s306
      %s321 = sphi 0, %s307
      %s325 = sphi 0, %s325
      %s327 = sphi 0, %s325
      %s328 = sphi 0, %s327
      %s342 = sphi 0, %s328
      %s346 = sphi 0, %s346
      %s348 = sphi 0, %s346
      %s349 = sphi 0, %s348
      %s363 = sphi 0, %s349
      %s367 = sphi 0, %s367
      %s369 = sphi 0, %s367
      %s370 = sphi 0, %s369
      %s384 = sphi 0, %s370
      %s388 = sphi 0, %s388
      %s390 = sphi 0, %s388
      %s391 = sphi 0, %s390
      %s405 = sphi 0, %s391
      %s409 = sphi 0, %s409
      %s411 = sphi 0, %s409
      %s412 = sphi 0, %s411
      %s426 = sphi 0, %s412
      %s430 = sphi 0, %s430
      %s432 = sphi 0, %s430
      %s433 = sphi 0, %s432
      %s447 = sphi 0, %s433
      %s451 = sphi 0, %s451
      %s453 = sphi 0, %s451
      %s454 = sphi 0, %s453
      %s468 = sphi 0, %s454
      %s472 = sphi 0, %s472
      %s474 = sphi 0, %s472
      %s475 = sphi 0, %s474
      %s489 = sphi 0, %s475
      %s493 = sphi 0, %s493
      %s495 = sphi 0, %s493
      %s496 = sphi 0, %s495
      %s510 = sphi 0, %s496
      %s514 = sphi 0, %s514
      %s516 = sphi 0, %s514
      %s517 = sphi 0, %s516
      %s531 = sphi 0, %s517
      %s535 = sphi 0, %s535
      %s537 = sphi 0, %s535
      %s538 = sphi 0, %s537
      %s552 = sphi 0, %s538
      %s556 = sphi 0, %s556
      %s558 = sphi 0, %s556
      %s559 = sphi 0, %s558
      %s573 = sphi 0, %s559
      %s577 = sphi 0, %s577
      %s579 = sphi 0, %s577
      %s580 = sphi 0, %s579
      %s594 = sphi 0, %s580
      %s598 = sphi 0, %s598
      %s600 = sphi 0, %s598
      %s601 = sphi 0, %s600
      %s615 = sphi 0, %s601
      %s619 = sphi 0, %s619
      %s621 = sphi 0, %s619
      %s622 = sphi 0, %s621
      %s636 = sphi 0, %s622
      %s640 = sphi 0, %s640
      %s642 = sphi 0, %s640
      %s643 = sphi 0, %s642
      %s657 = sphi 0, %s643
      %s661 = sphi 0, %s661
      %s663 = sphi 0, %s661
      %s664 = sphi 0, %s663
      %s678 = sphi 0, %s664
      %s682 = sphi 0, %s682
      %s684 = sphi 0, %s682
      %s685 = sphi 0, %s684
      %s699 = sphi 0, %s685
      %s703 = sphi 0, %s703
      %s705 = sphi 0, %s703
      %s706 = sphi 0, %s705
      %s720 = sphi 0, %s706
      %s724 = sphi 0, %s724
      %s726 = sphi 0, %s724
      %s727 = sphi 0, %s726
      %s741 = sphi 0, %s727
      %s747 = sphi 0, %s749
      %s750 = sphi 0, %s747
      %s751 = sphi 0, %s750
      %s767 = sphi 0, %s751
    $region4: #{_lambda_.1} parent=1 // loop_header_branch
      %84 = sbr.rel (%p82) target = $region8
    $region5: #{_lambda_.1} parent=1 // loop_body
      %s86 = ssub.s32 %s81, 1
      %s87 = ssub.s32 %s81, 2
      %s88 = sadd.s32 %s81, 1
      %s89 = ssub.s32 %s81, %s88
      %p90 = scmp.eq.s32.totalorder %s89, 0
      %s92 = sadd.s32 %s91, 1
      %s93 = scalar_select %p90, %s91, %s92
      %p96 = pneg %p90
      %p97 = scmp.eq.s32.totalorder %s81, 1
      %p98 = por %p96, %p97
      %p99 = scmp.ne.s32.totalorder %s91, %s94
      %p100 = scmp.eq.s32.totalorder %s81, 0
      %p101 = por %p99, %p100
      %p102 = scmp.ne.s32.totalorder %s91, %s94
      %p103 = scmp.eq.s32.totalorder %s86, 1
      %p104 = por %p102, %p103
      %p105 = scmp.ne.s32.totalorder %s94, %s95
      %p106 = scmp.eq.s32.totalorder %s86, 0
      %p107 = por %p105, %p106
      %p108 = scmp.ne.s32.totalorder %s94, %s95
      %p109 = scmp.eq.s32.totalorder %s87, 1
      %p110 = por %p108, %p109
      %p112 = scmp.ne.s32.totalorder %s95, %s111
      %p113 = scmp.eq.s32.totalorder %s87, 0
      %p114 = por %p112, %p113
      %s116 = sadd.s32 %s115, 1
      %p119 = scmp.eq.s32.totalorder %s81, 1
      %p120 = scmp.ne.s32.totalorder %s115, %s117
      %p121 = scmp.eq.s32.totalorder %s81, 0
      %p122 = por %p120, %p121
      %p123 = scmp.ne.s32.totalorder %s115, %s117
      %p124 = scmp.eq.s32.totalorder %s86, 1
      %p125 = por %p123, %p124
      %p126 = scmp.ne.s32.totalorder %s117, %s118
      %p127 = scmp.eq.s32.totalorder %s86, 0
      %p128 = por %p126, %p127
      %p129 = scmp.ne.s32.totalorder %s117, %s118
      %p130 = scmp.eq.s32.totalorder %s87, 1
      %p131 = por %p129, %p130
      %p133 = scmp.ne.s32.totalorder %s118, %s132
      %p134 = scmp.eq.s32.totalorder %s87, 0
      %p135 = por %p133, %p134
      %s137 = sadd.s32 %s136, 1
      %p140 = scmp.eq.s32.totalorder %s81, 1
      %p141 = scmp.ne.s32.totalorder %s136, %s138
      %p142 = scmp.eq.s32.totalorder %s81, 0
      %p143 = por %p141, %p142
      %p144 = scmp.ne.s32.totalorder %s136, %s138
      %p145 = scmp.eq.s32.totalorder %s86, 1
      %p146 = por %p144, %p145
      %p147 = scmp.ne.s32.totalorder %s138, %s139
      %p148 = scmp.eq.s32.totalorder %s86, 0
      %p149 = por %p147, %p148
      %p150 = scmp.ne.s32.totalorder %s138, %s139
      %p151 = scmp.eq.s32.totalorder %s87, 1
      %p152 = por %p150, %p151
      %p154 = scmp.ne.s32.totalorder %s139, %s153
      %p155 = scmp.eq.s32.totalorder %s87, 0
      %p156 = por %p154, %p155
      %s158 = sadd.s32 %s157, 1
      %p161 = scmp.eq.s32.totalorder %s81, 1
      %p162 = scmp.ne.s32.totalorder %s157, %s159
      %p163 = scmp.eq.s32.totalorder %s81, 0
      %p164 = por %p162, %p163
      %p165 = scmp.ne.s32.totalorder %s157, %s159
      %p166 = scmp.eq.s32.totalorder %s86, 1
      %p167 = por %p165, %p166
      %p168 = scmp.ne.s32.totalorder %s159, %s160
      %p169 = scmp.eq.s32.totalorder %s86, 0
      %p170 = por %p168, %p169
      %p171 = scmp.ne.s32.totalorder %s159, %s160
      %p172 = scmp.eq.s32.totalorder %s87, 1
      %p173 = por %p171, %p172
      %p175 = scmp.ne.s32.totalorder %s160, %s174
      %p176 = scmp.eq.s32.totalorder %s87, 0
      %p177 = por %p175, %p176
      %s179 = sadd.s32 %s178, 1
      %p182 = scmp.eq.s32.totalorder %s81, 1
      %p183 = scmp.ne.s32.totalorder %s178, %s180
      %p184 = scmp.eq.s32.totalorder %s81, 0
      %p185 = por %p183, %p184
      %p186 = scmp.ne.s32.totalorder %s178, %s180
      %p187 = scmp.eq.s32.totalorder %s86, 1
      %p188 = por %p186, %p187
      %p189 = scmp.ne.s32.totalorder %s180, %s181
      %p190 = scmp.eq.s32.totalorder %s86, 0
      %p191 = por %p189, %p190
      %p192 = scmp.ne.s32.totalorder %s180, %s181
      %p193 = scmp.eq.s32.totalorder %s87, 1
      %p194 = por %p192, %p193
      %p196 = scmp.ne.s32.totalorder %s181, %s195
      %p197 = scmp.eq.s32.totalorder %s87, 0
      %p198 = por %p196, %p197
      %s200 = sadd.s32 %s199, 1
      %p203 = scmp.eq.s32.totalorder %s81, 1
      %p204 = scmp.ne.s32.totalorder %s199, %s201
      %p205 = scmp.eq.s32.totalorder %s81, 0
      %p206 = por %p204, %p205
      %p207 = scmp.ne.s32.totalorder %s199, %s201
      %p208 = scmp.eq.s32.totalorder %s86, 1
      %p209 = por %p207, %p208
      %p210 = scmp.ne.s32.totalorder %s201, %s202
      %p211 = scmp.eq.s32.totalorder %s86, 0
      %p212 = por %p210, %p211
      %p213 = scmp.ne.s32.totalorder %s201, %s202
      %p214 = scmp.eq.s32.totalorder %s87, 1
      %p215 = por %p213, %p214
      %p217 = scmp.ne.s32.totalorder %s202, %s216
      %p218 = scmp.eq.s32.totalorder %s87, 0
      %p219 = por %p217, %p218
      %s221 = sadd.s32 %s220, 1
      %p224 = scmp.eq.s32.totalorder %s81, 1
      %p225 = scmp.ne.s32.totalorder %s220, %s222
      %p226 = scmp.eq.s32.totalorder %s81, 0
      %p227 = por %p225, %p226
      %p228 = scmp.ne.s32.totalorder %s220, %s222
      %p229 = scmp.eq.s32.totalorder %s86, 1
      %p230 = por %p228, %p229
      %p231 = scmp.ne.s32.totalorder %s222, %s223
      %p232 = scmp.eq.s32.totalorder %s86, 0
      %p233 = por %p231, %p232
      %p234 = scmp.ne.s32.totalorder %s222, %s223
      %p235 = scmp.eq.s32.totalorder %s87, 1
      %p236 = por %p234, %p235
      %p238 = scmp.ne.s32.totalorder %s223, %s237
      %p239 = scmp.eq.s32.totalorder %s87, 0
      %p240 = por %p238, %p239
      %s242 = sadd.s32 %s241, 1
      %p245 = scmp.eq.s32.totalorder %s81, 1
      %p246 = scmp.ne.s32.totalorder %s241, %s243
      %p247 = scmp.eq.s32.totalorder %s81, 0
      %p248 = por %p246, %p247
      %p249 = scmp.ne.s32.totalorder %s241, %s243
      %p250 = scmp.eq.s32.totalorder %s86, 1
      %p251 = por %p249, %p250
      %p252 = scmp.ne.s32.totalorder %s243, %s244
      %p253 = scmp.eq.s32.totalorder %s86, 0
      %p254 = por %p252, %p253
      %p255 = scmp.ne.s32.totalorder %s243, %s244
      %p256 = scmp.eq.s32.totalorder %s87, 1
      %p257 = por %p255, %p256
      %p259 = scmp.ne.s32.totalorder %s244, %s258
      %p260 = scmp.eq.s32.totalorder %s87, 0
      %p261 = por %p259, %p260
      %s263 = sadd.s32 %s262, 1
      %p266 = scmp.eq.s32.totalorder %s81, 1
      %p267 = scmp.ne.s32.totalorder %s262, %s264
      %p268 = scmp.eq.s32.totalorder %s81, 0
      %p269 = por %p267, %p268
      %p270 = scmp.ne.s32.totalorder %s262, %s264
      %p271 = scmp.eq.s32.totalorder %s86, 1
      %p272 = por %p270, %p271
      %p273 = scmp.ne.s32.totalorder %s264, %s265
      %p274 = scmp.eq.s32.totalorder %s86, 0
      %p275 = por %p273, %p274
      %p276 = scmp.ne.s32.totalorder %s264, %s265
      %p277 = scmp.eq.s32.totalorder %s87, 1
      %p278 = por %p276, %p277
      %p280 = scmp.ne.s32.totalorder %s265, %s279
      %p281 = scmp.eq.s32.totalorder %s87, 0
      %p282 = por %p280, %p281
      %s284 = sadd.s32 %s283, 1
      %p287 = scmp.eq.s32.totalorder %s81, 1
      %p288 = scmp.ne.s32.totalorder %s283, %s285
      %p289 = scmp.eq.s32.totalorder %s81, 0
      %p290 = por %p288, %p289
      %p291 = scmp.ne.s32.totalorder %s283, %s285
      %p292 = scmp.eq.s32.totalorder %s86, 1
      %p293 = por %p291, %p292
      %p294 = scmp.ne.s32.totalorder %s285, %s286
      %p295 = scmp.eq.s32.totalorder %s86, 0
      %p296 = por %p294, %p295
      %p297 = scmp.ne.s32.totalorder %s285, %s286
      %p298 = scmp.eq.s32.totalorder %s87, 1
      %p299 = por %p297, %p298
      %p301 = scmp.ne.s32.totalorder %s286, %s300
      %p302 = scmp.eq.s32.totalorder %s87, 0
      %p303 = por %p301, %p302
      %s305 = sadd.s32 %s304, 1
      %p308 = scmp.eq.s32.totalorder %s81, 1
      %p309 = scmp.ne.s32.totalorder %s304, %s306
      %p310 = scmp.eq.s32.totalorder %s81, 0
      %p311 = por %p309, %p310
      %p312 = scmp.ne.s32.totalorder %s304, %s306
      %p313 = scmp.eq.s32.totalorder %s86, 1
      %p314 = por %p312, %p313
      %p315 = scmp.ne.s32.totalorder %s306, %s307
      %p316 = scmp.eq.s32.totalorder %s86, 0
      %p317 = por %p315, %p316
      %p318 = scmp.ne.s32.totalorder %s306, %s307
      %p319 = scmp.eq.s32.totalorder %s87, 1
      %p320 = por %p318, %p319
      %p322 = scmp.ne.s32.totalorder %s307, %s321
      %p323 = scmp.eq.s32.totalorder %s87, 0
      %p324 = por %p322, %p323
      %s326 = sadd.s32 %s325, 1
      %p329 = scmp.eq.s32.totalorder %s81, 1
      %p330 = scmp.ne.s32.totalorder %s325, %s327
      %p331 = scmp.eq.s32.totalorder %s81, 0
      %p332 = por %p330, %p331
      %p333 = scmp.ne.s32.totalorder %s325, %s327
      %p334 = scmp.eq.s32.totalorder %s86, 1
      %p335 = por %p333, %p334
      %p336 = scmp.ne.s32.totalorder %s327, %s328
      %p337 = scmp.eq.s32.totalorder %s86, 0
      %p338 = por %p336, %p337
      %p339 = scmp.ne.s32.totalorder %s327, %s328
      %p340 = scmp.eq.s32.totalorder %s87, 1
      %p341 = por %p339, %p340
      %p343 = scmp.ne.s32.totalorder %s328, %s342
      %p344 = scmp.eq.s32.totalorder %s87, 0
      %p345 = por %p343, %p344
      %s347 = sadd.s32 %s346, 1
      %p350 = scmp.eq.s32.totalorder %s81, 1
      %p351 = scmp.ne.s32.totalorder %s346, %s348
      %p352 = scmp.eq.s32.totalorder %s81, 0
      %p353 = por %p351, %p352
      %p354 = scmp.ne.s32.totalorder %s346, %s348
      %p355 = scmp.eq.s32.totalorder %s86, 1
      %p356 = por %p354, %p355
      %p357 = scmp.ne.s32.totalorder %s348, %s349
      %p358 = scmp.eq.s32.totalorder %s86, 0
      %p359 = por %p357, %p358
      %p360 = scmp.ne.s32.totalorder %s348, %s349
      %p361 = scmp.eq.s32.totalorder %s87, 1
      %p362 = por %p360, %p361
      %p364 = scmp.ne.s32.totalorder %s349, %s363
      %p365 = scmp.eq.s32.totalorder %s87, 0
      %p366 = por %p364, %p365
      %s368 = sadd.s32 %s367, 1
      %p371 = scmp.eq.s32.totalorder %s81, 1
      %p372 = scmp.ne.s32.totalorder %s367, %s369
      %p373 = scmp.eq.s32.totalorder %s81, 0
      %p374 = por %p372, %p373
      %p375 = scmp.ne.s32.totalorder %s367, %s369
      %p376 = scmp.eq.s32.totalorder %s86, 1
      %p377 = por %p375, %p376
      %p378 = scmp.ne.s32.totalorder %s369, %s370
      %p379 = scmp.eq.s32.totalorder %s86, 0
      %p380 = por %p378, %p379
      %p381 = scmp.ne.s32.totalorder %s369, %s370
      %p382 = scmp.eq.s32.totalorder %s87, 1
      %p383 = por %p381, %p382
      %p385 = scmp.ne.s32.totalorder %s370, %s384
      %p386 = scmp.eq.s32.totalorder %s87, 0
      %p387 = por %p385, %p386
      %s389 = sadd.s32 %s388, 1
      %p392 = scmp.eq.s32.totalorder %s81, 1
      %p393 = scmp.ne.s32.totalorder %s388, %s390
      %p394 = scmp.eq.s32.totalorder %s81, 0
      %p395 = por %p393, %p394
      %p396 = scmp.ne.s32.totalorder %s388, %s390
      %p397 = scmp.eq.s32.totalorder %s86, 1
      %p398 = por %p396, %p397
      %p399 = scmp.ne.s32.totalorder %s390, %s391
      %p400 = scmp.eq.s32.totalorder %s86, 0
      %p401 = por %p399, %p400
      %p402 = scmp.ne.s32.totalorder %s390, %s391
      %p403 = scmp.eq.s32.totalorder %s87, 1
      %p404 = por %p402, %p403
      %p406 = scmp.ne.s32.totalorder %s391, %s405
      %p407 = scmp.eq.s32.totalorder %s87, 0
      %p408 = por %p406, %p407
      %s410 = sadd.s32 %s409, 1
      %p413 = scmp.eq.s32.totalorder %s81, 1
      %p414 = scmp.ne.s32.totalorder %s409, %s411
      %p415 = scmp.eq.s32.totalorder %s81, 0
      %p416 = por %p414, %p415
      %p417 = scmp.ne.s32.totalorder %s409, %s411
      %p418 = scmp.eq.s32.totalorder %s86, 1
      %p419 = por %p417, %p418
      %p420 = scmp.ne.s32.totalorder %s411, %s412
      %p421 = scmp.eq.s32.totalorder %s86, 0
      %p422 = por %p420, %p421
      %p423 = scmp.ne.s32.totalorder %s411, %s412
      %p424 = scmp.eq.s32.totalorder %s87, 1
      %p425 = por %p423, %p424
      %p427 = scmp.ne.s32.totalorder %s412, %s426
      %p428 = scmp.eq.s32.totalorder %s87, 0
      %p429 = por %p427, %p428
      %s431 = sadd.s32 %s430, 1
      %p434 = scmp.eq.s32.totalorder %s81, 1
      %p435 = scmp.ne.s32.totalorder %s430, %s432
      %p436 = scmp.eq.s32.totalorder %s81, 0
      %p437 = por %p435, %p436
      %p438 = scmp.ne.s32.totalorder %s430, %s432
      %p439 = scmp.eq.s32.totalorder %s86, 1
      %p440 = por %p438, %p439
      %p441 = scmp.ne.s32.totalorder %s432, %s433
      %p442 = scmp.eq.s32.totalorder %s86, 0
      %p443 = por %p441, %p442
      %p444 = scmp.ne.s32.totalorder %s432, %s433
      %p445 = scmp.eq.s32.totalorder %s87, 1
      %p446 = por %p444, %p445
      %p448 = scmp.ne.s32.totalorder %s433, %s447
      %p449 = scmp.eq.s32.totalorder %s87, 0
      %p450 = por %p448, %p449
      %s452 = sadd.s32 %s451, 1
      %p455 = scmp.eq.s32.totalorder %s81, 1
      %p456 = scmp.ne.s32.totalorder %s451, %s453
      %p457 = scmp.eq.s32.totalorder %s81, 0
      %p458 = por %p456, %p457
      %p459 = scmp.ne.s32.totalorder %s451, %s453
      %p460 = scmp.eq.s32.totalorder %s86, 1
      %p461 = por %p459, %p460
      %p462 = scmp.ne.s32.totalorder %s453, %s454
      %p463 = scmp.eq.s32.totalorder %s86, 0
      %p464 = por %p462, %p463
      %p465 = scmp.ne.s32.totalorder %s453, %s454
      %p466 = scmp.eq.s32.totalorder %s87, 1
      %p467 = por %p465, %p466
      %p469 = scmp.ne.s32.totalorder %s454, %s468
      %p470 = scmp.eq.s32.totalorder %s87, 0
      %p471 = por %p469, %p470
      %s473 = sadd.s32 %s472, 1
      %p476 = scmp.eq.s32.totalorder %s81, 1
      %p477 = scmp.ne.s32.totalorder %s472, %s474
      %p478 = scmp.eq.s32.totalorder %s81, 0
      %p479 = por %p477, %p478
      %p480 = scmp.ne.s32.totalorder %s472, %s474
      %p481 = scmp.eq.s32.totalorder %s86, 1
      %p482 = por %p480, %p481
      %p483 = scmp.ne.s32.totalorder %s474, %s475
      %p484 = scmp.eq.s32.totalorder %s86, 0
      %p485 = por %p483, %p484
      %p486 = scmp.ne.s32.totalorder %s474, %s475
      %p487 = scmp.eq.s32.totalorder %s87, 1
      %p488 = por %p486, %p487
      %p490 = scmp.ne.s32.totalorder %s475, %s489
      %p491 = scmp.eq.s32.totalorder %s87, 0
      %p492 = por %p490, %p491
      %s494 = sadd.s32 %s493, 1
      %p497 = scmp.eq.s32.totalorder %s81, 1
      %p498 = scmp.ne.s32.totalorder %s493, %s495
      %p499 = scmp.eq.s32.totalorder %s81, 0
      %p500 = por %p498, %p499
      %p501 = scmp.ne.s32.totalorder %s493, %s495
      %p502 = scmp.eq.s32.totalorder %s86, 1
      %p503 = por %p501, %p502
      %p504 = scmp.ne.s32.totalorder %s495, %s496
      %p505 = scmp.eq.s32.totalorder %s86, 0
      %p506 = por %p504, %p505
      %p507 = scmp.ne.s32.totalorder %s495, %s496
      %p508 = scmp.eq.s32.totalorder %s87, 1
      %p509 = por %p507, %p508
      %p511 = scmp.ne.s32.totalorder %s496, %s510
      %p512 = scmp.eq.s32.totalorder %s87, 0
      %p513 = por %p511, %p512
      %s515 = sadd.s32 %s514, 1
      %p518 = scmp.eq.s32.totalorder %s81, 1
      %p519 = scmp.ne.s32.totalorder %s514, %s516
      %p520 = scmp.eq.s32.totalorder %s81, 0
      %p521 = por %p519, %p520
      %p522 = scmp.ne.s32.totalorder %s514, %s516
      %p523 = scmp.eq.s32.totalorder %s86, 1
      %p524 = por %p522, %p523
      %p525 = scmp.ne.s32.totalorder %s516, %s517
      %p526 = scmp.eq.s32.totalorder %s86, 0
      %p527 = por %p525, %p526
      %p528 = scmp.ne.s32.totalorder %s516, %s517
      %p529 = scmp.eq.s32.totalorder %s87, 1
      %p530 = por %p528, %p529
      %p532 = scmp.ne.s32.totalorder %s517, %s531
      %p533 = scmp.eq.s32.totalorder %s87, 0
      %p534 = por %p532, %p533
      %s536 = sadd.s32 %s535, 1
      %p539 = scmp.eq.s32.totalorder %s81, 1
      %p540 = scmp.ne.s32.totalorder %s535, %s537
      %p541 = scmp.eq.s32.totalorder %s81, 0
      %p542 = por %p540, %p541
      %p543 = scmp.ne.s32.totalorder %s535, %s537
      %p544 = scmp.eq.s32.totalorder %s86, 1
      %p545 = por %p543, %p544
      %p546 = scmp.ne.s32.totalorder %s537, %s538
      %p547 = scmp.eq.s32.totalorder %s86, 0
      %p548 = por %p546, %p547
      %p549 = scmp.ne.s32.totalorder %s537, %s538
      %p550 = scmp.eq.s32.totalorder %s87, 1
      %p551 = por %p549, %p550
      %p553 = scmp.ne.s32.totalorder %s538, %s552
      %p554 = scmp.eq.s32.totalorder %s87, 0
      %p555 = por %p553, %p554
      %s557 = sadd.s32 %s556, 1
      %p560 = scmp.eq.s32.totalorder %s81, 1
      %p561 = scmp.ne.s32.totalorder %s556, %s558
      %p562 = scmp.eq.s32.totalorder %s81, 0
      %p563 = por %p561, %p562
      %p564 = scmp.ne.s32.totalorder %s556, %s558
      %p565 = scmp.eq.s32.totalorder %s86, 1
      %p566 = por %p564, %p565
      %p567 = scmp.ne.s32.totalorder %s558, %s559
      %p568 = scmp.eq.s32.totalorder %s86, 0
      %p569 = por %p567, %p568
      %p570 = scmp.ne.s32.totalorder %s558, %s559
      %p571 = scmp.eq.s32.totalorder %s87, 1
      %p572 = por %p570, %p571
      %p574 = scmp.ne.s32.totalorder %s559, %s573
      %p575 = scmp.eq.s32.totalorder %s87, 0
      %p576 = por %p574, %p575
      %s578 = sadd.s32 %s577, 1
      %p581 = scmp.eq.s32.totalorder %s81, 1
      %p582 = scmp.ne.s32.totalorder %s577, %s579
      %p583 = scmp.eq.s32.totalorder %s81, 0
      %p584 = por %p582, %p583
      %p585 = scmp.ne.s32.totalorder %s577, %s579
      %p586 = scmp.eq.s32.totalorder %s86, 1
      %p587 = por %p585, %p586
      %p588 = scmp.ne.s32.totalorder %s579, %s580
      %p589 = scmp.eq.s32.totalorder %s86, 0
      %p590 = por %p588, %p589
      %p591 = scmp.ne.s32.totalorder %s579, %s580
      %p592 = scmp.eq.s32.totalorder %s87, 1
      %p593 = por %p591, %p592
      %p595 = scmp.ne.s32.totalorder %s580, %s594
      %p596 = scmp.eq.s32.totalorder %s87, 0
      %p597 = por %p595, %p596
      %s599 = sadd.s32 %s598, 1
      %p602 = scmp.eq.s32.totalorder %s81, 1
      %p603 = scmp.ne.s32.totalorder %s598, %s600
      %p604 = scmp.eq.s32.totalorder %s81, 0
      %p605 = por %p603, %p604
      %p606 = scmp.ne.s32.totalorder %s598, %s600
      %p607 = scmp.eq.s32.totalorder %s86, 1
      %p608 = por %p606, %p607
      %p609 = scmp.ne.s32.totalorder %s600, %s601
      %p610 = scmp.eq.s32.totalorder %s86, 0
      %p611 = por %p609, %p610
      %p612 = scmp.ne.s32.totalorder %s600, %s601
      %p613 = scmp.eq.s32.totalorder %s87, 1
      %p614 = por %p612, %p613
      %p616 = scmp.ne.s32.totalorder %s601, %s615
      %p617 = scmp.eq.s32.totalorder %s87, 0
      %p618 = por %p616, %p617
      %s620 = sadd.s32 %s619, 1
      %p623 = scmp.eq.s32.totalorder %s81, 1
      %p624 = scmp.ne.s32.totalorder %s619, %s621
      %p625 = scmp.eq.s32.totalorder %s81, 0
      %p626 = por %p624, %p625
      %p627 = scmp.ne.s32.totalorder %s619, %s621
      %p628 = scmp.eq.s32.totalorder %s86, 1
      %p629 = por %p627, %p628
      %p630 = scmp.ne.s32.totalorder %s621, %s622
      %p631 = scmp.eq.s32.totalorder %s86, 0
      %p632 = por %p630, %p631
      %p633 = scmp.ne.s32.totalorder %s621, %s622
      %p634 = scmp.eq.s32.totalorder %s87, 1
      %p635 = por %p633, %p634
      %p637 = scmp.ne.s32.totalorder %s622, %s636
      %p638 = scmp.eq.s32.totalorder %s87, 0
      %p639 = por %p637, %p638
      %s641 = sadd.s32 %s640, 1
      %p644 = scmp.eq.s32.totalorder %s81, 1
      %p645 = scmp.ne.s32.totalorder %s640, %s642
      %p646 = scmp.eq.s32.totalorder %s81, 0
      %p647 = por %p645, %p646
      %p648 = scmp.ne.s32.totalorder %s640, %s642
      %p649 = scmp.eq.s32.totalorder %s86, 1
      %p650 = por %p648, %p649
      %p651 = scmp.ne.s32.totalorder %s642, %s643
      %p652 = scmp.eq.s32.totalorder %s86, 0
      %p653 = por %p651, %p652
      %p654 = scmp.ne.s32.totalorder %s642, %s643
      %p655 = scmp.eq.s32.totalorder %s87, 1
      %p656 = por %p654, %p655
      %p658 = scmp.ne.s32.totalorder %s643, %s657
      %p659 = scmp.eq.s32.totalorder %s87, 0
      %p660 = por %p658, %p659
      %s662 = sadd.s32 %s661, 1
      %p665 = scmp.eq.s32.totalorder %s81, 1
      %p666 = scmp.ne.s32.totalorder %s661, %s663
      %p667 = scmp.eq.s32.totalorder %s81, 0
      %p668 = por %p666, %p667
      %p669 = scmp.ne.s32.totalorder %s661, %s663
      %p670 = scmp.eq.s32.totalorder %s86, 1
      %p671 = por %p669, %p670
      %p672 = scmp.ne.s32.totalorder %s663, %s664
      %p673 = scmp.eq.s32.totalorder %s86, 0
      %p674 = por %p672, %p673
      %p675 = scmp.ne.s32.totalorder %s663, %s664
      %p676 = scmp.eq.s32.totalorder %s87, 1
      %p677 = por %p675, %p676
      %p679 = scmp.ne.s32.totalorder %s664, %s678
      %p680 = scmp.eq.s32.totalorder %s87, 0
      %p681 = por %p679, %p680
      %s683 = sadd.s32 %s682, 1
      %p686 = scmp.eq.s32.totalorder %s81, 1
      %p687 = scmp.ne.s32.totalorder %s682, %s684
      %p688 = scmp.eq.s32.totalorder %s81, 0
      %p689 = por %p687, %p688
      %p690 = scmp.ne.s32.totalorder %s682, %s684
      %p691 = scmp.eq.s32.totalorder %s86, 1
      %p692 = por %p690, %p691
      %p693 = scmp.ne.s32.totalorder %s684, %s685
      %p694 = scmp.eq.s32.totalorder %s86, 0
      %p695 = por %p693, %p694
      %p696 = scmp.ne.s32.totalorder %s684, %s685
      %p697 = scmp.eq.s32.totalorder %s87, 1
      %p698 = por %p696, %p697
      %p700 = scmp.ne.s32.totalorder %s685, %s699
      %p701 = scmp.eq.s32.totalorder %s87, 0
      %p702 = por %p700, %p701
      %s704 = sadd.s32 %s703, 1
      %p707 = scmp.eq.s32.totalorder %s81, 1
      %p708 = scmp.ne.s32.totalorder %s703, %s705
      %p709 = scmp.eq.s32.totalorder %s81, 0
      %p710 = por %p708, %p709
      %p711 = scmp.ne.s32.totalorder %s703, %s705
      %p712 = scmp.eq.s32.totalorder %s86, 1
      %p713 = por %p711, %p712
      %p714 = scmp.ne.s32.totalorder %s705, %s706
      %p715 = scmp.eq.s32.totalorder %s86, 0
      %p716 = por %p714, %p715
      %p717 = scmp.ne.s32.totalorder %s705, %s706
      %p718 = scmp.eq.s32.totalorder %s87, 1
      %p719 = por %p717, %p718
      %p721 = scmp.ne.s32.totalorder %s706, %s720
      %p722 = scmp.eq.s32.totalorder %s87, 0
      %p723 = por %p721, %p722
      %s725 = sadd.s32 %s724, 1
      %p728 = scmp.eq.s32.totalorder %s81, 1
      %p729 = scmp.ne.s32.totalorder %s724, %s726
      %p730 = scmp.eq.s32.totalorder %s81, 0
      %p731 = por %p729, %p730
      %p732 = scmp.ne.s32.totalorder %s724, %s726
      %p733 = scmp.eq.s32.totalorder %s86, 1
      %p734 = por %p732, %p733
      %p735 = scmp.ne.s32.totalorder %s726, %s727
      %p736 = scmp.eq.s32.totalorder %s86, 0
      %p737 = por %p735, %p736
      %p738 = scmp.ne.s32.totalorder %s726, %s727
      %p739 = scmp.eq.s32.totalorder %s87, 1
      %p740 = por %p738, %p739
      %p742 = scmp.ne.s32.totalorder %s727, %s741
      %p743 = scmp.eq.s32.totalorder %s87, 0
      %p744 = por %p742, %p743
      %s745 = ssub.s32 %s81, %s88
      %p746 = scmp.eq.s32.totalorder %s745, 0
      %s748 = sadd.s32 %s747, 1
      %s749 = scalar_select %p746, %s747, %s748
      %p752 = pneg %p746
      %p753 = scmp.eq.s32.totalorder %s81, 1
      %p754 = por %p752, %p753
      %p755 = scmp.ne.s32.totalorder %s747, %s750
      %p756 = scmp.eq.s32.totalorder %s81, 0
      %p757 = por %p755, %p756
      %p758 = scmp.ne.s32.totalorder %s747, %s750
      %p759 = scmp.eq.s32.totalorder %s86, 1
      %p760 = por %p758, %p759
      %p761 = scmp.ne.s32.totalorder %s750, %s751
      %p762 = scmp.eq.s32.totalorder %s86, 0
      %p763 = por %p761, %p762
      %p764 = scmp.ne.s32.totalorder %s750, %s751
      %p765 = scmp.eq.s32.totalorder %s87, 1
      %p766 = por %p764, %p765
      %p768 = scmp.ne.s32.totalorder %s751, %s767
      %p769 = scmp.eq.s32.totalorder %s87, 0
      %p770 = por %p768, %p769
      %p771 = scmp.le.s32.totalorder 1, %s81
      %p772 = scmp.lt.s32.totalorder %s81, 3
      %p773 = pnand %p771, %p772
      %p774 = pneg %p773
      // Predicated region
      $region9: #{_lambda_.1} parent=5 // pred_check
        _
      $region10: #{_lambda_.1} parent=5 // pred_check_branch
        %776 = sbr.rel (%p773) target = $region12
      $region11: #{_lambda_.1} parent=5 // pred_region
        %s777 = ssub.s32 %s81, 1
        // Predicated region
        $region13: #{_lambda_.1} parent=11 // pred_check
          %p778 = pneg %p128
        $region14: #{_lambda_.1} parent=11 // pred_check_branch
          %780 = sbr.rel (%p778) target = $region16
        $region15: #{_lambda_.1} parent=11 // pred_region
          _
        $region16: #{_lambda_.1} parent=11 // pred_fallthru
          _
        // Predicated region
        $region17: #{_lambda_.1} parent=11 // pred_check
          %p781 = pneg %p149
        $region18: #{_lambda_.1} parent=11 // pred_check_branch
          %783 = sbr.rel (%p781) target = $region20
        $region19: #{_lambda_.1} parent=11 // pred_region
          _
        $region20: #{_lambda_.1} parent=11 // pred_fallthru
          _
        // Predicated region
        $region21: #{_lambda_.1} parent=11 // pred_check
          %p784 = pneg %p170
        $region22: #{_lambda_.1} parent=11 // pred_check_branch
          %786 = sbr.rel (%p784) target = $region24
        $region23: #{_lambda_.1} parent=11 // pred_region
          _
        $region24: #{_lambda_.1} parent=11 // pred_fallthru
          _
        // Predicated region
        $region25: #{_lambda_.1} parent=11 // pred_check
          %p787 = pneg %p191
        $region26: #{_lambda_.1} parent=11 // pred_check_branch
          %789 = sbr.rel (%p787) target = $region28
        $region27: #{_lambda_.1} parent=11 // pred_region
          _
        $region28: #{_lambda_.1} parent=11 // pred_fallthru
          _
        // Predicated region
        $region29: #{_lambda_.1} parent=11 // pred_check
          %p790 = pneg %p212
        $region30: #{_lambda_.1} parent=11 // pred_check_branch
          %792 = sbr.rel (%p790) target = $region32
        $region31: #{_lambda_.1} parent=11 // pred_region
          _
        $region32: #{_lambda_.1} parent=11 // pred_fallthru
          _
        // Predicated region
        $region33: #{_lambda_.1} parent=11 // pred_check
          %p793 = pneg %p233
        $region34: #{_lambda_.1} parent=11 // pred_check_branch
          %795 = sbr.rel (%p793) target = $region36
        $region35: #{_lambda_.1} parent=11 // pred_region
          _
        $region36: #{_lambda_.1} parent=11 // pred_fallthru
          _
        // Predicated region
        $region37: #{_lambda_.1} parent=11 // pred_check
          %p796 = pneg %p254
        $region38: #{_lambda_.1} parent=11 // pred_check_branch
          %798 = sbr.rel (%p796) target = $region40
        $region39: #{_lambda_.1} parent=11 // pred_region
          %s800 = ssub.s32 512, 512
          %801 = vsyncadd [#allocation3], %s800
          %s802 = sshll.u32 [#allocation2], 4
          %s803 = int_to_ptr.vmem [resolvable:$true] %s802
          %808 = dma.hbm_to_vmem [thread:$0]  %s15, 512, %s803, [#allocation3], 64, 64, 4
        $region40: #{_lambda_.1} parent=11 // pred_fallthru
          _
        // Predicated region
        $region41: #{_lambda_.1} parent=11 // pred_check
          %p809 = pneg %p275
        $region42: #{_lambda_.1} parent=11 // pred_check_branch
          %811 = sbr.rel (%p809) target = $region44
        $region43: #{_lambda_.1} parent=11 // pred_region
          _
        $region44: #{_lambda_.1} parent=11 // pred_fallthru
          _
        // Predicated region
        $region45: #{_lambda_.1} parent=11 // pred_check
          %p812 = pneg %p296
        $region46: #{_lambda_.1} parent=11 // pred_check_branch
          %814 = sbr.rel (%p812) target = $region48
        $region47: #{_lambda_.1} parent=11 // pred_region
          _
        $region48: #{_lambda_.1} parent=11 // pred_fallthru
          _
        // Predicated region
        $region49: #{_lambda_.1} parent=11 // pred_check
          %p815 = pneg %p317
        $region50: #{_lambda_.1} parent=11 // pred_check_branch
          %817 = sbr.rel (%p815) target = $region52
        $region51: #{_lambda_.1} parent=11 // pred_region
          _
        $region52: #{_lambda_.1} parent=11 // pred_fallthru
          _
        // Predicated region
        $region53: #{_lambda_.1} parent=11 // pred_check
          %p818 = pneg %p338
        $region54: #{_lambda_.1} parent=11 // pred_check_branch
          %820 = sbr.rel (%p818) target = $region56
        $region55: #{_lambda_.1} parent=11 // pred_region
          %s822 = ssub.s32 256, 256
          %823 = vsyncadd [#allocation6], %s822
          %s824 = sshll.u32 [#allocation5], 4
          %s825 = int_to_ptr.vmem [resolvable:$true] %s824
          %830 = dma.hbm_to_vmem [thread:$0]  %s23, 256, %s825, [#allocation6], 64, 64, 4
        $region56: #{_lambda_.1} parent=11 // pred_fallthru
          _
        // Predicated region
        $region57: #{_lambda_.1} parent=11 // pred_check
          %p831 = pneg %p359
        $region58: #{_lambda_.1} parent=11 // pred_check_branch
          %833 = sbr.rel (%p831) target = $region60
        $region59: #{_lambda_.1} parent=11 // pred_region
          %s835 = ssub.s32 256, 256
          %836 = vsyncadd [#allocation6], %s835
          %s837 = sshll.u32 [#allocation7], 4
          %s838 = int_to_ptr.vmem [resolvable:$true] %s837
          %843 = dma.hbm_to_vmem [thread:$0]  %s25, 256, %s838, [#allocation6], 64, 64, 4
        $region60: #{_lambda_.1} parent=11 // pred_fallthru
          _
        // Predicated region
        $region61: #{_lambda_.1} parent=11 // pred_check
          %p844 = pneg %p380
        $region62: #{_lambda_.1} parent=11 // pred_check_branch
          %846 = sbr.rel (%p844) target = $region64
        $region63: #{_lambda_.1} parent=11 // pred_region
          %s848 = ssub.s32 256, 256
          %849 = vsyncadd [#allocation9], %s848
          %s850 = sshll.u32 [#allocation8], 4
          %s851 = int_to_ptr.vmem [resolvable:$true] %s850
          %856 = dma.hbm_to_vmem [thread:$0]  %s27, 256, %s851, [#allocation9], 64, 64, 4
        $region64: #{_lambda_.1} parent=11 // pred_fallthru
          _
        // Predicated region
        $region65: #{_lambda_.1} parent=11 // pred_check
          %p857 = pneg %p401
        $region66: #{_lambda_.1} parent=11 // pred_check_branch
          %859 = sbr.rel (%p857) target = $region68
        $region67: #{_lambda_.1} parent=11 // pred_region
          %s861 = ssub.s32 256, 256
          %862 = vsyncadd [#allocation9], %s861
          %s863 = sshll.u32 [#allocation10], 4
          %s864 = int_to_ptr.vmem [resolvable:$true] %s863
          %869 = dma.hbm_to_vmem [thread:$0]  %s29, 256, %s864, [#allocation9], 64, 64, 4
        $region68: #{_lambda_.1} parent=11 // pred_fallthru
          _
        // Predicated region
        $region69: #{_lambda_.1} parent=11 // pred_check
          %p870 = pneg %p422
        $region70: #{_lambda_.1} parent=11 // pred_check_branch
          %872 = sbr.rel (%p870) target = $region72
        $region71: #{_lambda_.1} parent=11 // pred_region
          _
        $region72: #{_lambda_.1} parent=11 // pred_fallthru
          _
        // Predicated region
        $region73: #{_lambda_.1} parent=11 // pred_check
          %p873 = pneg %p443
        $region74: #{_lambda_.1} parent=11 // pred_check_branch
          %875 = sbr.rel (%p873) target = $region76
        $region75: #{_lambda_.1} parent=11 // pred_region
          _
        $region76: #{_lambda_.1} parent=11 // pred_fallthru
          _
        // Predicated region
        $region77: #{_lambda_.1} parent=11 // pred_check
          %p876 = pneg %p464
        $region78: #{_lambda_.1} parent=11 // pred_check_branch
          %878 = sbr.rel (%p876) target = $region80
        $region79: #{_lambda_.1} parent=11 // pred_region
          %s880 = ssub.s32 128, 128
          %881 = vsyncadd [#allocation12], %s880
          %s882 = sshll.u32 [#allocation11], 4
          %s883 = int_to_ptr.vmem [resolvable:$true] %s882
          %888 = dma.hbm_to_vmem [thread:$0]  %s35, 128, %s883, [#allocation12], 64, 64, 4
        $region80: #{_lambda_.1} parent=11 // pred_fallthru
          _
        // Predicated region
        $region81: #{_lambda_.1} parent=11 // pred_check
          %p889 = pneg %p485
        $region82: #{_lambda_.1} parent=11 // pred_check_branch
          %891 = sbr.rel (%p889) target = $region84
        $region83: #{_lambda_.1} parent=11 // pred_region
          %s893 = ssub.s32 128, 128
          %894 = vsyncadd [#allocation12], %s893
          %s895 = sshll.u32 [#allocation13], 4
          %s896 = int_to_ptr.vmem [resolvable:$true] %s895
          %901 = dma.hbm_to_vmem [thread:$0]  %s37, 128, %s896, [#allocation12], 64, 64, 4
        $region84: #{_lambda_.1} parent=11 // pred_fallthru
          _
        // Predicated region
        $region85: #{_lambda_.1} parent=11 // pred_check
          %p902 = pneg %p506
        $region86: #{_lambda_.1} parent=11 // pred_check_branch
          %904 = sbr.rel (%p902) target = $region88
        $region87: #{_lambda_.1} parent=11 // pred_region
          %s906 = ssub.s32 128, 128
          %907 = vsyncadd [#allocation15], %s906
          %s908 = sshll.u32 [#allocation14], 4
          %s909 = int_to_ptr.vmem [resolvable:$true] %s908
          %914 = dma.hbm_to_vmem [thread:$0]  %s39, 128, %s909, [#allocation15], 64, 64, 4
        $region88: #{_lambda_.1} parent=11 // pred_fallthru
          _
        // Predicated region
        $region89: #{_lambda_.1} parent=11 // pred_check
          %p915 = pneg %p527
        $region90: #{_lambda_.1} parent=11 // pred_check_branch
          %917 = sbr.rel (%p915) target = $region92
        $region91: #{_lambda_.1} parent=11 // pred_region
          %s919 = ssub.s32 128, 128
          %920 = vsyncadd [#allocation15], %s919
          %s921 = sshll.u32 [#allocation16], 4
          %s922 = int_to_ptr.vmem [resolvable:$true] %s921
          %927 = dma.hbm_to_vmem [thread:$0]  %s41, 128, %s922, [#allocation15], 64, 64, 4
        $region92: #{_lambda_.1} parent=11 // pred_fallthru
          _
        // Predicated region
        $region93: #{_lambda_.1} parent=11 // pred_check
          %p928 = pneg %p548
        $region94: #{_lambda_.1} parent=11 // pred_check_branch
          %930 = sbr.rel (%p928) target = $region96
        $region95: #{_lambda_.1} parent=11 // pred_region
          %s932 = ssub.s32 128, 128
          %933 = vsyncadd [#allocation18], %s932
          %s934 = sshll.u32 [#allocation17], 4
          %s935 = int_to_ptr.vmem [resolvable:$true] %s934
          %940 = dma.hbm_to_vmem [thread:$0]  %s43, 128, %s935, [#allocation18], 64, 64, 4
        $region96: #{_lambda_.1} parent=11 // pred_fallthru
          _
        // Predicated region
        $region97: #{_lambda_.1} parent=11 // pred_check
          %p941 = pneg %p569
        $region98: #{_lambda_.1} parent=11 // pred_check_branch
          %943 = sbr.rel (%p941) target = $region100
        $region99: #{_lambda_.1} parent=11 // pred_region
          %s945 = ssub.s32 3072, 3072
          %946 = vsyncadd [#allocation18], %s945
          %s947 = sshll.u32 [#allocation19], 4
          %s948 = int_to_ptr.vmem [resolvable:$true] %s947
          %953 = dma.hbm_to_vmem [thread:$0]  %s45, 3072, %s948, [#allocation18], 64, 64, 4
        $region100: #{_lambda_.1} parent=11 // pred_fallthru
          _
        // Predicated region
        $region101: #{_lambda_.1} parent=11 // pred_check
          %p954 = pneg %p590
        $region102: #{_lambda_.1} parent=11 // pred_check_branch
          %956 = sbr.rel (%p954) target = $region104
        $region103: #{_lambda_.1} parent=11 // pred_region
          _
        $region104: #{_lambda_.1} parent=11 // pred_fallthru
          _
        // Predicated region
        $region105: #{_lambda_.1} parent=11 // pred_check
          %p957 = pneg %p611
        $region106: #{_lambda_.1} parent=11 // pred_check_branch
          %959 = sbr.rel (%p957) target = $region108
        $region107: #{_lambda_.1} parent=11 // pred_region
          %s961 = ssub.s32 64, 64
          %962 = vsyncadd [#allocation21], %s961
          %s964 = sshll.u32 [#allocation20], 4
          %s965 = int_to_ptr.vmem [resolvable:$true] %s964
          %967 = dma.hbm_to_vmem [thread:$0]  %s49, 64, %s965, [#allocation21]
        $region108: #{_lambda_.1} parent=11 // pred_fallthru
          _
        // Predicated region
        $region109: #{_lambda_.1} parent=11 // pred_check
          %p968 = pneg %p632
        $region110: #{_lambda_.1} parent=11 // pred_check_branch
          %970 = sbr.rel (%p968) target = $region112
        $region111: #{_lambda_.1} parent=11 // pred_region
          %s972 = ssub.s32 64, 64
          %973 = vsyncadd [#allocation21], %s972
          %s975 = sshll.u32 [#allocation22], 4
          %s976 = int_to_ptr.vmem [resolvable:$true] %s975
          %978 = dma.hbm_to_vmem [thread:$0]  %s51, 64, %s976, [#allocation21]
        $region112: #{_lambda_.1} parent=11 // pred_fallthru
          _
        // Predicated region
        $region113: #{_lambda_.1} parent=11 // pred_check
          %p979 = pneg %p653
        $region114: #{_lambda_.1} parent=11 // pred_check_branch
          %981 = sbr.rel (%p979) target = $region116
        $region115: #{_lambda_.1} parent=11 // pred_region
          %s983 = ssub.s32 32, 32
          %984 = vsyncadd [#allocation24], %s983
          %s986 = sshll.u32 [#allocation23], 4
          %s987 = int_to_ptr.vmem [resolvable:$true] %s986
          %989 = dma.hbm_to_vmem [thread:$0]  %s53, 32, %s987, [#allocation24]
        $region116: #{_lambda_.1} parent=11 // pred_fallthru
          _
        // Predicated region
        $region117: #{_lambda_.1} parent=11 // pred_check
          %p990 = pneg %p674
        $region118: #{_lambda_.1} parent=11 // pred_check_branch
          %992 = sbr.rel (%p990) target = $region120
        $region119: #{_lambda_.1} parent=11 // pred_region
          %s994 = ssub.s32 32, 32
          %995 = vsyncadd [#allocation24], %s994
          %s997 = sshll.u32 [#allocation25], 4
          %s998 = int_to_ptr.vmem [resolvable:$true] %s997
          %1000 = dma.hbm_to_vmem [thread:$0]  %s55, 32, %s998, [#allocation24]
        $region120: #{_lambda_.1} parent=11 // pred_fallthru
          _
        // Predicated region
        $region121: #{_lambda_.1} parent=11 // pred_check
          %p1001 = pneg %p695
        $region122: #{_lambda_.1} parent=11 // pred_check_branch
          %1003 = sbr.rel (%p1001) target = $region124
        $region123: #{_lambda_.1} parent=11 // pred_region
          %s1005 = ssub.s32 32, 32
          %1006 = vsyncadd [#allocation27], %s1005
          %s1008 = sshll.u32 [#allocation26], 4
          %s1009 = int_to_ptr.vmem [resolvable:$true] %s1008
          %1011 = dma.hbm_to_vmem [thread:$0]  %s57, 32, %s1009, [#allocation27]
        $region124: #{_lambda_.1} parent=11 // pred_fallthru
          _
        // Predicated region
        $region125: #{_lambda_.1} parent=11 // pred_check
          %p1012 = pneg %p716
        $region126: #{_lambda_.1} parent=11 // pred_check_branch
          %1014 = sbr.rel (%p1012) target = $region128
        $region127: #{_lambda_.1} parent=11 // pred_region
          %s1016 = ssub.s32 3072, 3072
          %1017 = vsyncadd [#allocation27], %s1016
          %s1018 = sshll.u32 [#allocation28], 4
          %s1019 = int_to_ptr.vmem [resolvable:$true] %s1018
          %1024 = dma.hbm_to_vmem [thread:$0]  %s59, 3072, %s1019, [#allocation27], 64, 64, 4
        $region128: #{_lambda_.1} parent=11 // pred_fallthru
          _
        // Predicated region
        $region129: #{_lambda_.1} parent=11 // pred_check
          %p1025 = pneg %p737
        $region130: #{_lambda_.1} parent=11 // pred_check_branch
          %1027 = sbr.rel (%p1025) target = $region132
        $region131: #{_lambda_.1} parent=11 // pred_region
          _
        $region132: #{_lambda_.1} parent=11 // pred_fallthru
          _
      $region12: #{_lambda_.1} parent=5 // pred_fallthru
        _
      %p1028 = scmp.lt.s32.totalorder %s81, 2
      // Predicated region
      $region133: #{_lambda_.1} parent=5 // pred_check
        %p1029 = pneg %p1028
      $region134: #{_lambda_.1} parent=5 // pred_check_branch
        %1031 = sbr.rel (%p1029) target = $region136
      $region135: #{_lambda_.1} parent=5 // pred_region
        // Predicated region
        $region137: #{_lambda_.1} parent=135 // pred_check
          %p1032 = pneg %p101
        $region138: #{_lambda_.1} parent=135 // pred_check_branch
          %1034 = sbr.rel (%p1032) target = $region140
        $region139: #{_lambda_.1} parent=135 // pred_region
          %p1035 = scmp.lt.s32.totalorder %s81, 1
          %s1036 = scalar_select %p1035, %s81, 1
          %s1037 = smul.addr %s1036, 16
          %s1038 = smul.addr %s1037, 4
          %s1039 = scalar_lea.vmem %s1, %s1038
        $region140: #{_lambda_.1} parent=135 // pred_fallthru
          _
      $region136: #{_lambda_.1} parent=5 // pred_fallthru
        _
      %p1040 = scmp.le.s32.totalorder 1, %s81
      %p1041 = scmp.lt.s32.totalorder %s81, 3
      %p1042 = pnand %p1040, %p1041
      %p1043 = pneg %p1042
      // Predicated region
      $region141: #{_lambda_.1} parent=5 // pred_check
        _
      $region142: #{_lambda_.1} parent=5 // pred_check_branch
        %1045 = sbr.rel (%p1042) target = $region144
      $region143: #{_lambda_.1} parent=5 // pred_region
        %s1046 = ssub.s32 %s81, 1
        // Predicated region
        $region145: #{_lambda_.1} parent=143 // pred_check
          %p1047 = pneg %p254
        $region146: #{_lambda_.1} parent=143 // pred_check_branch
          %1049 = sbr.rel (%p1047) target = $region148
        $region147: #{_lambda_.1} parent=143 // pred_region
          %1050 = dma.done [#allocation3], 512
        $region148: #{_lambda_.1} parent=143 // pred_fallthru
          _
        // Predicated region
        $region149: #{_lambda_.1} parent=143 // pred_check
          %p1051 = pneg %p338
        $region150: #{_lambda_.1} parent=143 // pred_check_branch
          %1053 = sbr.rel (%p1051) target = $region152
        $region151: #{_lambda_.1} parent=143 // pred_region
          %1054 = dma.done [#allocation6], 256
        $region152: #{_lambda_.1} parent=143 // pred_fallthru
          _
        // Predicated region
        $region153: #{_lambda_.1} parent=143 // pred_check
          %p1055 = pneg %p359
        $region154: #{_lambda_.1} parent=143 // pred_check_branch
          %1057 = sbr.rel (%p1055) target = $region156
        $region155: #{_lambda_.1} parent=143 // pred_region
          %1058 = dma.done [#allocation6], 256
        $region156: #{_lambda_.1} parent=143 // pred_fallthru
          _
        // Predicated region
        $region157: #{_lambda_.1} parent=143 // pred_check
          %p1059 = pneg %p380
        $region158: #{_lambda_.1} parent=143 // pred_check_branch
          %1061 = sbr.rel (%p1059) target = $region160
        $region159: #{_lambda_.1} parent=143 // pred_region
          %1062 = dma.done [#allocation9], 256
        $region160: #{_lambda_.1} parent=143 // pred_fallthru
          _
        // Predicated region
        $region161: #{_lambda_.1} parent=143 // pred_check
          %p1063 = pneg %p401
        $region162: #{_lambda_.1} parent=143 // pred_check_branch
          %1065 = sbr.rel (%p1063) target = $region164
        $region163: #{_lambda_.1} parent=143 // pred_region
          %1066 = dma.done [#allocation9], 256
        $region164: #{_lambda_.1} parent=143 // pred_fallthru
          _
        // Predicated region
        $region165: #{_lambda_.1} parent=143 // pred_check
          %p1067 = pneg %p464
        $region166: #{_lambda_.1} parent=143 // pred_check_branch
          %1069 = sbr.rel (%p1067) target = $region168
        $region167: #{_lambda_.1} parent=143 // pred_region
          %1070 = dma.done [#allocation12], 128
        $region168: #{_lambda_.1} parent=143 // pred_fallthru
          _
        // Predicated region
        $region169: #{_lambda_.1} parent=143 // pred_check
          %p1071 = pneg %p485
        $region170: #{_lambda_.1} parent=143 // pred_check_branch
          %1073 = sbr.rel (%p1071) target = $region172
        $region171: #{_lambda_.1} parent=143 // pred_region
          %1074 = dma.done [#allocation12], 128
        $region172: #{_lambda_.1} parent=143 // pred_fallthru
          _
        // Predicated region
        $region173: #{_lambda_.1} parent=143 // pred_check
          %p1075 = pneg %p506
        $region174: #{_lambda_.1} parent=143 // pred_check_branch
          %1077 = sbr.rel (%p1075) target = $region176
        $region175: #{_lambda_.1} parent=143 // pred_region
          %1078 = dma.done [#allocation15], 128
        $region176: #{_lambda_.1} parent=143 // pred_fallthru
          _
        // Predicated region
        $region177: #{_lambda_.1} parent=143 // pred_check
          %p1079 = pneg %p527
        $region178: #{_lambda_.1} parent=143 // pred_check_branch
          %1081 = sbr.rel (%p1079) target = $region180
        $region179: #{_lambda_.1} parent=143 // pred_region
          %1082 = dma.done [#allocation15], 128
        $region180: #{_lambda_.1} parent=143 // pred_fallthru
          _
        // Predicated region
        $region181: #{_lambda_.1} parent=143 // pred_check
          %p1083 = pneg %p548
        $region182: #{_lambda_.1} parent=143 // pred_check_branch
          %1085 = sbr.rel (%p1083) target = $region184
        $region183: #{_lambda_.1} parent=143 // pred_region
          %1086 = dma.done [#allocation18], 128
        $region184: #{_lambda_.1} parent=143 // pred_fallthru
          _
        // Predicated region
        $region185: #{_lambda_.1} parent=143 // pred_check
          %p1087 = pneg %p569
        $region186: #{_lambda_.1} parent=143 // pred_check_branch
          %1089 = sbr.rel (%p1087) target = $region188
        $region187: #{_lambda_.1} parent=143 // pred_region
          %1090 = dma.done [#allocation18], 3072
        $region188: #{_lambda_.1} parent=143 // pred_fallthru
          _
        // Predicated region
        $region189: #{_lambda_.1} parent=143 // pred_check
          %p1091 = pneg %p611
        $region190: #{_lambda_.1} parent=143 // pred_check_branch
          %1093 = sbr.rel (%p1091) target = $region192
        $region191: #{_lambda_.1} parent=143 // pred_region
          %1094 = dma.done [#allocation21], 64
        $region192: #{_lambda_.1} parent=143 // pred_fallthru
          _
        // Predicated region
        $region193: #{_lambda_.1} parent=143 // pred_check
          %p1095 = pneg %p632
        $region194: #{_lambda_.1} parent=143 // pred_check_branch
          %1097 = sbr.rel (%p1095) target = $region196
        $region195: #{_lambda_.1} parent=143 // pred_region
          %1098 = dma.done [#allocation21], 64
        $region196: #{_lambda_.1} parent=143 // pred_fallthru
          _
        // Predicated region
        $region197: #{_lambda_.1} parent=143 // pred_check
          %p1099 = pneg %p653
        $region198: #{_lambda_.1} parent=143 // pred_check_branch
          %1101 = sbr.rel (%p1099) target = $region200
        $region199: #{_lambda_.1} parent=143 // pred_region
          %1102 = dma.done [#allocation24], 32
        $region200: #{_lambda_.1} parent=143 // pred_fallthru
          _
        // Predicated region
        $region201: #{_lambda_.1} parent=143 // pred_check
          %p1103 = pneg %p674
        $region202: #{_lambda_.1} parent=143 // pred_check_branch
          %1105 = sbr.rel (%p1103) target = $region204
        $region203: #{_lambda_.1} parent=143 // pred_region
          %1106 = dma.done [#allocation24], 32
        $region204: #{_lambda_.1} parent=143 // pred_fallthru
          _
        // Predicated region
        $region205: #{_lambda_.1} parent=143 // pred_check
          %p1107 = pneg %p695
        $region206: #{_lambda_.1} parent=143 // pred_check_branch
          %1109 = sbr.rel (%p1107) target = $region208
        $region207: #{_lambda_.1} parent=143 // pred_region
          %1110 = dma.done [#allocation27], 32
        $region208: #{_lambda_.1} parent=143 // pred_fallthru
          _
        // Predicated region
        $region209: #{_lambda_.1} parent=143 // pred_check
          %p1111 = pneg %p716
        $region210: #{_lambda_.1} parent=143 // pred_check_branch
          %1113 = sbr.rel (%p1111) target = $region212
        $region211: #{_lambda_.1} parent=143 // pred_region
          %1114 = dma.done [#allocation27], 3072
        $region212: #{_lambda_.1} parent=143 // pred_fallthru
          _
        %p1115 = scmp.lt.s32.totalorder %s86, 1
        %s1116 = scalar_select %p1115, %s86, 1
        %s1117 = smul.addr %s1116, 16
        %s1118 = smul.addr %s1117, 4
        %s1119 = scalar_lea.vmem %s1, %s1118
        %p1120 = pneg %p107
        %p1121 = pneg %p104
        %p1122 = pneg %p128
        %p1123 = pneg %p125
        %p1124 = pneg %p149
        %p1125 = pneg %p146
        %p1126 = pneg %p170
        %p1127 = pneg %p167
        %p1128 = pneg %p191
        %p1129 = pneg %p188
        %p1130 = pneg %p212
        %p1131 = pneg %p209
        %p1132 = pneg %p233
        %p1133 = pneg %p230
        %p1134 = pneg %p254
        %p1135 = pneg %p251
        %p1136 = pneg %p275
        %p1137 = pneg %p272
        %p1138 = pneg %p296
        %p1139 = pneg %p293
        %p1140 = pneg %p317
        %p1141 = pneg %p314
        %p1142 = pneg %p338
        %p1143 = pneg %p335
        %p1144 = pneg %p359
        %p1145 = pneg %p356
        %p1146 = pneg %p380
        %p1147 = pneg %p377
        %p1148 = pneg %p401
        %p1149 = pneg %p398
        %p1150 = pneg %p422
        %p1151 = pneg %p419
        %p1152 = pneg %p443
        %p1153 = pneg %p440
        %p1154 = pneg %p464
        %p1155 = pneg %p461
        %p1156 = pneg %p485
        %p1157 = pneg %p482
        %p1158 = pneg %p506
        %p1159 = pneg %p503
        %p1160 = pneg %p527
        %p1161 = pneg %p524
        %p1162 = pneg %p548
        %p1163 = pneg %p545
        %p1164 = pneg %p569
        %p1165 = pneg %p566
        %p1166 = pneg %p590
        %p1167 = pneg %p587
        %p1168 = pneg %p611
        %p1169 = pneg %p608
        %p1170 = pneg %p632
        %p1171 = pneg %p629
        %p1172 = pneg %p653
        %p1173 = pneg %p650
        %p1174 = pneg %p674
        %p1175 = pneg %p671
        %p1176 = pneg %p695
        %p1177 = pneg %p692
        %p1178 = pneg %p716
        %p1179 = pneg %p713
        %p1180 = pneg %p737
        %p1181 = pneg %p734
        %p1182 = pneg %p763
        %p1183 = pneg %p760
        %s1184 = sand.u32 %s750, 1
        %s1185 = scalar_lea.sflag [#allocation4], %s1184
        %s1186 = sand.u32 %s750, 1
        %s1187 = scalar_lea.vmem [#allocation29], %s1186
        %p1188 = scmp.lt.s32.totalorder %s86, 1
        %s1189 = scalar_select %p1188, %s86, 1
        %s1190 = smul.addr %s1189, 16
        %s1191 = smul.addr %s1190, 4
        %s1192 = scalar_lea.vmem %s1, %s1191
        %v1194 = vld [vmem:[%s1192] sm:$0xf]
        %v1195 = vld [vmem:[%s1192 + $0x4] sm:$0xf]
        %v1196 = vld [vmem:[%s1192 + $0x8] sm:$0xf]
        %v1197 = vld [vmem:[%s1192 + $0xc] sm:$0xf]
        %v1198 = vld [vmem:[%s1192 + $0x10] sm:$0xf]
        %v1199 = vld [vmem:[%s1192 + $0x14] sm:$0xf]
        %v1200 = vld [vmem:[%s1192 + $0x18] sm:$0xf]
        %v1201 = vld [vmem:[%s1192 + $0x1c] sm:$0xf]
        %v1202 = vld [vmem:[%s1192 + $0x20] sm:$0xf]
        %v1203 = vld [vmem:[%s1192 + $0x24] sm:$0xf]
        %v1204 = vld [vmem:[%s1192 + $0x28] sm:$0xf]
        %v1205 = vld [vmem:[%s1192 + $0x2c] sm:$0xf]
        %v1206 = vld [vmem:[%s1192 + $0x30] sm:$0xf]
        %v1207 = vld [vmem:[%s1192 + $0x34] sm:$0xf]
        %v1208 = vld [vmem:[%s1192 + $0x38] sm:$0xf]
        %v1209 = vld [vmem:[%s1192 + $0x3c] sm:$0x7]
        %v1210 = vld [vmem:[%s3] sm:$0xf]
        %v1211 = vld [vmem:[%s3 + $0x4] sm:$0xf]
        %v1212 = vld [vmem:[%s3 + $0x8] sm:$0xf]
        %v1213 = vld [vmem:[%s3 + $0xc] sm:$0xf]
        %v1214 = vld [vmem:[%s3 + $0x10] sm:$0xf]
        %v1215 = vld [vmem:[%s3 + $0x14] sm:$0xf]
        %v1216 = vld [vmem:[%s3 + $0x18] sm:$0xf]
        %v1217 = vld [vmem:[%s3 + $0x1c] sm:$0xf]
        %v1218 = vld [vmem:[%s3 + $0x20] sm:$0xf]
        %v1219 = vld [vmem:[%s3 + $0x24] sm:$0xf]
        %v1220 = vld [vmem:[%s3 + $0x28] sm:$0xf]
        %v1221 = vld [vmem:[%s3 + $0x2c] sm:$0xf]
        %v1222 = vld [vmem:[%s3 + $0x30] sm:$0xf]
        %v1223 = vld [vmem:[%s3 + $0x34] sm:$0xf]
        %v1224 = vld [vmem:[%s3 + $0x38] sm:$0xf]
        %v1225 = vld [vmem:[%s3 + $0x3c] sm:$0xf]
        %v1226 = vld [vmem:[%s5] sm:$0x1]
        %v1228 = vlaneseq
        %v1229 = vshrl.u32 %v1228, 7
        %v1230 = vsub.s32 0, %v1229
        %v1231 = vrot.slane %v1226, %v1230
        %v1249 = vunpack.c.l.b16 %v1194
        %v1250 = vunpack.c.l.b16 %v1195
        %v1251 = vunpack.c.l.b16 %v1196
        %v1252 = vunpack.c.l.b16 %v1197
        %v1253 = vunpack.c.l.b16 %v1198
        %v1254 = vunpack.c.l.b16 %v1199
        %v1255 = vunpack.c.l.b16 %v1200
        %v1256 = vunpack.c.l.b16 %v1201
        %v1257 = vunpack.c.l.b16 %v1202
        %v1258 = vunpack.c.l.b16 %v1203
        %v1259 = vunpack.c.l.b16 %v1204
        %v1260 = vunpack.c.l.b16 %v1205
        %v1261 = vunpack.c.l.b16 %v1206
        %v1262 = vunpack.c.l.b16 %v1207
        %v1263 = vunpack.c.l.b16 %v1208
        %v1264 = vunpack.c.l.b16 %v1209
        %v1265 = vpack.c.b16 %v1250, %v1249
        %v1266 = vpack.c.b16 %v1252, %v1251
        %v1267 = vpack.c.b16 %v1254, %v1253
        %v1268 = vpack.c.b16 %v1256, %v1255
        %v1269 = vpack.c.b16 %v1258, %v1257
        %v1270 = vpack.c.b16 %v1260, %v1259
        %v1271 = vpack.c.b16 %v1262, %v1261
        %v1272 = vpack.c.b16 %v1264, %v1263
        %v1297 = vunpack.c.l.b16 %v1210
        %v1298 = vunpack.c.l.b16 %v1211
        %v1299 = vunpack.c.l.b16 %v1212
        %v1300 = vunpack.c.l.b16 %v1213
        %v1301 = vunpack.c.l.b16 %v1214
        %v1302 = vunpack.c.l.b16 %v1215
        %v1303 = vunpack.c.l.b16 %v1216
        %v1304 = vunpack.c.l.b16 %v1217
        %v1305 = vunpack.c.l.b16 %v1218
        %v1306 = vunpack.c.l.b16 %v1219
        %v1307 = vunpack.c.l.b16 %v1220
        %v1308 = vunpack.c.l.b16 %v1221
        %v1309 = vunpack.c.l.b16 %v1222
        %v1310 = vunpack.c.l.b16 %v1223
        %v1311 = vunpack.c.l.b16 %v1224
        %v1312 = vunpack.c.l.b16 %v1225
        %v1313 = vpack.c.b16 %v1298, %v1297
        %v1314 = vpack.c.b16 %v1300, %v1299
        %v1315 = vpack.c.b16 %v1302, %v1301
        %v1316 = vpack.c.b16 %v1304, %v1303
        %v1317 = vpack.c.b16 %v1306, %v1305
        %v1318 = vpack.c.b16 %v1308, %v1307
        %v1319 = vpack.c.b16 %v1310, %v1309
        %v1320 = vpack.c.b16 %v1312, %v1311
        %1329 = vmatprep.subr.bf16.mxu0 0
        %1330 = vmatpush1.bf16.msra.mxu0 %v1320
        %1331 = vmatprep.subr.bf16.mxu0 0
        %1332 = vmatpush1.bf16.msra.mxu0 %v1319
        %1333 = vmatprep.subr.bf16.mxu0 0
        %1334 = vmatpush1.bf16.msra.mxu0 %v1318
        %1335 = vmatprep.subr.bf16.mxu0 0
        %1336 = vmatpush1.bf16.msra.mxu0 %v1317
        %1337 = vmatprep.subr.bf16.mxu0 0
        %1338 = vmatpush1.bf16.msra.mxu0 %v1316
        %1339 = vmatprep.subr.bf16.mxu0 0
        %1340 = vmatpush1.bf16.msra.mxu0 %v1315
        %1341 = vmatprep.subr.bf16.mxu0 0
        %1342 = vmatpush1.bf16.msra.mxu0 %v1314
        %1343 = vmatprep.subr.bf16.mxu0 0
        %1344 = vmatpush1.bf16.msra.mxu0 %v1313
        %1345 = vmatprep.subr.bf16.mxu0 0
        %1346 = vmatpush2.bf16.msra.mxu0 0
        %1347 = vmatprep.subr.bf16.mxu0 0
        %1348 = vmatpush2.bf16.msra.mxu0 0
        %1349 = vmatprep.subr.bf16.mxu0 0
        %1350 = vmatpush2.bf16.msra.mxu0 0
        %1351 = vmatprep.subr.bf16.mxu0 0
        %1352 = vmatpush2.bf16.msra.mxu0 0
        %1353 = vmatprep.subr.bf16.mxu0 0
        %1354 = vmatpush2.bf16.msra.mxu0 0
        %1355 = vmatprep.subr.bf16.mxu0 0
        %1356 = vmatpush2.bf16.msra.mxu0 0
        %1357 = vmatprep.subr.bf16.mxu0 0
        %1358 = vmatpush2.bf16.msra.mxu0 0
        %1359 = vmatprep.subr.bf16.mxu0 0
        %1360 = vmatpush2.bf16.msra.mxu0 0
        %1361 = vmatprep.mubr.bf16.mxu0 0
        %1362 = vmatmul.mubr.bf16.gmra.mxu0 %v1265
        %v1363 = vpop.f32.mrf.mxu0
        %v1364 = vadd.f32 %v1231, %v1363
        %v1365 = vpop.f32.mrf.mxu0
        %v1366 = vpop.f32.mrf.mxu0
        %v1367 = vadd.f32 %v1231, %v1366
        %v1368 = vpop.f32.mrf.mxu0
        %1369 = vmatprep.mubr.bf16.mxu0 0
        %1370 = vmatmul.mubr.bf16.gmra.mxu0 %v1266
        %v1371 = vpop.f32.mrf.mxu0
        %v1372 = vadd.f32 %v1231, %v1371
        %v1373 = vpop.f32.mrf.mxu0
        %v1374 = vpop.f32.mrf.mxu0
        %v1375 = vadd.f32 %v1231, %v1374
        %v1376 = vpop.f32.mrf.mxu0
        %1377 = vmatprep.mubr.bf16.mxu0 0
        %1378 = vmatmul.mubr.bf16.gmra.mxu0 %v1267
        %v1379 = vpop.f32.mrf.mxu0
        %v1380 = vadd.f32 %v1231, %v1379
        %v1381 = vpop.f32.mrf.mxu0
        %v1382 = vpop.f32.mrf.mxu0
        %v1383 = vadd.f32 %v1231, %v1382
        %v1384 = vpop.f32.mrf.mxu0
        %1385 = vmatprep.mubr.bf16.mxu0 0
        %1386 = vmatmul.mubr.bf16.gmra.mxu0 %v1268
        %v1387 = vpop.f32.mrf.mxu0
        %v1388 = vadd.f32 %v1231, %v1387
        %v1389 = vpop.f32.mrf.mxu0
        %v1390 = vpop.f32.mrf.mxu0
        %v1391 = vadd.f32 %v1231, %v1390
        %v1392 = vpop.f32.mrf.mxu0
        %1393 = vmatprep.mubr.bf16.mxu0 0
        %1394 = vmatmul.mubr.bf16.gmra.mxu0 %v1269
        %v1395 = vpop.f32.mrf.mxu0
        %v1396 = vadd.f32 %v1231, %v1395
        %v1397 = vpop.f32.mrf.mxu0
        %v1398 = vpop.f32.mrf.mxu0
        %v1399 = vadd.f32 %v1231, %v1398
        %v1400 = vpop.f32.mrf.mxu0
        %1401 = vmatprep.mubr.bf16.mxu0 0
        %1402 = vmatmul.mubr.bf16.gmra.mxu0 %v1270
        %v1403 = vpop.f32.mrf.mxu0
        %v1404 = vadd.f32 %v1231, %v1403
        %v1405 = vpop.f32.mrf.mxu0
        %v1406 = vpop.f32.mrf.mxu0
        %v1407 = vadd.f32 %v1231, %v1406
        %v1408 = vpop.f32.mrf.mxu0
        %1409 = vmatprep.mubr.bf16.mxu0 0
        %1410 = vmatmul.mubr.bf16.gmra.mxu0 %v1271
        %v1411 = vpop.f32.mrf.mxu0
        %v1412 = vadd.f32 %v1231, %v1411
        %v1413 = vpop.f32.mrf.mxu0
        %v1414 = vpop.f32.mrf.mxu0
        %v1415 = vadd.f32 %v1231, %v1414
        %v1416 = vpop.f32.mrf.mxu0
        %1417 = vmatprep.mubr.bf16.mxu0 0
        %1418 = vmatmul.mubr.bf16.gmra.mxu0 %v1272
        %v1419 = vpop.f32.mrf.mxu0
        %v1420 = vadd.f32 %v1231, %v1419
        %v1421 = vpop.f32.mrf.mxu0
        %v1422 = vpop.f32.mrf.mxu0
        %v1423 = vadd.f32 %v1231, %v1422
        %v1424 = vpop.f32.mrf.mxu0
        %1425 = vdwg.mxu0
        %vm1426 = vcmp.gt.f32.partialorder %v1364, 0.0
        %vm1427 = vcmp.gt.f32.partialorder %v1367, 0.0
        %vm1428 = vcmp.gt.f32.partialorder %v1372, 0.0
        %vm1429 = vcmp.gt.f32.partialorder %v1375, 0.0
        %vm1430 = vcmp.gt.f32.partialorder %v1380, 0.0
        %vm1431 = vcmp.gt.f32.partialorder %v1383, 0.0
        %vm1432 = vcmp.gt.f32.partialorder %v1388, 0.0
        %vm1433 = vcmp.gt.f32.partialorder %v1391, 0.0
        %vm1434 = vcmp.gt.f32.partialorder %v1396, 0.0
        %vm1435 = vcmp.gt.f32.partialorder %v1399, 0.0
        %vm1436 = vcmp.gt.f32.partialorder %v1404, 0.0
        %vm1437 = vcmp.gt.f32.partialorder %v1407, 0.0
        %vm1438 = vcmp.gt.f32.partialorder %v1412, 0.0
        %vm1439 = vcmp.gt.f32.partialorder %v1415, 0.0
        %vm1440 = vcmp.gt.f32.partialorder %v1420, 0.0
        %vm1441 = vcmp.gt.f32.partialorder %v1423, 0.0
        %v1442 = vmul.f32 %v1364, 0.01
        %v1443 = vmul.f32 %v1367, 0.01
        %v1444 = vmul.f32 %v1372, 0.01
        %v1445 = vmul.f32 %v1375, 0.01
        %v1446 = vmul.f32 %v1380, 0.01
        %v1447 = vmul.f32 %v1383, 0.01
        %v1448 = vmul.f32 %v1388, 0.01
        %v1449 = vmul.f32 %v1391, 0.01
        %v1450 = vmul.f32 %v1396, 0.01
        %v1451 = vmul.f32 %v1399, 0.01
        %v1452 = vmul.f32 %v1404, 0.01
        %v1453 = vmul.f32 %v1407, 0.01
        %v1454 = vmul.f32 %v1412, 0.01
        %v1455 = vmul.f32 %v1415, 0.01
        %v1456 = vmul.f32 %v1420, 0.01
        %v1457 = vmul.f32 %v1423, 0.01
        %v1458 = vsel %vm1426, %v1364, %v1442
        %v1459 = vsel %vm1427, %v1367, %v1443
        %v1460 = vsel %vm1428, %v1372, %v1444
        %v1461 = vsel %vm1429, %v1375, %v1445
        %v1462 = vsel %vm1430, %v1380, %v1446
        %v1463 = vsel %vm1431, %v1383, %v1447
        %v1464 = vsel %vm1432, %v1388, %v1448
        %v1465 = vsel %vm1433, %v1391, %v1449
        %v1466 = vsel %vm1434, %v1396, %v1450
        %v1467 = vsel %vm1435, %v1399, %v1451
        %v1468 = vsel %vm1436, %v1404, %v1452
        %v1469 = vsel %vm1437, %v1407, %v1453
        %v1470 = vsel %vm1438, %v1412, %v1454
        %v1471 = vsel %vm1439, %v1415, %v1455
        %v1472 = vsel %vm1440, %v1420, %v1456
        %v1473 = vsel %vm1441, %v1423, %v1457
        %v1474 = vpack.c.bf16 %v1459, %v1458
        %v1475 = vpack.c.bf16 %v1461, %v1460
        %v1476 = vpack.c.bf16 %v1463, %v1462
        %v1477 = vpack.c.bf16 %v1465, %v1464
        %v1478 = vpack.c.bf16 %v1467, %v1466
        %v1479 = vpack.c.bf16 %v1469, %v1468
        %v1480 = vpack.c.bf16 %v1471, %v1470
        %v1481 = vpack.c.bf16 %v1473, %v1472
        %v1482 = vld [vmem:[%s7] sm:$0xf]
        %v1483 = vld [vmem:[%s7 + $0x4] sm:$0xf]
        %v1484 = vld [vmem:[%s7 + $0x8] sm:$0xf]
        %v1485 = vld [vmem:[%s7 + $0xc] sm:$0xf]
        %v1486 = vld [vmem:[%s7 + $0x10] sm:$0xf]
        %v1487 = vld [vmem:[%s7 + $0x14] sm:$0xf]
        %v1488 = vld [vmem:[%s7 + $0x18] sm:$0xf]
        %v1489 = vld [vmem:[%s7 + $0x1c] sm:$0xf]
        %v1498 = vunpack.c.l.b16 %v1482
        %v1499 = vunpack.c.l.b16 %v1483
        %v1500 = vunpack.c.l.b16 %v1484
        %v1501 = vunpack.c.l.b16 %v1485
        %v1502 = vunpack.c.l.b16 %v1486
        %v1503 = vunpack.c.l.b16 %v1487
        %v1504 = vunpack.c.l.b16 %v1488
        %v1505 = vunpack.c.l.b16 %v1489
        %v1506 = vpack.c.b16 %v1499, %v1498
        %v1507 = vpack.c.b16 %v1501, %v1500
        %v1508 = vpack.c.b16 %v1503, %v1502
        %v1509 = vpack.c.b16 %v1505, %v1504
        %vm1510 = vcmask 1031168
        %v1512 = vsel %vm1510, %v1506, 0
        %v1515 = vsel %vm1510, %v1507, 0
        %v1518 = vsel %vm1510, %v1508, 0
        %v1521 = vsel %vm1510, %v1509, 0
        %vm1523 = vcmask 1046528
        %v1525 = vsel %vm1523, %v1481, 0
        %1527 = vmatprep.subr.bf16.mxu0 0
        %1528 = vmatpush1.bf16.msra.mxu0 %v1525
        %1529 = vmatprep.subr.bf16.mxu0 0
        %1530 = vmatpush1.bf16.msra.mxu0 %v1480
        %1531 = vmatprep.subr.bf16.mxu0 0
        %1532 = vmatpush1.bf16.msra.mxu0 %v1479
        %1533 = vmatprep.subr.bf16.mxu0 0
        %1534 = vmatpush1.bf16.msra.mxu0 %v1478
        %1535 = vmatprep.subr.bf16.mxu0 0
        %1536 = vmatpush1.bf16.msra.mxu0 %v1477
        %1537 = vmatprep.subr.bf16.mxu0 0
        %1538 = vmatpush1.bf16.msra.mxu0 %v1476
        %1539 = vmatprep.subr.bf16.mxu0 0
        %1540 = vmatpush1.bf16.msra.mxu0 %v1475
        %1541 = vmatprep.subr.bf16.mxu0 0
        %1542 = vmatpush1.bf16.msra.mxu0 %v1474
        %1543 = vmatprep.subr.bf16.mxu0 0
        %1544 = vmatpush2.bf16.msra.mxu0 0
        %1545 = vmatprep.subr.bf16.mxu0 0
        %1546 = vmatpush2.bf16.msra.mxu0 0
        %1547 = vmatprep.subr.bf16.mxu0 0
        %1548 = vmatpush2.bf16.msra.mxu0 0
        %1549 = vmatprep.subr.bf16.mxu0 0
        %1550 = vmatpush2.bf16.msra.mxu0 0
        %1551 = vmatprep.subr.bf16.mxu0 0
        %1552 = vmatpush2.bf16.msra.mxu0 0
        %1553 = vmatprep.subr.bf16.mxu0 0
        %1554 = vmatpush2.bf16.msra.mxu0 0
        %1555 = vmatprep.subr.bf16.mxu0 0
        %1556 = vmatpush2.bf16.msra.mxu0 0
        %1557 = vmatprep.subr.bf16.mxu0 0
        %1558 = vmatpush2.bf16.msra.mxu0 0
        %1559 = vmatprep.mubr.bf16.mxu0 0
        %1560 = vmatmul.mubr.bf16.gmra.mxu0 %v1512
        %v1561 = vpop.f32.mrf.mxu0
        %v1562 = vadd.f32 0.0, %v1561
        %v1563 = vpop.f32.mrf.mxu0
        %v1564 = vpop.f32.mrf.mxu0
        %v1565 = vadd.f32 0.0, %v1564
        %v1566 = vpop.f32.mrf.mxu0
        %1567 = vmatprep.mubr.bf16.mxu0 0
        %1568 = vmatmul.mubr.bf16.gmra.mxu0 %v1515
        %v1569 = vpop.f32.mrf.mxu0
        %v1570 = vadd.f32 0.0, %v1569
        %v1571 = vpop.f32.mrf.mxu0
        %v1572 = vpop.f32.mrf.mxu0
        %v1573 = vadd.f32 0.0, %v1572
        %v1574 = vpop.f32.mrf.mxu0
        %1575 = vmatprep.mubr.bf16.mxu0 0
        %1576 = vmatmul.mubr.bf16.gmra.mxu0 %v1518
        %v1577 = vpop.f32.mrf.mxu0
        %v1578 = vadd.f32 0.0, %v1577
        %v1579 = vpop.f32.mrf.mxu0
        %v1580 = vpop.f32.mrf.mxu0
        %v1581 = vadd.f32 0.0, %v1580
        %v1582 = vpop.f32.mrf.mxu0
        %1583 = vmatprep.mubr.bf16.mxu0 0
        %1584 = vmatmul.mubr.bf16.gmra.mxu0 %v1521
        %v1585 = vpop.f32.mrf.mxu0
        %v1586 = vadd.f32 0.0, %v1585
        %v1587 = vpop.f32.mrf.mxu0
        %v1588 = vpop.f32.mrf.mxu0
        %v1589 = vadd.f32 0.0, %v1588
        %v1590 = vpop.f32.mrf.mxu0
        %1591 = vdwg.mxu0
        %v1592 = vld [vmem:[%s9] sm:$0xf]
        %v1593 = vld [vmem:[%s9 + $0x4] sm:$0xf]
        %v1594 = vld [vmem:[%s9 + $0x8] sm:$0xf]
        %v1595 = vld [vmem:[%s9 + $0xc] sm:$0xf]
        %v1596 = vld [vmem:[%s9 + $0x10] sm:$0xf]
        %v1597 = vld [vmem:[%s9 + $0x14] sm:$0xf]
        %v1598 = vld [vmem:[%s9 + $0x18] sm:$0xf]
        %v1599 = vld [vmem:[%s9 + $0x1c] sm:$0xf]
        %v1608 = vunpack.c.l.b16 %v1592
        %v1609 = vunpack.c.l.b16 %v1593
        %v1610 = vunpack.c.l.b16 %v1594
        %v1611 = vunpack.c.l.b16 %v1595
        %v1612 = vunpack.c.l.b16 %v1596
        %v1613 = vunpack.c.l.b16 %v1597
        %v1614 = vunpack.c.l.b16 %v1598
        %v1615 = vunpack.c.l.b16 %v1599
        %v1616 = vpack.c.b16 %v1609, %v1608
        %v1617 = vpack.c.b16 %v1611, %v1610
        %v1618 = vpack.c.b16 %v1613, %v1612
        %v1619 = vpack.c.b16 %v1615, %v1614
        %v1621 = vsel %vm1510, %v1616, 0
        %v1624 = vsel %vm1510, %v1617, 0
        %v1627 = vsel %vm1510, %v1618, 0
        %v1630 = vsel %vm1510, %v1619, 0
        %1632 = vmatprep.subr.bf16.mxu0 0
        %1633 = vmatpush1.bf16.msra.mxu0 %v1525
        %1634 = vmatprep.subr.bf16.mxu0 0
        %1635 = vmatpush1.bf16.msra.mxu0 %v1480
        %1636 = vmatprep.subr.bf16.mxu0 0
        %1637 = vmatpush1.bf16.msra.mxu0 %v1479
        %1638 = vmatprep.subr.bf16.mxu0 0
        %1639 = vmatpush1.bf16.msra.mxu0 %v1478
        %1640 = vmatprep.subr.bf16.mxu0 0
        %1641 = vmatpush1.bf16.msra.mxu0 %v1477
        %1642 = vmatprep.subr.bf16.mxu0 0
        %1643 = vmatpush1.bf16.msra.mxu0 %v1476
        %1644 = vmatprep.subr.bf16.mxu0 0
        %1645 = vmatpush1.bf16.msra.mxu0 %v1475
        %1646 = vmatprep.subr.bf16.mxu0 0
        %1647 = vmatpush1.bf16.msra.mxu0 %v1474
        %1648 = vmatprep.subr.bf16.mxu0 0
        %1649 = vmatpush2.bf16.msra.mxu0 0
        %1650 = vmatprep.subr.bf16.mxu0 0
        %1651 = vmatpush2.bf16.msra.mxu0 0
        %1652 = vmatprep.subr.bf16.mxu0 0
        %1653 = vmatpush2.bf16.msra.mxu0 0
        %1654 = vmatprep.subr.bf16.mxu0 0
        %1655 = vmatpush2.bf16.msra.mxu0 0
        %1656 = vmatprep.subr.bf16.mxu0 0
        %1657 = vmatpush2.bf16.msra.mxu0 0
        %1658 = vmatprep.subr.bf16.mxu0 0
        %1659 = vmatpush2.bf16.msra.mxu0 0
        %1660 = vmatprep.subr.bf16.mxu0 0
        %1661 = vmatpush2.bf16.msra.mxu0 0
        %1662 = vmatprep.subr.bf16.mxu0 0
        %1663 = vmatpush2.bf16.msra.mxu0 0
        %1664 = vmatprep.mubr.bf16.mxu0 0
        %1665 = vmatmul.mubr.bf16.gmra.mxu0 %v1621
        %v1666 = vpop.f32.mrf.mxu0
        %v1667 = vadd.f32 0.0, %v1666
        %v1668 = vpop.f32.mrf.mxu0
        %v1669 = vpop.f32.mrf.mxu0
        %v1670 = vadd.f32 0.0, %v1669
        %v1671 = vpop.f32.mrf.mxu0
        %1672 = vmatprep.mubr.bf16.mxu0 0
        %1673 = vmatmul.mubr.bf16.gmra.mxu0 %v1624
        %v1674 = vpop.f32.mrf.mxu0
        %v1675 = vadd.f32 0.0, %v1674
        %v1676 = vpop.f32.mrf.mxu0
        %v1677 = vpop.f32.mrf.mxu0
        %v1678 = vadd.f32 0.0, %v1677
        %v1679 = vpop.f32.mrf.mxu0
        %1680 = vmatprep.mubr.bf16.mxu0 0
        %1681 = vmatmul.mubr.bf16.gmra.mxu0 %v1627
        %v1682 = vpop.f32.mrf.mxu0
        %v1683 = vadd.f32 0.0, %v1682
        %v1684 = vpop.f32.mrf.mxu0
        %v1685 = vpop.f32.mrf.mxu0
        %v1686 = vadd.f32 0.0, %v1685
        %v1687 = vpop.f32.mrf.mxu0
        %1688 = vmatprep.mubr.bf16.mxu0 0
        %1689 = vmatmul.mubr.bf16.gmra.mxu0 %v1630
        %v1690 = vpop.f32.mrf.mxu0
        %v1691 = vadd.f32 0.0, %v1690
        %v1692 = vpop.f32.mrf.mxu0
        %v1693 = vpop.f32.mrf.mxu0
        %v1694 = vadd.f32 0.0, %v1693
        %v1695 = vpop.f32.mrf.mxu0
        %1696 = vdwg.mxu0
        %v1697 = vmax.f32 %v1562, %v1667
        %v1698 = vmax.f32 %v1565, %v1670
        %v1699 = vmax.f32 %v1570, %v1675
        %v1700 = vmax.f32 %v1573, %v1678
        %v1701 = vmax.f32 %v1578, %v1683
        %v1702 = vmax.f32 %v1581, %v1686
        %v1703 = vmax.f32 %v1586, %v1691
        %v1704 = vmax.f32 %v1589, %v1694
        %v1705 = vpack.c.bf16 %v1698, %v1697
        %v1706 = vpack.c.bf16 %v1700, %v1699
        %v1707 = vpack.c.bf16 %v1702, %v1701
        %v1708 = vpack.c.bf16 %v1704, %v1703
        %v1709 = vld [vmem:[%s11] sm:$0xf]
        %v1710 = vld [vmem:[%s11 + $0x4] sm:$0xf]
        %v1711 = vld [vmem:[%s11 + $0x8] sm:$0xf]
        %v1712 = vld [vmem:[%s11 + $0xc] sm:$0xf]
        %v1713 = vld [vmem:[%s11 + $0x10] sm:$0xf]
        %v1714 = vld [vmem:[%s11 + $0x14] sm:$0xf]
        %v1715 = vld [vmem:[%s11 + $0x18] sm:$0xf]
        %v1716 = vld [vmem:[%s11 + $0x1c] sm:$0x7]
        %v1725 = vunpack.c.l.b16 %v1709
        %v1726 = vunpack.c.l.b16 %v1710
        %v1727 = vunpack.c.l.b16 %v1711
        %v1728 = vunpack.c.l.b16 %v1712
        %v1729 = vunpack.c.l.b16 %v1713
        %v1730 = vunpack.c.l.b16 %v1714
        %v1731 = vunpack.c.l.b16 %v1715
        %v1732 = vunpack.c.l.b16 %v1716
        %v1733 = vpack.c.b16 %v1726, %v1725
        %v1734 = vpack.c.b16 %v1728, %v1727
        %v1735 = vpack.c.b16 %v1730, %v1729
        %v1736 = vpack.c.b16 %v1732, %v1731
        %vm1737 = vcmask 515072
        %v1739 = vsel %vm1737, %v1733, 0
        %v1742 = vsel %vm1737, %v1734, 0
        %v1745 = vsel %vm1737, %v1735, 0
        %v1748 = vsel %vm1737, %v1736, 0
        %vm1750 = vcmask 1047552
        %v1751 = vsel %vm1523, 4294967295, 65535
        %v1752 = vsel %vm1750, %v1751, 0
        %v1754 = vand.u32 %v1708, %v1752
        %1756 = vmatprep.subr.bf16.mxu0 0
        %1757 = vmatpush1.bf16.msra.mxu0 0
        %1758 = vmatprep.subr.bf16.mxu0 0
        %1759 = vmatpush1.bf16.msra.mxu0 0
        %1760 = vmatprep.subr.bf16.mxu0 0
        %1761 = vmatpush1.bf16.msra.mxu0 0
        %1762 = vmatprep.subr.bf16.mxu0 0
        %1763 = vmatpush1.bf16.msra.mxu0 0
        %1764 = vmatprep.subr.bf16.mxu0 0
        %1765 = vmatpush1.bf16.msra.mxu0 %v1754
        %1766 = vmatprep.subr.bf16.mxu0 0
        %1767 = vmatpush1.bf16.msra.mxu0 %v1707
        %1768 = vmatprep.subr.bf16.mxu0 0
        %1769 = vmatpush1.bf16.msra.mxu0 %v1706
        %1770 = vmatprep.subr.bf16.mxu0 0
        %1771 = vmatpush1.bf16.msra.mxu0 %v1705
        %1772 = vmatprep.subr.bf16.mxu0 0
        %1773 = vmatpush2.bf16.msra.mxu0 0
        %1774 = vmatprep.subr.bf16.mxu0 0
        %1775 = vmatpush2.bf16.msra.mxu0 0
        %1776 = vmatprep.subr.bf16.mxu0 0
        %1777 = vmatpush2.bf16.msra.mxu0 0
        %1778 = vmatprep.subr.bf16.mxu0 0
        %1779 = vmatpush2.bf16.msra.mxu0 0
        %1780 = vmatprep.subr.bf16.mxu0 0
        %1781 = vmatpush2.bf16.msra.mxu0 0
        %1782 = vmatprep.subr.bf16.mxu0 0
        %1783 = vmatpush2.bf16.msra.mxu0 0
        %1784 = vmatprep.subr.bf16.mxu0 0
        %1785 = vmatpush2.bf16.msra.mxu0 0
        %1786 = vmatprep.subr.bf16.mxu0 0
        %1787 = vmatpush2.bf16.msra.mxu0 0
        %1788 = vmatprep.mubr.bf16.mxu0 0
        %1789 = vmatmul.mubr.bf16.gmra.mxu0 %v1739
        %v1790 = vpop.f32.mrf.mxu0
        %v1791 = vadd.f32 0.0, %v1790
        %v1792 = vpop.f32.mrf.mxu0
        %v1793 = vpop.f32.mrf.mxu0
        %v1794 = vadd.f32 0.0, %v1793
        %v1795 = vpop.f32.mrf.mxu0
        %1796 = vmatprep.mubr.bf16.mxu0 0
        %1797 = vmatmul.mubr.bf16.gmra.mxu0 %v1742
        %v1798 = vpop.f32.mrf.mxu0
        %v1799 = vadd.f32 0.0, %v1798
        %v1800 = vpop.f32.mrf.mxu0
        %v1801 = vpop.f32.mrf.mxu0
        %v1802 = vadd.f32 0.0, %v1801
        %v1803 = vpop.f32.mrf.mxu0
        %1804 = vmatprep.mubr.bf16.mxu0 0
        %1805 = vmatmul.mubr.bf16.gmra.mxu0 %v1745
        %v1806 = vpop.f32.mrf.mxu0
        %v1807 = vadd.f32 0.0, %v1806
        %v1808 = vpop.f32.mrf.mxu0
        %v1809 = vpop.f32.mrf.mxu0
        %v1810 = vadd.f32 0.0, %v1809
        %v1811 = vpop.f32.mrf.mxu0
        %1812 = vmatprep.mubr.bf16.mxu0 0
        %1813 = vmatmul.mubr.bf16.gmra.mxu0 %v1748
        %v1814 = vpop.f32.mrf.mxu0
        %v1815 = vadd.f32 0.0, %v1814
        %v1816 = vpop.f32.mrf.mxu0
        %v1817 = vpop.f32.mrf.mxu0
        %v1818 = vadd.f32 0.0, %v1817
        %v1819 = vpop.f32.mrf.mxu0
        %1820 = vdwg.mxu0
        %v1821 = vpack.c.bf16 %v1794, %v1791
        %v1822 = vpack.c.bf16 %v1802, %v1799
        %v1823 = vpack.c.bf16 %v1810, %v1807
        %v1824 = vpack.c.bf16 %v1818, %v1815
        %v1825 = vld [vmem:[%s17] sm:$0xf]
        %v1826 = vld [vmem:[%s17 + $0x4] sm:$0xf]
        %v1827 = vld [vmem:[%s17 + $0x8] sm:$0xf]
        %v1828 = vld [vmem:[%s17 + $0xc] sm:$0xf]
        %v1829 = vld [vmem:[%s17 + $0x10] sm:$0xf]
        %v1830 = vld [vmem:[%s17 + $0x14] sm:$0xf]
        %v1831 = vld [vmem:[%s17 + $0x18] sm:$0xf]
        %v1832 = vld [vmem:[%s17 + $0x1c] sm:$0xf]
        %v1833 = vld [vmem:[%s17 + $0x20] sm:$0xf]
        %v1834 = vld [vmem:[%s17 + $0x24] sm:$0xf]
        %v1835 = vld [vmem:[%s17 + $0x28] sm:$0xf]
        %v1836 = vld [vmem:[%s17 + $0x2c] sm:$0xf]
        %v1837 = vld [vmem:[%s17 + $0x30] sm:$0xf]
        %v1838 = vld [vmem:[%s17 + $0x34] sm:$0xf]
        %v1839 = vld [vmem:[%s17 + $0x38] sm:$0xf]
        %v1840 = vld [vmem:[%s17 + $0x3c] sm:$0xf]
        %v1841 = vld [vmem:[%s13] sm:$0xf]
        %v1842 = vld [vmem:[%s13 + $0x4] sm:$0xf]
        %v1843 = vld [vmem:[%s13 + $0x8] sm:$0xf]
        %v1844 = vld [vmem:[%s13 + $0xc] sm:$0xf]
        %v1845 = vld [vmem:[%s13 + $0x10] sm:$0xf]
        %v1846 = vld [vmem:[%s13 + $0x14] sm:$0xf]
        %v1847 = vld [vmem:[%s13 + $0x18] sm:$0xf]
        %v1848 = vld [vmem:[%s13 + $0x1c] sm:$0x7]
        %v1857 = vunpack.c.l.b16 %v1841
        %v1858 = vunpack.c.l.b16 %v1842
        %v1859 = vunpack.c.l.b16 %v1843
        %v1860 = vunpack.c.l.b16 %v1844
        %v1861 = vunpack.c.l.b16 %v1845
        %v1862 = vunpack.c.l.b16 %v1846
        %v1863 = vunpack.c.l.b16 %v1847
        %v1864 = vunpack.c.l.b16 %v1848
        %v1865 = vpack.c.b16 %v1858, %v1857
        %v1866 = vpack.c.b16 %v1860, %v1859
        %v1867 = vpack.c.b16 %v1862, %v1861
        %v1868 = vpack.c.b16 %v1864, %v1863
        %v1870 = vsel %vm1737, %v1865, 0
        %v1873 = vsel %vm1737, %v1866, 0
        %v1876 = vsel %vm1737, %v1867, 0
        %v1879 = vsel %vm1737, %v1868, 0
        %1881 = vmatprep.subr.bf16.mxu0 0
        %1882 = vmatpush1.bf16.msra.mxu0 0
        %1883 = vmatprep.subr.bf16.mxu0 0
        %1884 = vmatpush1.bf16.msra.mxu0 0
        %1885 = vmatprep.subr.bf16.mxu0 0
        %1886 = vmatpush1.bf16.msra.mxu0 0
        %1887 = vmatprep.subr.bf16.mxu0 0
        %1888 = vmatpush1.bf16.msra.mxu0 0
        %1889 = vmatprep.subr.bf16.mxu0 0
        %1890 = vmatpush1.bf16.msra.mxu0 %v1754
        %1891 = vmatprep.subr.bf16.mxu0 0
        %1892 = vmatpush1.bf16.msra.mxu0 %v1707
        %1893 = vmatprep.subr.bf16.mxu0 0
        %1894 = vmatpush1.bf16.msra.mxu0 %v1706
        %1895 = vmatprep.subr.bf16.mxu0 0
        %1896 = vmatpush1.bf16.msra.mxu0 %v1705
        %1897 = vmatprep.subr.bf16.mxu0 0
        %1898 = vmatpush2.bf16.msra.mxu0 0
        %1899 = vmatprep.subr.bf16.mxu0 0
        %1900 = vmatpush2.bf16.msra.mxu0 0
        %1901 = vmatprep.subr.bf16.mxu0 0
        %1902 = vmatpush2.bf16.msra.mxu0 0
        %1903 = vmatprep.subr.bf16.mxu0 0
        %1904 = vmatpush2.bf16.msra.mxu0 0
        %1905 = vmatprep.subr.bf16.mxu0 0
        %1906 = vmatpush2.bf16.msra.mxu0 0
        %1907 = vmatprep.subr.bf16.mxu0 0
        %1908 = vmatpush2.bf16.msra.mxu0 0
        %1909 = vmatprep.subr.bf16.mxu0 0
        %1910 = vmatpush2.bf16.msra.mxu0 0
        %1911 = vmatprep.subr.bf16.mxu0 0
        %1912 = vmatpush2.bf16.msra.mxu0 0
        %1913 = vmatprep.mubr.bf16.mxu0 0
        %1914 = vmatmul.mubr.bf16.gmra.mxu0 %v1870
        %v1915 = vpop.f32.mrf.mxu0
        %v1916 = vadd.f32 0.0, %v1915
        %v1917 = vpop.f32.mrf.mxu0
        %v1918 = vpop.f32.mrf.mxu0
        %v1919 = vadd.f32 0.0, %v1918
        %v1920 = vpop.f32.mrf.mxu0
        %1921 = vmatprep.mubr.bf16.mxu0 0
        %1922 = vmatmul.mubr.bf16.gmra.mxu0 %v1873
        %v1923 = vpop.f32.mrf.mxu0
        %v1924 = vadd.f32 0.0, %v1923
        %v1925 = vpop.f32.mrf.mxu0
        %v1926 = vpop.f32.mrf.mxu0
        %v1927 = vadd.f32 0.0, %v1926
        %v1928 = vpop.f32.mrf.mxu0
        %1929 = vmatprep.mubr.bf16.mxu0 0
        %1930 = vmatmul.mubr.bf16.gmra.mxu0 %v1876
        %v1931 = vpop.f32.mrf.mxu0
        %v1932 = vadd.f32 0.0, %v1931
        %v1933 = vpop.f32.mrf.mxu0
        %v1934 = vpop.f32.mrf.mxu0
        %v1935 = vadd.f32 0.0, %v1934
        %v1936 = vpop.f32.mrf.mxu0
        %1937 = vmatprep.mubr.bf16.mxu0 0
        %1938 = vmatmul.mubr.bf16.gmra.mxu0 %v1879
        %v1939 = vpop.f32.mrf.mxu0
        %v1940 = vadd.f32 0.0, %v1939
        %v1941 = vpop.f32.mrf.mxu0
        %v1942 = vpop.f32.mrf.mxu0
        %v1943 = vadd.f32 0.0, %v1942
        %v1944 = vpop.f32.mrf.mxu0
        %1945 = vdwg.mxu0
        %v1946 = vpack.c.bf16 %v1919, %v1916
        %v1947 = vpack.c.bf16 %v1927, %v1924
        %v1948 = vpack.c.bf16 %v1935, %v1932
        %v1949 = vpack.c.bf16 %v1943, %v1940
        %s1950 = scalar_lea.vmem %s17, 64
        %v1951 = vld [vmem:[%s1950] sm:$0xf]
        %v1952 = vld [vmem:[%s1950 + $0x4] sm:$0xf]
        %v1953 = vld [vmem:[%s1950 + $0x8] sm:$0xf]
        %v1954 = vld [vmem:[%s1950 + $0xc] sm:$0xf]
        %v1955 = vld [vmem:[%s1950 + $0x10] sm:$0xf]
        %v1956 = vld [vmem:[%s1950 + $0x14] sm:$0xf]
        %v1957 = vld [vmem:[%s1950 + $0x18] sm:$0xf]
        %v1958 = vld [vmem:[%s1950 + $0x1c] sm:$0xf]
        %v1959 = vld [vmem:[%s1950 + $0x20] sm:$0xf]
        %v1960 = vld [vmem:[%s1950 + $0x24] sm:$0xf]
        %v1961 = vld [vmem:[%s1950 + $0x28] sm:$0xf]
        %v1962 = vld [vmem:[%s1950 + $0x2c] sm:$0xf]
        %v1963 = vld [vmem:[%s1950 + $0x30] sm:$0xf]
        %v1964 = vld [vmem:[%s1950 + $0x34] sm:$0xf]
        %v1965 = vld [vmem:[%s1950 + $0x38] sm:$0xf]
        %v1966 = vld [vmem:[%s1950 + $0x3c] sm:$0xf]
        %v1983 = vunpack.c.l.b16 %v1951
        %v1984 = vunpack.c.l.b16 %v1952
        %v1985 = vunpack.c.l.b16 %v1953
        %v1986 = vunpack.c.l.b16 %v1954
        %v1987 = vunpack.c.l.b16 %v1955
        %v1988 = vunpack.c.l.b16 %v1956
        %v1989 = vunpack.c.l.b16 %v1957
        %v1990 = vunpack.c.l.b16 %v1958
        %v1991 = vunpack.c.l.b16 %v1959
        %v1992 = vunpack.c.l.b16 %v1960
        %v1993 = vunpack.c.l.b16 %v1961
        %v1994 = vunpack.c.l.b16 %v1962
        %v1995 = vunpack.c.l.b16 %v1963
        %v1996 = vunpack.c.l.b16 %v1964
        %v1997 = vunpack.c.l.b16 %v1965
        %v1998 = vunpack.c.l.b16 %v1966
        %v1999 = vpack.c.b16 %v1984, %v1983
        %v2000 = vpack.c.b16 %v1986, %v1985
        %v2001 = vpack.c.b16 %v1988, %v1987
        %v2002 = vpack.c.b16 %v1990, %v1989
        %v2003 = vpack.c.b16 %v1992, %v1991
        %v2004 = vpack.c.b16 %v1994, %v1993
        %v2005 = vpack.c.b16 %v1996, %v1995
        %v2006 = vpack.c.b16 %v1998, %v1997
        %2015 = vmatprep.subr.bf16.mxu0 0
        %2016 = vmatpush1.bf16.msra.mxu0 %v2006
        %2017 = vmatprep.subr.bf16.mxu0 0
        %2018 = vmatpush1.bf16.msra.mxu0 %v2005
        %2019 = vmatprep.subr.bf16.mxu0 0
        %2020 = vmatpush1.bf16.msra.mxu0 %v2004
        %2021 = vmatprep.subr.bf16.mxu0 0
        %2022 = vmatpush1.bf16.msra.mxu0 %v2003
        %2023 = vmatprep.subr.bf16.mxu0 0
        %2024 = vmatpush1.bf16.msra.mxu0 %v2002
        %2025 = vmatprep.subr.bf16.mxu0 0
        %2026 = vmatpush1.bf16.msra.mxu0 %v2001
        %2027 = vmatprep.subr.bf16.mxu0 0
        %2028 = vmatpush1.bf16.msra.mxu0 %v2000
        %2029 = vmatprep.subr.bf16.mxu0 0
        %2030 = vmatpush1.bf16.msra.mxu0 %v1999
        %2031 = vmatprep.subr.bf16.mxu0 0
        %2032 = vmatpush2.bf16.msra.mxu0 0
        %2033 = vmatprep.subr.bf16.mxu0 0
        %2034 = vmatpush2.bf16.msra.mxu0 0
        %2035 = vmatprep.subr.bf16.mxu0 0
        %2036 = vmatpush2.bf16.msra.mxu0 0
        %2037 = vmatprep.subr.bf16.mxu0 0
        %2038 = vmatpush2.bf16.msra.mxu0 0
        %2039 = vmatprep.subr.bf16.mxu0 0
        %2040 = vmatpush2.bf16.msra.mxu0 0
        %2041 = vmatprep.subr.bf16.mxu0 0
        %2042 = vmatpush2.bf16.msra.mxu0 0
        %2043 = vmatprep.subr.bf16.mxu0 0
        %2044 = vmatpush2.bf16.msra.mxu0 0
        %2045 = vmatprep.subr.bf16.mxu0 0
        %2046 = vmatpush2.bf16.msra.mxu0 0
        %2047 = vmatprep.mubr.bf16.mxu0 0
        %2048 = vmatmul.mubr.bf16.gmra.mxu0 %v1946
        %v2049 = vpop.f32.mrf.mxu0
        %v2050 = vadd.f32 0.0, %v2049
        %v2051 = vpop.f32.mrf.mxu0
        %v2052 = vpop.f32.mrf.mxu0
        %v2053 = vadd.f32 0.0, %v2052
        %v2054 = vpop.f32.mrf.mxu0
        %2055 = vmatprep.mubr.bf16.mxu0 0
        %2056 = vmatmul.mubr.bf16.gmra.mxu0 %v1947
        %v2057 = vpop.f32.mrf.mxu0
        %v2058 = vadd.f32 0.0, %v2057
        %v2059 = vpop.f32.mrf.mxu0
        %v2060 = vpop.f32.mrf.mxu0
        %v2061 = vadd.f32 0.0, %v2060
        %v2062 = vpop.f32.mrf.mxu0
        %2063 = vmatprep.mubr.bf16.mxu0 0
        %2064 = vmatmul.mubr.bf16.gmra.mxu0 %v1948
        %v2065 = vpop.f32.mrf.mxu0
        %v2066 = vadd.f32 0.0, %v2065
        %v2067 = vpop.f32.mrf.mxu0
        %v2068 = vpop.f32.mrf.mxu0
        %v2069 = vadd.f32 0.0, %v2068
        %v2070 = vpop.f32.mrf.mxu0
        %2071 = vmatprep.mubr.bf16.mxu0 0
        %2072 = vmatmul.mubr.bf16.gmra.mxu0 %v1949
        %v2073 = vpop.f32.mrf.mxu0
        %v2074 = vadd.f32 0.0, %v2073
        %v2075 = vpop.f32.mrf.mxu0
        %v2076 = vpop.f32.mrf.mxu0
        %v2077 = vadd.f32 0.0, %v2076
        %v2078 = vpop.f32.mrf.mxu0
        %2079 = vdwg.mxu0
        %v2096 = vunpack.c.l.b16 %v1825
        %v2097 = vunpack.c.l.b16 %v1826
        %v2098 = vunpack.c.l.b16 %v1827
        %v2099 = vunpack.c.l.b16 %v1828
        %v2100 = vunpack.c.l.b16 %v1829
        %v2101 = vunpack.c.l.b16 %v1830
        %v2102 = vunpack.c.l.b16 %v1831
        %v2103 = vunpack.c.l.b16 %v1832
        %v2104 = vunpack.c.l.b16 %v1833
        %v2105 = vunpack.c.l.b16 %v1834
        %v2106 = vunpack.c.l.b16 %v1835
        %v2107 = vunpack.c.l.b16 %v1836
        %v2108 = vunpack.c.l.b16 %v1837
        %v2109 = vunpack.c.l.b16 %v1838
        %v2110 = vunpack.c.l.b16 %v1839
        %v2111 = vunpack.c.l.b16 %v1840
        %v2112 = vpack.c.b16 %v2097, %v2096
        %v2113 = vpack.c.b16 %v2099, %v2098
        %v2114 = vpack.c.b16 %v2101, %v2100
        %v2115 = vpack.c.b16 %v2103, %v2102
        %v2116 = vpack.c.b16 %v2105, %v2104
        %v2117 = vpack.c.b16 %v2107, %v2106
        %v2118 = vpack.c.b16 %v2109, %v2108
        %v2119 = vpack.c.b16 %v2111, %v2110
        %2128 = vmatprep.subr.bf16.mxu0 0
        %2129 = vmatpush1.bf16.msra.mxu0 %v2119
        %2130 = vmatprep.subr.bf16.mxu0 0
        %2131 = vmatpush1.bf16.msra.mxu0 %v2118
        %2132 = vmatprep.subr.bf16.mxu0 0
        %2133 = vmatpush1.bf16.msra.mxu0 %v2117
        %2134 = vmatprep.subr.bf16.mxu0 0
        %2135 = vmatpush1.bf16.msra.mxu0 %v2116
        %2136 = vmatprep.subr.bf16.mxu0 0
        %2137 = vmatpush1.bf16.msra.mxu0 %v2115
        %2138 = vmatprep.subr.bf16.mxu0 0
        %2139 = vmatpush1.bf16.msra.mxu0 %v2114
        %2140 = vmatprep.subr.bf16.mxu0 0
        %2141 = vmatpush1.bf16.msra.mxu0 %v2113
        %2142 = vmatprep.subr.bf16.mxu0 0
        %2143 = vmatpush1.bf16.msra.mxu0 %v2112
        %2144 = vmatprep.subr.bf16.mxu0 0
        %2145 = vmatpush2.bf16.msra.mxu0 0
        %2146 = vmatprep.subr.bf16.mxu0 0
        %2147 = vmatpush2.bf16.msra.mxu0 0
        %2148 = vmatprep.subr.bf16.mxu0 0
        %2149 = vmatpush2.bf16.msra.mxu0 0
        %2150 = vmatprep.subr.bf16.mxu0 0
        %2151 = vmatpush2.bf16.msra.mxu0 0
        %2152 = vmatprep.subr.bf16.mxu0 0
        %2153 = vmatpush2.bf16.msra.mxu0 0
        %2154 = vmatprep.subr.bf16.mxu0 0
        %2155 = vmatpush2.bf16.msra.mxu0 0
        %2156 = vmatprep.subr.bf16.mxu0 0
        %2157 = vmatpush2.bf16.msra.mxu0 0
        %2158 = vmatprep.subr.bf16.mxu0 0
        %2159 = vmatpush2.bf16.msra.mxu0 0
        %2160 = vmatprep.mubr.bf16.mxu0 0
        %2161 = vmatmul.mubr.bf16.gmra.mxu0 %v1821
        %v2162 = vpop.f32.mrf.mxu0
        %v2163 = vadd.f32 %v2050, %v2162
        %v2164 = vpop.f32.mrf.mxu0
        %v2165 = vpop.f32.mrf.mxu0
        %v2166 = vadd.f32 %v2053, %v2165
        %v2167 = vpop.f32.mrf.mxu0
        %2168 = vmatprep.mubr.bf16.mxu0 0
        %2169 = vmatmul.mubr.bf16.gmra.mxu0 %v1822
        %v2170 = vpop.f32.mrf.mxu0
        %v2171 = vadd.f32 %v2058, %v2170
        %v2172 = vpop.f32.mrf.mxu0
        %v2173 = vpop.f32.mrf.mxu0
        %v2174 = vadd.f32 %v2061, %v2173
        %v2175 = vpop.f32.mrf.mxu0
        %2176 = vmatprep.mubr.bf16.mxu0 0
        %2177 = vmatmul.mubr.bf16.gmra.mxu0 %v1823
        %v2178 = vpop.f32.mrf.mxu0
        %v2179 = vadd.f32 %v2066, %v2178
        %v2180 = vpop.f32.mrf.mxu0
        %v2181 = vpop.f32.mrf.mxu0
        %v2182 = vadd.f32 %v2069, %v2181
        %v2183 = vpop.f32.mrf.mxu0
        %2184 = vmatprep.mubr.bf16.mxu0 0
        %2185 = vmatmul.mubr.bf16.gmra.mxu0 %v1824
        %v2186 = vpop.f32.mrf.mxu0
        %v2187 = vadd.f32 %v2074, %v2186
        %v2188 = vpop.f32.mrf.mxu0
        %v2189 = vpop.f32.mrf.mxu0
        %v2190 = vadd.f32 %v2077, %v2189
        %v2191 = vpop.f32.mrf.mxu0
        %2192 = vdwg.mxu0
        %v2193 = vld [vmem:[#allocation2] sm:$0xf]
        %v2194 = vld [vmem:[#allocation2 + $0x4] sm:$0xf]
        %v2195 = vld [vmem:[#allocation2 + $0x8] sm:$0xf]
        %v2196 = vld [vmem:[#allocation2 + $0xc] sm:$0xf]
        %v2197 = vld [vmem:[#allocation2 + $0x10] sm:$0xf]
        %v2198 = vld [vmem:[#allocation2 + $0x14] sm:$0xf]
        %v2199 = vld [vmem:[#allocation2 + $0x18] sm:$0xf]
        %v2200 = vld [vmem:[#allocation2 + $0x1c] sm:$0x7]
        %v2209 = vunpack.c.l.b16 %v2193
        %v2210 = vunpack.c.l.b16 %v2194
        %v2211 = vunpack.c.l.b16 %v2195
        %v2212 = vunpack.c.l.b16 %v2196
        %v2213 = vunpack.c.l.b16 %v2197
        %v2214 = vunpack.c.l.b16 %v2198
        %v2215 = vunpack.c.l.b16 %v2199
        %v2216 = vunpack.c.l.b16 %v2200
        %v2217 = vpack.c.b16 %v2210, %v2209
        %v2218 = vpack.c.b16 %v2212, %v2211
        %v2219 = vpack.c.b16 %v2214, %v2213
        %v2220 = vpack.c.b16 %v2216, %v2215
        %v2222 = vsel %vm1737, %v2217, 0
        %v2225 = vsel %vm1737, %v2218, 0
        %v2228 = vsel %vm1737, %v2219, 0
        %v2231 = vsel %vm1737, %v2220, 0
        %2233 = vmatprep.subr.bf16.mxu0 0
        %2234 = vmatpush1.bf16.msra.mxu0 0
        %2235 = vmatprep.subr.bf16.mxu0 0
        %2236 = vmatpush1.bf16.msra.mxu0 0
        %2237 = vmatprep.subr.bf16.mxu0 0
        %2238 = vmatpush1.bf16.msra.mxu0 0
        %2239 = vmatprep.subr.bf16.mxu0 0
        %2240 = vmatpush1.bf16.msra.mxu0 0
        %2241 = vmatprep.subr.bf16.mxu0 0
        %2242 = vmatpush1.bf16.msra.mxu0 %v1754
        %2243 = vmatprep.subr.bf16.mxu0 0
        %2244 = vmatpush1.bf16.msra.mxu0 %v1707
        %2245 = vmatprep.subr.bf16.mxu0 0
        %2246 = vmatpush1.bf16.msra.mxu0 %v1706
        %2247 = vmatprep.subr.bf16.mxu0 0
        %2248 = vmatpush1.bf16.msra.mxu0 %v1705
        %2249 = vmatprep.subr.bf16.mxu0 0
        %2250 = vmatpush2.bf16.msra.mxu0 0
        %2251 = vmatprep.subr.bf16.mxu0 0
        %2252 = vmatpush2.bf16.msra.mxu0 0
        %2253 = vmatprep.subr.bf16.mxu0 0
        %2254 = vmatpush2.bf16.msra.mxu0 0
        %2255 = vmatprep.subr.bf16.mxu0 0
        %2256 = vmatpush2.bf16.msra.mxu0 0
        %2257 = vmatprep.subr.bf16.mxu0 0
        %2258 = vmatpush2.bf16.msra.mxu0 0
        %2259 = vmatprep.subr.bf16.mxu0 0
        %2260 = vmatpush2.bf16.msra.mxu0 0
        %2261 = vmatprep.subr.bf16.mxu0 0
        %2262 = vmatpush2.bf16.msra.mxu0 0
        %2263 = vmatprep.subr.bf16.mxu0 0
        %2264 = vmatpush2.bf16.msra.mxu0 0
        %2265 = vmatprep.mubr.bf16.mxu0 0
        %2266 = vmatmul.mubr.bf16.gmra.mxu0 %v2222
        %v2267 = vpop.f32.mrf.mxu0
        %v2268 = vadd.f32 0.0, %v2267
        %v2269 = vpop.f32.mrf.mxu0
        %v2270 = vpop.f32.mrf.mxu0
        %v2271 = vadd.f32 0.0, %v2270
        %v2272 = vpop.f32.mrf.mxu0
        %2273 = vmatprep.mubr.bf16.mxu0 0
        %2274 = vmatmul.mubr.bf16.gmra.mxu0 %v2225
        %v2275 = vpop.f32.mrf.mxu0
        %v2276 = vadd.f32 0.0, %v2275
        %v2277 = vpop.f32.mrf.mxu0
        %v2278 = vpop.f32.mrf.mxu0
        %v2279 = vadd.f32 0.0, %v2278
        %v2280 = vpop.f32.mrf.mxu0
        %2281 = vmatprep.mubr.bf16.mxu0 0
        %2282 = vmatmul.mubr.bf16.gmra.mxu0 %v2228
        %v2283 = vpop.f32.mrf.mxu0
        %v2284 = vadd.f32 0.0, %v2283
        %v2285 = vpop.f32.mrf.mxu0
        %v2286 = vpop.f32.mrf.mxu0
        %v2287 = vadd.f32 0.0, %v2286
        %v2288 = vpop.f32.mrf.mxu0
        %2289 = vmatprep.mubr.bf16.mxu0 0
        %2290 = vmatmul.mubr.bf16.gmra.mxu0 %v2231
        %v2291 = vpop.f32.mrf.mxu0
        %v2292 = vadd.f32 0.0, %v2291
        %v2293 = vpop.f32.mrf.mxu0
        %v2294 = vpop.f32.mrf.mxu0
        %v2295 = vadd.f32 0.0, %v2294
        %v2296 = vpop.f32.mrf.mxu0
        %2297 = vdwg.mxu0
        %v2298 = vpack.c.bf16 %v2271, %v2268
        %v2299 = vpack.c.bf16 %v2279, %v2276
        %v2300 = vpack.c.bf16 %v2287, %v2284
        %v2301 = vpack.c.bf16 %v2295, %v2292
        %s2302 = scalar_lea.vmem %s17, 128
        %v2303 = vld [vmem:[%s2302] sm:$0xf]
        %v2304 = vld [vmem:[%s2302 + $0x4] sm:$0xf]
        %v2305 = vld [vmem:[%s2302 + $0x8] sm:$0xf]
        %v2306 = vld [vmem:[%s2302 + $0xc] sm:$0xf]
        %v2307 = vld [vmem:[%s2302 + $0x10] sm:$0xf]
        %v2308 = vld [vmem:[%s2302 + $0x14] sm:$0xf]
        %v2309 = vld [vmem:[%s2302 + $0x18] sm:$0xf]
        %v2310 = vld [vmem:[%s2302 + $0x1c] sm:$0xf]
        %v2311 = vld [vmem:[%s2302 + $0x20] sm:$0xf]
        %v2312 = vld [vmem:[%s2302 + $0x24] sm:$0xf]
        %v2313 = vld [vmem:[%s2302 + $0x28] sm:$0xf]
        %v2314 = vld [vmem:[%s2302 + $0x2c] sm:$0xf]
        %v2315 = vld [vmem:[%s2302 + $0x30] sm:$0xf]
        %v2316 = vld [vmem:[%s2302 + $0x34] sm:$0xf]
        %v2317 = vld [vmem:[%s2302 + $0x38] sm:$0xf]
        %v2318 = vld [vmem:[%s2302 + $0x3c] sm:$0xf]
        %v2335 = vunpack.c.l.b16 %v2303
        %v2336 = vunpack.c.l.b16 %v2304
        %v2337 = vunpack.c.l.b16 %v2305
        %v2338 = vunpack.c.l.b16 %v2306
        %v2339 = vunpack.c.l.b16 %v2307
        %v2340 = vunpack.c.l.b16 %v2308
        %v2341 = vunpack.c.l.b16 %v2309
        %v2342 = vunpack.c.l.b16 %v2310
        %v2343 = vunpack.c.l.b16 %v2311
        %v2344 = vunpack.c.l.b16 %v2312
        %v2345 = vunpack.c.l.b16 %v2313
        %v2346 = vunpack.c.l.b16 %v2314
        %v2347 = vunpack.c.l.b16 %v2315
        %v2348 = vunpack.c.l.b16 %v2316
        %v2349 = vunpack.c.l.b16 %v2317
        %v2350 = vunpack.c.l.b16 %v2318
        %v2351 = vpack.c.b16 %v2336, %v2335
        %v2352 = vpack.c.b16 %v2338, %v2337
        %v2353 = vpack.c.b16 %v2340, %v2339
        %v2354 = vpack.c.b16 %v2342, %v2341
        %v2355 = vpack.c.b16 %v2344, %v2343
        %v2356 = vpack.c.b16 %v2346, %v2345
        %v2357 = vpack.c.b16 %v2348, %v2347
        %v2358 = vpack.c.b16 %v2350, %v2349
        %2367 = vmatprep.subr.bf16.mxu0 0
        %2368 = vmatpush1.bf16.msra.mxu0 %v2358
        %2369 = vmatprep.subr.bf16.mxu0 0
        %2370 = vmatpush1.bf16.msra.mxu0 %v2357
        %2371 = vmatprep.subr.bf16.mxu0 0
        %2372 = vmatpush1.bf16.msra.mxu0 %v2356
        %2373 = vmatprep.subr.bf16.mxu0 0
        %2374 = vmatpush1.bf16.msra.mxu0 %v2355
        %2375 = vmatprep.subr.bf16.mxu0 0
        %2376 = vmatpush1.bf16.msra.mxu0 %v2354
        %2377 = vmatprep.subr.bf16.mxu0 0
        %2378 = vmatpush1.bf16.msra.mxu0 %v2353
        %2379 = vmatprep.subr.bf16.mxu0 0
        %2380 = vmatpush1.bf16.msra.mxu0 %v2352
        %2381 = vmatprep.subr.bf16.mxu0 0
        %2382 = vmatpush1.bf16.msra.mxu0 %v2351
        %2383 = vmatprep.subr.bf16.mxu0 0
        %2384 = vmatpush2.bf16.msra.mxu0 0
        %2385 = vmatprep.subr.bf16.mxu0 0
        %2386 = vmatpush2.bf16.msra.mxu0 0
        %2387 = vmatprep.subr.bf16.mxu0 0
        %2388 = vmatpush2.bf16.msra.mxu0 0
        %2389 = vmatprep.subr.bf16.mxu0 0
        %2390 = vmatpush2.bf16.msra.mxu0 0
        %2391 = vmatprep.subr.bf16.mxu0 0
        %2392 = vmatpush2.bf16.msra.mxu0 0
        %2393 = vmatprep.subr.bf16.mxu0 0
        %2394 = vmatpush2.bf16.msra.mxu0 0
        %2395 = vmatprep.subr.bf16.mxu0 0
        %2396 = vmatpush2.bf16.msra.mxu0 0
        %2397 = vmatprep.subr.bf16.mxu0 0
        %2398 = vmatpush2.bf16.msra.mxu0 0
        %2399 = vmatprep.mubr.bf16.mxu0 0
        %2400 = vmatmul.mubr.bf16.gmra.mxu0 %v2298
        %v2401 = vpop.f32.mrf.mxu0
        %v2402 = vadd.f32 0.0, %v2401
        %v2403 = vpop.f32.mrf.mxu0
        %v2404 = vpop.f32.mrf.mxu0
        %v2405 = vadd.f32 0.0, %v2404
        %v2406 = vpop.f32.mrf.mxu0
        %2407 = vmatprep.mubr.bf16.mxu0 0
        %2408 = vmatmul.mubr.bf16.gmra.mxu0 %v2299
        %v2409 = vpop.f32.mrf.mxu0
        %v2410 = vadd.f32 0.0, %v2409
        %v2411 = vpop.f32.mrf.mxu0
        %v2412 = vpop.f32.mrf.mxu0
        %v2413 = vadd.f32 0.0, %v2412
        %v2414 = vpop.f32.mrf.mxu0
        %2415 = vmatprep.mubr.bf16.mxu0 0
        %2416 = vmatmul.mubr.bf16.gmra.mxu0 %v2300
        %v2417 = vpop.f32.mrf.mxu0
        %v2418 = vadd.f32 0.0, %v2417
        %v2419 = vpop.f32.mrf.mxu0
        %v2420 = vpop.f32.mrf.mxu0
        %v2421 = vadd.f32 0.0, %v2420
        %v2422 = vpop.f32.mrf.mxu0
        %2423 = vmatprep.mubr.bf16.mxu0 0
        %2424 = vmatmul.mubr.bf16.gmra.mxu0 %v2301
        %v2425 = vpop.f32.mrf.mxu0
        %v2426 = vadd.f32 0.0, %v2425
        %v2427 = vpop.f32.mrf.mxu0
        %v2428 = vpop.f32.mrf.mxu0
        %v2429 = vadd.f32 0.0, %v2428
        %v2430 = vpop.f32.mrf.mxu0
        %2431 = vdwg.mxu0
        %v2432 = vadd.f32 %v2163, %v2402
        %v2433 = vadd.f32 %v2166, %v2405
        %v2434 = vadd.f32 %v2171, %v2410
        %v2435 = vadd.f32 %v2174, %v2413
        %v2436 = vadd.f32 %v2179, %v2418
        %v2437 = vadd.f32 %v2182, %v2421
        %v2438 = vadd.f32 %v2187, %v2426
        %v2439 = vadd.f32 %v2190, %v2429
        %v2440 = vld [vmem:[%s19] sm:$0x1]
        %v2442 = vlaneseq
        %v2443 = vshrl.u32 %v2442, 7
        %v2444 = vsub.s32 0, %v2443
        %v2445 = vrot.slane %v2440, %v2444
        %v2447 = vadd.f32 %v2432, %v2445
        %v2448 = vadd.f32 %v2433, %v2445
        %v2449 = vadd.f32 %v2434, %v2445
        %v2450 = vadd.f32 %v2435, %v2445
        %v2451 = vadd.f32 %v2436, %v2445
        %v2452 = vadd.f32 %v2437, %v2445
        %v2453 = vadd.f32 %v2438, %v2445
        %v2454 = vadd.f32 %v2439, %v2445
        %vm2455 = vcmp.gt.f32.partialorder %v2447, 0.0
        %vm2456 = vcmp.gt.f32.partialorder %v2448, 0.0
        %vm2457 = vcmp.gt.f32.partialorder %v2449, 0.0
        %vm2458 = vcmp.gt.f32.partialorder %v2450, 0.0
        %vm2459 = vcmp.gt.f32.partialorder %v2451, 0.0
        %vm2460 = vcmp.gt.f32.partialorder %v2452, 0.0
        %vm2461 = vcmp.gt.f32.partialorder %v2453, 0.0
        %vm2462 = vcmp.gt.f32.partialorder %v2454, 0.0
        %v2463 = vmul.f32 %v2447, 0.01
        %v2464 = vmul.f32 %v2448, 0.01
        %v2465 = vmul.f32 %v2449, 0.01
        %v2466 = vmul.f32 %v2450, 0.01
        %v2467 = vmul.f32 %v2451, 0.01
        %v2468 = vmul.f32 %v2452, 0.01
        %v2469 = vmul.f32 %v2453, 0.01
        %v2470 = vmul.f32 %v2454, 0.01
        %v2471 = vsel %vm2455, %v2447, %v2463
        %v2472 = vsel %vm2456, %v2448, %v2464
        %v2473 = vsel %vm2457, %v2449, %v2465
        %v2474 = vsel %vm2458, %v2450, %v2466
        %v2475 = vsel %vm2459, %v2451, %v2467
        %v2476 = vsel %vm2460, %v2452, %v2468
        %v2477 = vsel %vm2461, %v2453, %v2469
        %v2478 = vsel %vm2462, %v2454, %v2470
        %v2479 = vpack.c.bf16 %v2472, %v2471
        %v2480 = vpack.c.bf16 %v2474, %v2473
        %v2481 = vpack.c.bf16 %v2476, %v2475
        %v2482 = vpack.c.bf16 %v2478, %v2477
        %v2483 = vld [vmem:[%s21] sm:$0xf]
        %v2484 = vld [vmem:[%s21 + $0x4] sm:$0xf]
        %v2485 = vld [vmem:[%s21 + $0x8] sm:$0xf]
        %v2486 = vld [vmem:[%s21 + $0xc] sm:$0x7]
        %v2491 = vunpack.c.l.b16 %v2483
        %v2492 = vunpack.c.l.b16 %v2484
        %v2493 = vunpack.c.l.b16 %v2485
        %v2494 = vunpack.c.l.b16 %v2486
        %v2495 = vpack.c.b16 %v2492, %v2491
        %v2496 = vpack.c.b16 %v2494, %v2493
        %vm2497 = vcmask 498688
        %v2499 = vsel %vm2497, %v2495, 0
        %v2502 = vsel %vm2497, %v2496, 0
        %vm2504 = vcmask 1045504
        %v2505 = vsel %vm2504, 4294967295, 65535
        %v2506 = vsel %vm1523, %v2505, 0
        %v2508 = vand.u32 %v2482, %v2506
        %2510 = vmatprep.subr.bf16.mxu0 0
        %2511 = vmatpush1.bf16.msra.mxu0 0
        %2512 = vmatprep.subr.bf16.mxu0 0
        %2513 = vmatpush1.bf16.msra.mxu0 0
        %2514 = vmatprep.subr.bf16.mxu0 0
        %2515 = vmatpush1.bf16.msra.mxu0 0
        %2516 = vmatprep.subr.bf16.mxu0 0
        %2517 = vmatpush1.bf16.msra.mxu0 0
        %2518 = vmatprep.subr.bf16.mxu0 0
        %2519 = vmatpush1.bf16.msra.mxu0 %v2508
        %2520 = vmatprep.subr.bf16.mxu0 0
        %2521 = vmatpush1.bf16.msra.mxu0 %v2481
        %2522 = vmatprep.subr.bf16.mxu0 0
        %2523 = vmatpush1.bf16.msra.mxu0 %v2480
        %2524 = vmatprep.subr.bf16.mxu0 0
        %2525 = vmatpush1.bf16.msra.mxu0 %v2479
        %2526 = vmatprep.subr.bf16.mxu0 0
        %2527 = vmatpush2.bf16.msra.mxu0 0
        %2528 = vmatprep.subr.bf16.mxu0 0
        %2529 = vmatpush2.bf16.msra.mxu0 0
        %2530 = vmatprep.subr.bf16.mxu0 0
        %2531 = vmatpush2.bf16.msra.mxu0 0
        %2532 = vmatprep.subr.bf16.mxu0 0
        %2533 = vmatpush2.bf16.msra.mxu0 0
        %2534 = vmatprep.subr.bf16.mxu0 0
        %2535 = vmatpush2.bf16.msra.mxu0 0
        %2536 = vmatprep.subr.bf16.mxu0 0
        %2537 = vmatpush2.bf16.msra.mxu0 0
        %2538 = vmatprep.subr.bf16.mxu0 0
        %2539 = vmatpush2.bf16.msra.mxu0 0
        %2540 = vmatprep.subr.bf16.mxu0 0
        %2541 = vmatpush2.bf16.msra.mxu0 0
        %2542 = vmatprep.mubr.bf16.mxu0 0
        %2543 = vmatmul.mubr.bf16.gmra.mxu0 %v2499
        %v2544 = vpop.f32.mrf.mxu0
        %v2545 = vadd.f32 0.0, %v2544
        %v2546 = vpop.f32.mrf.mxu0
        %v2547 = vpop.f32.mrf.mxu0
        %v2548 = vadd.f32 0.0, %v2547
        %v2549 = vpop.f32.mrf.mxu0
        %2550 = vmatprep.mubr.bf16.mxu0 0
        %2551 = vmatmul.mubr.bf16.gmra.mxu0 %v2502
        %v2552 = vpop.f32.mrf.mxu0
        %v2553 = vadd.f32 0.0, %v2552
        %v2554 = vpop.f32.mrf.mxu0
        %v2555 = vpop.f32.mrf.mxu0
        %v2556 = vadd.f32 0.0, %v2555
        %v2557 = vpop.f32.mrf.mxu0
        %2558 = vdwg.mxu0
        %v2559 = vld [vmem:[#allocation5] sm:$0xf]
        %v2560 = vld [vmem:[#allocation5 + $0x4] sm:$0xf]
        %v2561 = vld [vmem:[#allocation5 + $0x8] sm:$0xf]
        %v2562 = vld [vmem:[#allocation5 + $0xc] sm:$0x7]
        %v2567 = vunpack.c.l.b16 %v2559
        %v2568 = vunpack.c.l.b16 %v2560
        %v2569 = vunpack.c.l.b16 %v2561
        %v2570 = vunpack.c.l.b16 %v2562
        %v2571 = vpack.c.b16 %v2568, %v2567
        %v2572 = vpack.c.b16 %v2570, %v2569
        %v2574 = vsel %vm2497, %v2571, 0
        %v2577 = vsel %vm2497, %v2572, 0
        %2579 = vmatprep.subr.bf16.mxu0 0
        %2580 = vmatpush1.bf16.msra.mxu0 0
        %2581 = vmatprep.subr.bf16.mxu0 0
        %2582 = vmatpush1.bf16.msra.mxu0 0
        %2583 = vmatprep.subr.bf16.mxu0 0
        %2584 = vmatpush1.bf16.msra.mxu0 0
        %2585 = vmatprep.subr.bf16.mxu0 0
        %2586 = vmatpush1.bf16.msra.mxu0 0
        %2587 = vmatprep.subr.bf16.mxu0 0
        %2588 = vmatpush1.bf16.msra.mxu0 %v2508
        %2589 = vmatprep.subr.bf16.mxu0 0
        %2590 = vmatpush1.bf16.msra.mxu0 %v2481
        %2591 = vmatprep.subr.bf16.mxu0 0
        %2592 = vmatpush1.bf16.msra.mxu0 %v2480
        %2593 = vmatprep.subr.bf16.mxu0 0
        %2594 = vmatpush1.bf16.msra.mxu0 %v2479
        %2595 = vmatprep.subr.bf16.mxu0 0
        %2596 = vmatpush2.bf16.msra.mxu0 0
        %2597 = vmatprep.subr.bf16.mxu0 0
        %2598 = vmatpush2.bf16.msra.mxu0 0
        %2599 = vmatprep.subr.bf16.mxu0 0
        %2600 = vmatpush2.bf16.msra.mxu0 0
        %2601 = vmatprep.subr.bf16.mxu0 0
        %2602 = vmatpush2.bf16.msra.mxu0 0
        %2603 = vmatprep.subr.bf16.mxu0 0
        %2604 = vmatpush2.bf16.msra.mxu0 0
        %2605 = vmatprep.subr.bf16.mxu0 0
        %2606 = vmatpush2.bf16.msra.mxu0 0
        %2607 = vmatprep.subr.bf16.mxu0 0
        %2608 = vmatpush2.bf16.msra.mxu0 0
        %2609 = vmatprep.subr.bf16.mxu0 0
        %2610 = vmatpush2.bf16.msra.mxu0 0
        %2611 = vmatprep.mubr.bf16.mxu0 0
        %2612 = vmatmul.mubr.bf16.gmra.mxu0 %v2574
        %v2613 = vpop.f32.mrf.mxu0
        %v2614 = vadd.f32 0.0, %v2613
        %v2615 = vpop.f32.mrf.mxu0
        %v2616 = vpop.f32.mrf.mxu0
        %v2617 = vadd.f32 0.0, %v2616
        %v2618 = vpop.f32.mrf.mxu0
        %2619 = vmatprep.mubr.bf16.mxu0 0
        %2620 = vmatmul.mubr.bf16.gmra.mxu0 %v2577
        %v2621 = vpop.f32.mrf.mxu0
        %v2622 = vadd.f32 0.0, %v2621
        %v2623 = vpop.f32.mrf.mxu0
        %v2624 = vpop.f32.mrf.mxu0
        %v2625 = vadd.f32 0.0, %v2624
        %v2626 = vpop.f32.mrf.mxu0
        %2627 = vdwg.mxu0
        %v2628 = vmax.f32 %v2545, %v2614
        %v2629 = vmax.f32 %v2548, %v2617
        %v2630 = vmax.f32 %v2553, %v2622
        %v2631 = vmax.f32 %v2556, %v2625
        %v2632 = vpack.c.bf16 %v2629, %v2628
        %v2633 = vpack.c.bf16 %v2631, %v2630
        %v2634 = vld [vmem:[#allocation7] sm:$0xf]
        %v2635 = vld [vmem:[#allocation7 + $0x4] sm:$0xf]
        %v2636 = vld [vmem:[#allocation7 + $0x8] sm:$0xf]
        %v2637 = vld [vmem:[#allocation7 + $0xc] sm:$0x3]
        %v2642 = vunpack.c.l.b16 %v2634
        %v2643 = vunpack.c.l.b16 %v2635
        %v2644 = vunpack.c.l.b16 %v2636
        %v2645 = vunpack.c.l.b16 %v2637
        %v2646 = vpack.c.b16 %v2643, %v2642
        %v2647 = vpack.c.b16 %v2645, %v2644
        %vm2648 = vcmask 244736
        %v2650 = vsel %vm2648, %v2646, 0
        %v2653 = vsel %vm2648, %v2647, 0
        %v2656 = vsel %vm1523, %v2633, 0
        %2658 = vmatprep.subr.bf16.mxu0 0
        %2659 = vmatpush1.bf16.msra.mxu0 0
        %2660 = vmatprep.subr.bf16.mxu0 0
        %2661 = vmatpush1.bf16.msra.mxu0 0
        %2662 = vmatprep.subr.bf16.mxu0 0
        %2663 = vmatpush1.bf16.msra.mxu0 0
        %2664 = vmatprep.subr.bf16.mxu0 0
        %2665 = vmatpush1.bf16.msra.mxu0 0
        %2666 = vmatprep.subr.bf16.mxu0 0
        %2667 = vmatpush1.bf16.msra.mxu0 0
        %2668 = vmatprep.subr.bf16.mxu0 0
        %2669 = vmatpush1.bf16.msra.mxu0 0
        %2670 = vmatprep.subr.bf16.mxu0 0
        %2671 = vmatpush1.bf16.msra.mxu0 %v2656
        %2672 = vmatprep.subr.bf16.mxu0 0
        %2673 = vmatpush1.bf16.msra.mxu0 %v2632
        %2674 = vmatprep.subr.bf16.mxu0 0
        %2675 = vmatpush2.bf16.msra.mxu0 0
        %2676 = vmatprep.subr.bf16.mxu0 0
        %2677 = vmatpush2.bf16.msra.mxu0 0
        %2678 = vmatprep.subr.bf16.mxu0 0
        %2679 = vmatpush2.bf16.msra.mxu0 0
        %2680 = vmatprep.subr.bf16.mxu0 0
        %2681 = vmatpush2.bf16.msra.mxu0 0
        %2682 = vmatprep.subr.bf16.mxu0 0
        %2683 = vmatpush2.bf16.msra.mxu0 0
        %2684 = vmatprep.subr.bf16.mxu0 0
        %2685 = vmatpush2.bf16.msra.mxu0 0
        %2686 = vmatprep.subr.bf16.mxu0 0
        %2687 = vmatpush2.bf16.msra.mxu0 0
        %2688 = vmatprep.subr.bf16.mxu0 0
        %2689 = vmatpush2.bf16.msra.mxu0 0
        %2690 = vmatprep.mubr.bf16.mxu0 0
        %2691 = vmatmul.mubr.bf16.gmra.mxu0 %v2650
        %v2692 = vpop.f32.mrf.mxu0
        %v2693 = vadd.f32 0.0, %v2692
        %v2694 = vpop.f32.mrf.mxu0
        %v2695 = vpop.f32.mrf.mxu0
        %v2696 = vadd.f32 0.0, %v2695
        %v2697 = vpop.f32.mrf.mxu0
        %2698 = vmatprep.mubr.bf16.mxu0 0
        %2699 = vmatmul.mubr.bf16.gmra.mxu0 %v2653
        %v2700 = vpop.f32.mrf.mxu0
        %v2701 = vadd.f32 0.0, %v2700
        %v2702 = vpop.f32.mrf.mxu0
        %v2703 = vpop.f32.mrf.mxu0
        %v2704 = vadd.f32 0.0, %v2703
        %v2705 = vpop.f32.mrf.mxu0
        %2706 = vdwg.mxu0
        %v2707 = vpack.c.bf16 %v2696, %v2693
        %v2708 = vpack.c.bf16 %v2704, %v2701
        %v2709 = vld [vmem:[%s31] sm:$0xf]
        %v2710 = vld [vmem:[%s31 + $0x4] sm:$0xf]
        %v2711 = vld [vmem:[%s31 + $0x8] sm:$0xf]
        %v2712 = vld [vmem:[%s31 + $0xc] sm:$0xf]
        %v2713 = vld [vmem:[%s31 + $0x10] sm:$0xf]
        %v2714 = vld [vmem:[%s31 + $0x14] sm:$0xf]
        %v2715 = vld [vmem:[%s31 + $0x18] sm:$0xf]
        %v2716 = vld [vmem:[%s31 + $0x1c] sm:$0xf]
        %v2717 = vld [vmem:[%s31 + $0x20] sm:$0xf]
        %v2718 = vld [vmem:[%s31 + $0x24] sm:$0xf]
        %v2719 = vld [vmem:[%s31 + $0x28] sm:$0xf]
        %v2720 = vld [vmem:[%s31 + $0x2c] sm:$0xf]
        %v2721 = vld [vmem:[%s31 + $0x30] sm:$0xf]
        %v2722 = vld [vmem:[%s31 + $0x34] sm:$0xf]
        %v2723 = vld [vmem:[%s31 + $0x38] sm:$0xf]
        %v2724 = vld [vmem:[%s31 + $0x3c] sm:$0xf]
        %v2725 = vld [vmem:[#allocation8] sm:$0xf]
        %v2726 = vld [vmem:[#allocation8 + $0x4] sm:$0xf]
        %v2727 = vld [vmem:[#allocation8 + $0x8] sm:$0xf]
        %v2728 = vld [vmem:[#allocation8 + $0xc] sm:$0x3]
        %v2733 = vunpack.c.l.b16 %v2725
        %v2734 = vunpack.c.l.b16 %v2726
        %v2735 = vunpack.c.l.b16 %v2727
        %v2736 = vunpack.c.l.b16 %v2728
        %v2737 = vpack.c.b16 %v2734, %v2733
        %v2738 = vpack.c.b16 %v2736, %v2735
        %v2740 = vsel %vm2648, %v2737, 0
        %v2743 = vsel %vm2648, %v2738, 0
        %2745 = vmatprep.subr.bf16.mxu0 0
        %2746 = vmatpush1.bf16.msra.mxu0 0
        %2747 = vmatprep.subr.bf16.mxu0 0
        %2748 = vmatpush1.bf16.msra.mxu0 0
        %2749 = vmatprep.subr.bf16.mxu0 0
        %2750 = vmatpush1.bf16.msra.mxu0 0
        %2751 = vmatprep.subr.bf16.mxu0 0
        %2752 = vmatpush1.bf16.msra.mxu0 0
        %2753 = vmatprep.subr.bf16.mxu0 0
        %2754 = vmatpush1.bf16.msra.mxu0 0
        %2755 = vmatprep.subr.bf16.mxu0 0
        %2756 = vmatpush1.bf16.msra.mxu0 0
        %2757 = vmatprep.subr.bf16.mxu0 0
        %2758 = vmatpush1.bf16.msra.mxu0 %v2656
        %2759 = vmatprep.subr.bf16.mxu0 0
        %2760 = vmatpush1.bf16.msra.mxu0 %v2632
        %2761 = vmatprep.subr.bf16.mxu0 0
        %2762 = vmatpush2.bf16.msra.mxu0 0
        %2763 = vmatprep.subr.bf16.mxu0 0
        %2764 = vmatpush2.bf16.msra.mxu0 0
        %2765 = vmatprep.subr.bf16.mxu0 0
        %2766 = vmatpush2.bf16.msra.mxu0 0
        %2767 = vmatprep.subr.bf16.mxu0 0
        %2768 = vmatpush2.bf16.msra.mxu0 0
        %2769 = vmatprep.subr.bf16.mxu0 0
        %2770 = vmatpush2.bf16.msra.mxu0 0
        %2771 = vmatprep.subr.bf16.mxu0 0
        %2772 = vmatpush2.bf16.msra.mxu0 0
        %2773 = vmatprep.subr.bf16.mxu0 0
        %2774 = vmatpush2.bf16.msra.mxu0 0
        %2775 = vmatprep.subr.bf16.mxu0 0
        %2776 = vmatpush2.bf16.msra.mxu0 0
        %2777 = vmatprep.mubr.bf16.mxu0 0
        %2778 = vmatmul.mubr.bf16.gmra.mxu0 %v2740
        %v2779 = vpop.f32.mrf.mxu0
        %v2780 = vadd.f32 0.0, %v2779
        %v2781 = vpop.f32.mrf.mxu0
        %v2782 = vpop.f32.mrf.mxu0
        %v2783 = vadd.f32 0.0, %v2782
        %v2784 = vpop.f32.mrf.mxu0
        %2785 = vmatprep.mubr.bf16.mxu0 0
        %2786 = vmatmul.mubr.bf16.gmra.mxu0 %v2743
        %v2787 = vpop.f32.mrf.mxu0
        %v2788 = vadd.f32 0.0, %v2787
        %v2789 = vpop.f32.mrf.mxu0
        %v2790 = vpop.f32.mrf.mxu0
        %v2791 = vadd.f32 0.0, %v2790
        %v2792 = vpop.f32.mrf.mxu0
        %2793 = vdwg.mxu0
        %v2794 = vpack.c.bf16 %v2783, %v2780
        %v2795 = vpack.c.bf16 %v2791, %v2788
        %s2796 = scalar_lea.vmem %s31, 64
        %v2797 = vld [vmem:[%s2796] sm:$0xf]
        %v2798 = vld [vmem:[%s2796 + $0x4] sm:$0xf]
        %v2799 = vld [vmem:[%s2796 + $0x8] sm:$0xf]
        %v2800 = vld [vmem:[%s2796 + $0xc] sm:$0xf]
        %v2801 = vld [vmem:[%s2796 + $0x10] sm:$0xf]
        %v2802 = vld [vmem:[%s2796 + $0x14] sm:$0xf]
        %v2803 = vld [vmem:[%s2796 + $0x18] sm:$0xf]
        %v2804 = vld [vmem:[%s2796 + $0x1c] sm:$0xf]
        %v2805 = vld [vmem:[%s2796 + $0x20] sm:$0xf]
        %v2806 = vld [vmem:[%s2796 + $0x24] sm:$0xf]
        %v2807 = vld [vmem:[%s2796 + $0x28] sm:$0xf]
        %v2808 = vld [vmem:[%s2796 + $0x2c] sm:$0xf]
        %v2809 = vld [vmem:[%s2796 + $0x30] sm:$0xf]
        %v2810 = vld [vmem:[%s2796 + $0x34] sm:$0xf]
        %v2811 = vld [vmem:[%s2796 + $0x38] sm:$0xf]
        %v2812 = vld [vmem:[%s2796 + $0x3c] sm:$0xf]
        %v2829 = vunpack.c.l.b16 %v2797
        %v2830 = vunpack.c.l.b16 %v2798
        %v2831 = vunpack.c.l.b16 %v2799
        %v2832 = vunpack.c.l.b16 %v2800
        %v2833 = vunpack.c.l.b16 %v2801
        %v2834 = vunpack.c.l.b16 %v2802
        %v2835 = vunpack.c.l.b16 %v2803
        %v2836 = vunpack.c.l.b16 %v2804
        %v2837 = vunpack.c.l.b16 %v2805
        %v2838 = vunpack.c.l.b16 %v2806
        %v2839 = vunpack.c.l.b16 %v2807
        %v2840 = vunpack.c.l.b16 %v2808
        %v2841 = vunpack.c.l.b16 %v2809
        %v2842 = vunpack.c.l.b16 %v2810
        %v2843 = vunpack.c.l.b16 %v2811
        %v2844 = vunpack.c.l.b16 %v2812
        %v2845 = vpack.c.b16 %v2830, %v2829
        %v2846 = vpack.c.b16 %v2832, %v2831
        %v2847 = vpack.c.b16 %v2834, %v2833
        %v2848 = vpack.c.b16 %v2836, %v2835
        %v2849 = vpack.c.b16 %v2838, %v2837
        %v2850 = vpack.c.b16 %v2840, %v2839
        %v2851 = vpack.c.b16 %v2842, %v2841
        %v2852 = vpack.c.b16 %v2844, %v2843
        %2861 = vmatprep.subr.bf16.mxu0 0
        %2862 = vmatpush1.bf16.msra.mxu0 %v2852
        %2863 = vmatprep.subr.bf16.mxu0 0
        %2864 = vmatpush1.bf16.msra.mxu0 %v2851
        %2865 = vmatprep.subr.bf16.mxu0 0
        %2866 = vmatpush1.bf16.msra.mxu0 %v2850
        %2867 = vmatprep.subr.bf16.mxu0 0
        %2868 = vmatpush1.bf16.msra.mxu0 %v2849
        %2869 = vmatprep.subr.bf16.mxu0 0
        %2870 = vmatpush1.bf16.msra.mxu0 %v2848
        %2871 = vmatprep.subr.bf16.mxu0 0
        %2872 = vmatpush1.bf16.msra.mxu0 %v2847
        %2873 = vmatprep.subr.bf16.mxu0 0
        %2874 = vmatpush1.bf16.msra.mxu0 %v2846
        %2875 = vmatprep.subr.bf16.mxu0 0
        %2876 = vmatpush1.bf16.msra.mxu0 %v2845
        %2877 = vmatprep.subr.bf16.mxu0 0
        %2878 = vmatpush2.bf16.msra.mxu0 0
        %2879 = vmatprep.subr.bf16.mxu0 0
        %2880 = vmatpush2.bf16.msra.mxu0 0
        %2881 = vmatprep.subr.bf16.mxu0 0
        %2882 = vmatpush2.bf16.msra.mxu0 0
        %2883 = vmatprep.subr.bf16.mxu0 0
        %2884 = vmatpush2.bf16.msra.mxu0 0
        %2885 = vmatprep.subr.bf16.mxu0 0
        %2886 = vmatpush2.bf16.msra.mxu0 0
        %2887 = vmatprep.subr.bf16.mxu0 0
        %2888 = vmatpush2.bf16.msra.mxu0 0
        %2889 = vmatprep.subr.bf16.mxu0 0
        %2890 = vmatpush2.bf16.msra.mxu0 0
        %2891 = vmatprep.subr.bf16.mxu0 0
        %2892 = vmatpush2.bf16.msra.mxu0 0
        %2893 = vmatprep.mubr.bf16.mxu0 0
        %2894 = vmatmul.mubr.bf16.gmra.mxu0 %v2794
        %v2895 = vpop.f32.mrf.mxu0
        %v2896 = vadd.f32 0.0, %v2895
        %v2897 = vpop.f32.mrf.mxu0
        %v2898 = vpop.f32.mrf.mxu0
        %v2899 = vadd.f32 0.0, %v2898
        %v2900 = vpop.f32.mrf.mxu0
        %2901 = vmatprep.mubr.bf16.mxu0 0
        %2902 = vmatmul.mubr.bf16.gmra.mxu0 %v2795
        %v2903 = vpop.f32.mrf.mxu0
        %v2904 = vadd.f32 0.0, %v2903
        %v2905 = vpop.f32.mrf.mxu0
        %v2906 = vpop.f32.mrf.mxu0
        %v2907 = vadd.f32 0.0, %v2906
        %v2908 = vpop.f32.mrf.mxu0
        %2909 = vdwg.mxu0
        %v2926 = vunpack.c.l.b16 %v2709
        %v2927 = vunpack.c.l.b16 %v2710
        %v2928 = vunpack.c.l.b16 %v2711
        %v2929 = vunpack.c.l.b16 %v2712
        %v2930 = vunpack.c.l.b16 %v2713
        %v2931 = vunpack.c.l.b16 %v2714
        %v2932 = vunpack.c.l.b16 %v2715
        %v2933 = vunpack.c.l.b16 %v2716
        %v2934 = vunpack.c.l.b16 %v2717
        %v2935 = vunpack.c.l.b16 %v2718
        %v2936 = vunpack.c.l.b16 %v2719
        %v2937 = vunpack.c.l.b16 %v2720
        %v2938 = vunpack.c.l.b16 %v2721
        %v2939 = vunpack.c.l.b16 %v2722
        %v2940 = vunpack.c.l.b16 %v2723
        %v2941 = vunpack.c.l.b16 %v2724
        %v2942 = vpack.c.b16 %v2927, %v2926
        %v2943 = vpack.c.b16 %v2929, %v2928
        %v2944 = vpack.c.b16 %v2931, %v2930
        %v2945 = vpack.c.b16 %v2933, %v2932
        %v2946 = vpack.c.b16 %v2935, %v2934
        %v2947 = vpack.c.b16 %v2937, %v2936
        %v2948 = vpack.c.b16 %v2939, %v2938
        %v2949 = vpack.c.b16 %v2941, %v2940
        %2958 = vmatprep.subr.bf16.mxu0 0
        %2959 = vmatpush1.bf16.msra.mxu0 %v2949
        %2960 = vmatprep.subr.bf16.mxu0 0
        %2961 = vmatpush1.bf16.msra.mxu0 %v2948
        %2962 = vmatprep.subr.bf16.mxu0 0
        %2963 = vmatpush1.bf16.msra.mxu0 %v2947
        %2964 = vmatprep.subr.bf16.mxu0 0
        %2965 = vmatpush1.bf16.msra.mxu0 %v2946
        %2966 = vmatprep.subr.bf16.mxu0 0
        %2967 = vmatpush1.bf16.msra.mxu0 %v2945
        %2968 = vmatprep.subr.bf16.mxu0 0
        %2969 = vmatpush1.bf16.msra.mxu0 %v2944
        %2970 = vmatprep.subr.bf16.mxu0 0
        %2971 = vmatpush1.bf16.msra.mxu0 %v2943
        %2972 = vmatprep.subr.bf16.mxu0 0
        %2973 = vmatpush1.bf16.msra.mxu0 %v2942
        %2974 = vmatprep.subr.bf16.mxu0 0
        %2975 = vmatpush2.bf16.msra.mxu0 0
        %2976 = vmatprep.subr.bf16.mxu0 0
        %2977 = vmatpush2.bf16.msra.mxu0 0
        %2978 = vmatprep.subr.bf16.mxu0 0
        %2979 = vmatpush2.bf16.msra.mxu0 0
        %2980 = vmatprep.subr.bf16.mxu0 0
        %2981 = vmatpush2.bf16.msra.mxu0 0
        %2982 = vmatprep.subr.bf16.mxu0 0
        %2983 = vmatpush2.bf16.msra.mxu0 0
        %2984 = vmatprep.subr.bf16.mxu0 0
        %2985 = vmatpush2.bf16.msra.mxu0 0
        %2986 = vmatprep.subr.bf16.mxu0 0
        %2987 = vmatpush2.bf16.msra.mxu0 0
        %2988 = vmatprep.subr.bf16.mxu0 0
        %2989 = vmatpush2.bf16.msra.mxu0 0
        %2990 = vmatprep.mubr.bf16.mxu0 0
        %2991 = vmatmul.mubr.bf16.gmra.mxu0 %v2707
        %v2992 = vpop.f32.mrf.mxu0
        %v2993 = vadd.f32 %v2896, %v2992
        %v2994 = vpop.f32.mrf.mxu0
        %v2995 = vpop.f32.mrf.mxu0
        %v2996 = vadd.f32 %v2899, %v2995
        %v2997 = vpop.f32.mrf.mxu0
        %2998 = vmatprep.mubr.bf16.mxu0 0
        %2999 = vmatmul.mubr.bf16.gmra.mxu0 %v2708
        %v3000 = vpop.f32.mrf.mxu0
        %v3001 = vadd.f32 %v2904, %v3000
        %v3002 = vpop.f32.mrf.mxu0
        %v3003 = vpop.f32.mrf.mxu0
        %v3004 = vadd.f32 %v2907, %v3003
        %v3005 = vpop.f32.mrf.mxu0
        %3006 = vdwg.mxu0
        %v3007 = vld [vmem:[#allocation10] sm:$0xf]
        %v3008 = vld [vmem:[#allocation10 + $0x4] sm:$0xf]
        %v3009 = vld [vmem:[#allocation10 + $0x8] sm:$0xf]
        %v3010 = vld [vmem:[#allocation10 + $0xc] sm:$0x3]
        %v3015 = vunpack.c.l.b16 %v3007
        %v3016 = vunpack.c.l.b16 %v3008
        %v3017 = vunpack.c.l.b16 %v3009
        %v3018 = vunpack.c.l.b16 %v3010
        %v3019 = vpack.c.b16 %v3016, %v3015
        %v3020 = vpack.c.b16 %v3018, %v3017
        %v3022 = vsel %vm2648, %v3019, 0
        %v3025 = vsel %vm2648, %v3020, 0
        %3027 = vmatprep.subr.bf16.mxu0 0
        %3028 = vmatpush1.bf16.msra.mxu0 0
        %3029 = vmatprep.subr.bf16.mxu0 0
        %3030 = vmatpush1.bf16.msra.mxu0 0
        %3031 = vmatprep.subr.bf16.mxu0 0
        %3032 = vmatpush1.bf16.msra.mxu0 0
        %3033 = vmatprep.subr.bf16.mxu0 0
        %3034 = vmatpush1.bf16.msra.mxu0 0
        %3035 = vmatprep.subr.bf16.mxu0 0
        %3036 = vmatpush1.bf16.msra.mxu0 0
        %3037 = vmatprep.subr.bf16.mxu0 0
        %3038 = vmatpush1.bf16.msra.mxu0 0
        %3039 = vmatprep.subr.bf16.mxu0 0
        %3040 = vmatpush1.bf16.msra.mxu0 %v2656
        %3041 = vmatprep.subr.bf16.mxu0 0
        %3042 = vmatpush1.bf16.msra.mxu0 %v2632
        %3043 = vmatprep.subr.bf16.mxu0 0
        %3044 = vmatpush2.bf16.msra.mxu0 0
        %3045 = vmatprep.subr.bf16.mxu0 0
        %3046 = vmatpush2.bf16.msra.mxu0 0
        %3047 = vmatprep.subr.bf16.mxu0 0
        %3048 = vmatpush2.bf16.msra.mxu0 0
        %3049 = vmatprep.subr.bf16.mxu0 0
        %3050 = vmatpush2.bf16.msra.mxu0 0
        %3051 = vmatprep.subr.bf16.mxu0 0
        %3052 = vmatpush2.bf16.msra.mxu0 0
        %3053 = vmatprep.subr.bf16.mxu0 0
        %3054 = vmatpush2.bf16.msra.mxu0 0
        %3055 = vmatprep.subr.bf16.mxu0 0
        %3056 = vmatpush2.bf16.msra.mxu0 0
        %3057 = vmatprep.subr.bf16.mxu0 0
        %3058 = vmatpush2.bf16.msra.mxu0 0
        %3059 = vmatprep.mubr.bf16.mxu0 0
        %3060 = vmatmul.mubr.bf16.gmra.mxu0 %v3022
        %v3061 = vpop.f32.mrf.mxu0
        %v3062 = vadd.f32 0.0, %v3061
        %v3063 = vpop.f32.mrf.mxu0
        %v3064 = vpop.f32.mrf.mxu0
        %v3065 = vadd.f32 0.0, %v3064
        %v3066 = vpop.f32.mrf.mxu0
        %3067 = vmatprep.mubr.bf16.mxu0 0
        %3068 = vmatmul.mubr.bf16.gmra.mxu0 %v3025
        %v3069 = vpop.f32.mrf.mxu0
        %v3070 = vadd.f32 0.0, %v3069
        %v3071 = vpop.f32.mrf.mxu0
        %v3072 = vpop.f32.mrf.mxu0
        %v3073 = vadd.f32 0.0, %v3072
        %v3074 = vpop.f32.mrf.mxu0
        %3075 = vdwg.mxu0
        %v3076 = vpack.c.bf16 %v3065, %v3062
        %v3077 = vpack.c.bf16 %v3073, %v3070
        %s3078 = scalar_lea.vmem %s31, 128
        %v3079 = vld [vmem:[%s3078] sm:$0xf]
        %v3080 = vld [vmem:[%s3078 + $0x4] sm:$0xf]
        %v3081 = vld [vmem:[%s3078 + $0x8] sm:$0xf]
        %v3082 = vld [vmem:[%s3078 + $0xc] sm:$0xf]
        %v3083 = vld [vmem:[%s3078 + $0x10] sm:$0xf]
        %v3084 = vld [vmem:[%s3078 + $0x14] sm:$0xf]
        %v3085 = vld [vmem:[%s3078 + $0x18] sm:$0xf]
        %v3086 = vld [vmem:[%s3078 + $0x1c] sm:$0xf]
        %v3087 = vld [vmem:[%s3078 + $0x20] sm:$0xf]
        %v3088 = vld [vmem:[%s3078 + $0x24] sm:$0xf]
        %v3089 = vld [vmem:[%s3078 + $0x28] sm:$0xf]
        %v3090 = vld [vmem:[%s3078 + $0x2c] sm:$0xf]
        %v3091 = vld [vmem:[%s3078 + $0x30] sm:$0xf]
        %v3092 = vld [vmem:[%s3078 + $0x34] sm:$0xf]
        %v3093 = vld [vmem:[%s3078 + $0x38] sm:$0xf]
        %v3094 = vld [vmem:[%s3078 + $0x3c] sm:$0xf]
        %v3111 = vunpack.c.l.b16 %v3079
        %v3112 = vunpack.c.l.b16 %v3080
        %v3113 = vunpack.c.l.b16 %v3081
        %v3114 = vunpack.c.l.b16 %v3082
        %v3115 = vunpack.c.l.b16 %v3083
        %v3116 = vunpack.c.l.b16 %v3084
        %v3117 = vunpack.c.l.b16 %v3085
        %v3118 = vunpack.c.l.b16 %v3086
        %v3119 = vunpack.c.l.b16 %v3087
        %v3120 = vunpack.c.l.b16 %v3088
        %v3121 = vunpack.c.l.b16 %v3089
        %v3122 = vunpack.c.l.b16 %v3090
        %v3123 = vunpack.c.l.b16 %v3091
        %v3124 = vunpack.c.l.b16 %v3092
        %v3125 = vunpack.c.l.b16 %v3093
        %v3126 = vunpack.c.l.b16 %v3094
        %v3127 = vpack.c.b16 %v3112, %v3111
        %v3128 = vpack.c.b16 %v3114, %v3113
        %v3129 = vpack.c.b16 %v3116, %v3115
        %v3130 = vpack.c.b16 %v3118, %v3117
        %v3131 = vpack.c.b16 %v3120, %v3119
        %v3132 = vpack.c.b16 %v3122, %v3121
        %v3133 = vpack.c.b16 %v3124, %v3123
        %v3134 = vpack.c.b16 %v3126, %v3125
        %3143 = vmatprep.subr.bf16.mxu0 0
        %3144 = vmatpush1.bf16.msra.mxu0 %v3134
        %3145 = vmatprep.subr.bf16.mxu0 0
        %3146 = vmatpush1.bf16.msra.mxu0 %v3133
        %3147 = vmatprep.subr.bf16.mxu0 0
        %3148 = vmatpush1.bf16.msra.mxu0 %v3132
        %3149 = vmatprep.subr.bf16.mxu0 0
        %3150 = vmatpush1.bf16.msra.mxu0 %v3131
        %3151 = vmatprep.subr.bf16.mxu0 0
        %3152 = vmatpush1.bf16.msra.mxu0 %v3130
        %3153 = vmatprep.subr.bf16.mxu0 0
        %3154 = vmatpush1.bf16.msra.mxu0 %v3129
        %3155 = vmatprep.subr.bf16.mxu0 0
        %3156 = vmatpush1.bf16.msra.mxu0 %v3128
        %3157 = vmatprep.subr.bf16.mxu0 0
        %3158 = vmatpush1.bf16.msra.mxu0 %v3127
        %3159 = vmatprep.subr.bf16.mxu0 0
        %3160 = vmatpush2.bf16.msra.mxu0 0
        %3161 = vmatprep.subr.bf16.mxu0 0
        %3162 = vmatpush2.bf16.msra.mxu0 0
        %3163 = vmatprep.subr.bf16.mxu0 0
        %3164 = vmatpush2.bf16.msra.mxu0 0
        %3165 = vmatprep.subr.bf16.mxu0 0
        %3166 = vmatpush2.bf16.msra.mxu0 0
        %3167 = vmatprep.subr.bf16.mxu0 0
        %3168 = vmatpush2.bf16.msra.mxu0 0
        %3169 = vmatprep.subr.bf16.mxu0 0
        %3170 = vmatpush2.bf16.msra.mxu0 0
        %3171 = vmatprep.subr.bf16.mxu0 0
        %3172 = vmatpush2.bf16.msra.mxu0 0
        %3173 = vmatprep.subr.bf16.mxu0 0
        %3174 = vmatpush2.bf16.msra.mxu0 0
        %3175 = vmatprep.mubr.bf16.mxu0 0
        %3176 = vmatmul.mubr.bf16.gmra.mxu0 %v3076
        %v3177 = vpop.f32.mrf.mxu0
        %v3178 = vadd.f32 0.0, %v3177
        %v3179 = vpop.f32.mrf.mxu0
        %v3180 = vpop.f32.mrf.mxu0
        %v3181 = vadd.f32 0.0, %v3180
        %v3182 = vpop.f32.mrf.mxu0
        %3183 = vmatprep.mubr.bf16.mxu0 0
        %3184 = vmatmul.mubr.bf16.gmra.mxu0 %v3077
        %v3185 = vpop.f32.mrf.mxu0
        %v3186 = vadd.f32 0.0, %v3185
        %v3187 = vpop.f32.mrf.mxu0
        %v3188 = vpop.f32.mrf.mxu0
        %v3189 = vadd.f32 0.0, %v3188
        %v3190 = vpop.f32.mrf.mxu0
        %3191 = vdwg.mxu0
        %v3192 = vadd.f32 %v2993, %v3178
        %v3193 = vadd.f32 %v2996, %v3181
        %v3194 = vadd.f32 %v3001, %v3186
        %v3195 = vadd.f32 %v3004, %v3189
        %v3196 = vld [vmem:[%s33] sm:$0x1]
        %v3198 = vlaneseq
        %v3199 = vshrl.u32 %v3198, 7
        %v3200 = vsub.s32 0, %v3199
        %v3201 = vrot.slane %v3196, %v3200
        %v3203 = vadd.f32 %v3192, %v3201
        %v3204 = vadd.f32 %v3193, %v3201
        %v3205 = vadd.f32 %v3194, %v3201
        %v3206 = vadd.f32 %v3195, %v3201
        %vm3207 = vcmp.gt.f32.partialorder %v3203, 0.0
        %vm3208 = vcmp.gt.f32.partialorder %v3204, 0.0
        %vm3209 = vcmp.gt.f32.partialorder %v3205, 0.0
        %vm3210 = vcmp.gt.f32.partialorder %v3206, 0.0
        %v3211 = vmul.f32 %v3203, 0.01
        %v3212 = vmul.f32 %v3204, 0.01
        %v3213 = vmul.f32 %v3205, 0.01
        %v3214 = vmul.f32 %v3206, 0.01
        %v3215 = vsel %vm3207, %v3203, %v3211
        %v3216 = vsel %vm3208, %v3204, %v3212
        %v3217 = vsel %vm3209, %v3205, %v3213
        %v3218 = vsel %vm3210, %v3206, %v3214
        %v3219 = vpack.c.bf16 %v3216, %v3215
        %v3220 = vpack.c.bf16 %v3218, %v3217
        %v3221 = vld [vmem:[#allocation11] sm:$0xf]
        %v3222 = vld [vmem:[#allocation11 + $0x4] sm:$0x7]
        %v3225 = vunpack.c.l.b16 %v3221
        %v3226 = vunpack.c.l.b16 %v3222
        %v3227 = vpack.c.b16 %v3226, %v3225
        %vm3228 = vcmask 228352
        %v3230 = vsel %vm3228, %v3227, 0
        %v3233 = vsel %vm2504, %v3220, 0
        %3235 = vmatprep.subr.bf16.mxu0 0
        %3236 = vmatpush1.bf16.msra.mxu0 0
        %3237 = vmatprep.subr.bf16.mxu0 0
        %3238 = vmatpush1.bf16.msra.mxu0 0
        %3239 = vmatprep.subr.bf16.mxu0 0
        %3240 = vmatpush1.bf16.msra.mxu0 0
        %3241 = vmatprep.subr.bf16.mxu0 0
        %3242 = vmatpush1.bf16.msra.mxu0 0
        %3243 = vmatprep.subr.bf16.mxu0 0
        %3244 = vmatpush1.bf16.msra.mxu0 0
        %3245 = vmatprep.subr.bf16.mxu0 0
        %3246 = vmatpush1.bf16.msra.mxu0 0
        %3247 = vmatprep.subr.bf16.mxu0 0
        %3248 = vmatpush1.bf16.msra.mxu0 %v3233
        %3249 = vmatprep.subr.bf16.mxu0 0
        %3250 = vmatpush1.bf16.msra.mxu0 %v3219
        %3251 = vmatprep.subr.bf16.mxu0 0
        %3252 = vmatpush2.bf16.msra.mxu0 0
        %3253 = vmatprep.subr.bf16.mxu0 0
        %3254 = vmatpush2.bf16.msra.mxu0 0
        %3255 = vmatprep.subr.bf16.mxu0 0
        %3256 = vmatpush2.bf16.msra.mxu0 0
        %3257 = vmatprep.subr.bf16.mxu0 0
        %3258 = vmatpush2.bf16.msra.mxu0 0
        %3259 = vmatprep.subr.bf16.mxu0 0
        %3260 = vmatpush2.bf16.msra.mxu0 0
        %3261 = vmatprep.subr.bf16.mxu0 0
        %3262 = vmatpush2.bf16.msra.mxu0 0
        %3263 = vmatprep.subr.bf16.mxu0 0
        %3264 = vmatpush2.bf16.msra.mxu0 0
        %3265 = vmatprep.subr.bf16.mxu0 0
        %3266 = vmatpush2.bf16.msra.mxu0 0
        %3267 = vmatprep.mubr.bf16.mxu0 0
        %3268 = vmatmul.mubr.bf16.gmra.mxu0 %v3230
        %v3269 = vpop.f32.mrf.mxu0
        %v3270 = vadd.f32 0.0, %v3269
        %v3271 = vpop.f32.mrf.mxu0
        %v3272 = vpop.f32.mrf.mxu0
        %v3273 = vadd.f32 0.0, %v3272
        %v3274 = vpop.f32.mrf.mxu0
        %3275 = vdwg.mxu0
        %v3276 = vld [vmem:[#allocation13] sm:$0xf]
        %v3277 = vld [vmem:[#allocation13 + $0x4] sm:$0x7]
        %v3280 = vunpack.c.l.b16 %v3276
        %v3281 = vunpack.c.l.b16 %v3277
        %v3282 = vpack.c.b16 %v3281, %v3280
        %v3284 = vsel %vm3228, %v3282, 0
        %3286 = vmatprep.subr.bf16.mxu0 0
        %3287 = vmatpush1.bf16.msra.mxu0 0
        %3288 = vmatprep.subr.bf16.mxu0 0
        %3289 = vmatpush1.bf16.msra.mxu0 0
        %3290 = vmatprep.subr.bf16.mxu0 0
        %3291 = vmatpush1.bf16.msra.mxu0 0
        %3292 = vmatprep.subr.bf16.mxu0 0
        %3293 = vmatpush1.bf16.msra.mxu0 0
        %3294 = vmatprep.subr.bf16.mxu0 0
        %3295 = vmatpush1.bf16.msra.mxu0 0
        %3296 = vmatprep.subr.bf16.mxu0 0
        %3297 = vmatpush1.bf16.msra.mxu0 0
        %3298 = vmatprep.subr.bf16.mxu0 0
        %3299 = vmatpush1.bf16.msra.mxu0 %v3233
        %3300 = vmatprep.subr.bf16.mxu0 0
        %3301 = vmatpush1.bf16.msra.mxu0 %v3219
        %3302 = vmatprep.subr.bf16.mxu0 0
        %3303 = vmatpush2.bf16.msra.mxu0 0
        %3304 = vmatprep.subr.bf16.mxu0 0
        %3305 = vmatpush2.bf16.msra.mxu0 0
        %3306 = vmatprep.subr.bf16.mxu0 0
        %3307 = vmatpush2.bf16.msra.mxu0 0
        %3308 = vmatprep.subr.bf16.mxu0 0
        %3309 = vmatpush2.bf16.msra.mxu0 0
        %3310 = vmatprep.subr.bf16.mxu0 0
        %3311 = vmatpush2.bf16.msra.mxu0 0
        %3312 = vmatprep.subr.bf16.mxu0 0
        %3313 = vmatpush2.bf16.msra.mxu0 0
        %3314 = vmatprep.subr.bf16.mxu0 0
        %3315 = vmatpush2.bf16.msra.mxu0 0
        %3316 = vmatprep.subr.bf16.mxu0 0
        %3317 = vmatpush2.bf16.msra.mxu0 0
        %3318 = vmatprep.mubr.bf16.mxu0 0
        %3319 = vmatmul.mubr.bf16.gmra.mxu0 %v3284
        %v3320 = vpop.f32.mrf.mxu0
        %v3321 = vadd.f32 0.0, %v3320
        %v3322 = vpop.f32.mrf.mxu0
        %v3323 = vpop.f32.mrf.mxu0
        %v3324 = vadd.f32 0.0, %v3323
        %v3325 = vpop.f32.mrf.mxu0
        %3326 = vdwg.mxu0
        %v3327 = vmax.f32 %v3270, %v3321
        %v3328 = vmax.f32 %v3273, %v3324
        %v3329 = vpack.c.bf16 %v3328, %v3327
        %v3330 = vld [vmem:[#allocation14] sm:$0xf]
        %v3331 = vld [vmem:[#allocation14 + $0x4] sm:$0x3]
        %v3334 = vunpack.c.l.b16 %v3330
        %v3335 = vunpack.c.l.b16 %v3331
        %v3336 = vpack.c.b16 %v3335, %v3334
        %vm3337 = vcmask 113664
        %v3339 = vsel %vm3337, %v3336, 0
        %v3342 = vsel %vm1523, %v3329, 0
        %3344 = vmatprep.subr.bf16.mxu0 0
        %3345 = vmatpush1.bf16.msra.mxu0 0
        %3346 = vmatprep.subr.bf16.mxu0 0
        %3347 = vmatpush1.bf16.msra.mxu0 0
        %3348 = vmatprep.subr.bf16.mxu0 0
        %3349 = vmatpush1.bf16.msra.mxu0 0
        %3350 = vmatprep.subr.bf16.mxu0 0
        %3351 = vmatpush1.bf16.msra.mxu0 0
        %3352 = vmatprep.subr.bf16.mxu0 0
        %3353 = vmatpush1.bf16.msra.mxu0 0
        %3354 = vmatprep.subr.bf16.mxu0 0
        %3355 = vmatpush1.bf16.msra.mxu0 0
        %3356 = vmatprep.subr.bf16.mxu0 0
        %3357 = vmatpush1.bf16.msra.mxu0 0
        %3358 = vmatprep.subr.bf16.mxu0 0
        %3359 = vmatpush1.bf16.msra.mxu0 %v3342
        %3360 = vmatprep.subr.bf16.mxu0 0
        %3361 = vmatpush2.bf16.msra.mxu0 0
        %3362 = vmatprep.subr.bf16.mxu0 0
        %3363 = vmatpush2.bf16.msra.mxu0 0
        %3364 = vmatprep.subr.bf16.mxu0 0
        %3365 = vmatpush2.bf16.msra.mxu0 0
        %3366 = vmatprep.subr.bf16.mxu0 0
        %3367 = vmatpush2.bf16.msra.mxu0 0
        %3368 = vmatprep.subr.bf16.mxu0 0
        %3369 = vmatpush2.bf16.msra.mxu0 0
        %3370 = vmatprep.subr.bf16.mxu0 0
        %3371 = vmatpush2.bf16.msra.mxu0 0
        %3372 = vmatprep.subr.bf16.mxu0 0
        %3373 = vmatpush2.bf16.msra.mxu0 0
        %3374 = vmatprep.subr.bf16.mxu0 0
        %3375 = vmatpush2.bf16.msra.mxu0 0
        %3376 = vmatprep.mubr.bf16.mxu0 0
        %3377 = vmatmul.mubr.bf16.gmra.mxu0 %v3339
        %v3378 = vpop.f32.mrf.mxu0
        %v3379 = vadd.f32 0.0, %v3378
        %v3380 = vpop.f32.mrf.mxu0
        %v3381 = vpop.f32.mrf.mxu0
        %v3382 = vadd.f32 0.0, %v3381
        %v3383 = vpop.f32.mrf.mxu0
        %3384 = vdwg.mxu0
        %v3385 = vpack.c.bf16 %v3382, %v3379
        %v3386 = vld [vmem:[#allocation19] sm:$0xf]
        %v3387 = vld [vmem:[#allocation19 + $0x4] sm:$0xf]
        %v3388 = vld [vmem:[#allocation19 + $0x8] sm:$0xf]
        %v3389 = vld [vmem:[#allocation19 + $0xc] sm:$0xf]
        %v3390 = vld [vmem:[#allocation19 + $0x10] sm:$0xf]
        %v3391 = vld [vmem:[#allocation19 + $0x14] sm:$0xf]
        %v3392 = vld [vmem:[#allocation19 + $0x18] sm:$0xf]
        %v3393 = vld [vmem:[#allocation19 + $0x1c] sm:$0xf]
        %v3394 = vld [vmem:[#allocation19 + $0x20] sm:$0xf]
        %v3395 = vld [vmem:[#allocation19 + $0x24] sm:$0xf]
        %v3396 = vld [vmem:[#allocation19 + $0x28] sm:$0xf]
        %v3397 = vld [vmem:[#allocation19 + $0x2c] sm:$0xf]
        %v3398 = vld [vmem:[#allocation19 + $0x30] sm:$0xf]
        %v3399 = vld [vmem:[#allocation19 + $0x34] sm:$0xf]
        %v3400 = vld [vmem:[#allocation19 + $0x38] sm:$0xf]
        %v3401 = vld [vmem:[#allocation19 + $0x3c] sm:$0xf]
        %v3402 = vld [vmem:[#allocation16] sm:$0xf]
        %v3403 = vld [vmem:[#allocation16 + $0x4] sm:$0x3]
        %v3406 = vunpack.c.l.b16 %v3402
        %v3407 = vunpack.c.l.b16 %v3403
        %v3408 = vpack.c.b16 %v3407, %v3406
        %v3410 = vsel %vm3337, %v3408, 0
        %3412 = vmatprep.subr.bf16.mxu0 0
        %3413 = vmatpush1.bf16.msra.mxu0 0
        %3414 = vmatprep.subr.bf16.mxu0 0
        %3415 = vmatpush1.bf16.msra.mxu0 0
        %3416 = vmatprep.subr.bf16.mxu0 0
        %3417 = vmatpush1.bf16.msra.mxu0 0
        %3418 = vmatprep.subr.bf16.mxu0 0
        %3419 = vmatpush1.bf16.msra.mxu0 0
        %3420 = vmatprep.subr.bf16.mxu0 0
        %3421 = vmatpush1.bf16.msra.mxu0 0
        %3422 = vmatprep.subr.bf16.mxu0 0
        %3423 = vmatpush1.bf16.msra.mxu0 0
        %3424 = vmatprep.subr.bf16.mxu0 0
        %3425 = vmatpush1.bf16.msra.mxu0 0
        %3426 = vmatprep.subr.bf16.mxu0 0
        %3427 = vmatpush1.bf16.msra.mxu0 %v3342
        %3428 = vmatprep.subr.bf16.mxu0 0
        %3429 = vmatpush2.bf16.msra.mxu0 0
        %3430 = vmatprep.subr.bf16.mxu0 0
        %3431 = vmatpush2.bf16.msra.mxu0 0
        %3432 = vmatprep.subr.bf16.mxu0 0
        %3433 = vmatpush2.bf16.msra.mxu0 0
        %3434 = vmatprep.subr.bf16.mxu0 0
        %3435 = vmatpush2.bf16.msra.mxu0 0
        %3436 = vmatprep.subr.bf16.mxu0 0
        %3437 = vmatpush2.bf16.msra.mxu0 0
        %3438 = vmatprep.subr.bf16.mxu0 0
        %3439 = vmatpush2.bf16.msra.mxu0 0
        %3440 = vmatprep.subr.bf16.mxu0 0
        %3441 = vmatpush2.bf16.msra.mxu0 0
        %3442 = vmatprep.subr.bf16.mxu0 0
        %3443 = vmatpush2.bf16.msra.mxu0 0
        %3444 = vmatprep.mubr.bf16.mxu0 0
        %3445 = vmatmul.mubr.bf16.gmra.mxu0 %v3410
        %v3446 = vpop.f32.mrf.mxu0
        %v3447 = vadd.f32 0.0, %v3446
        %v3448 = vpop.f32.mrf.mxu0
        %v3449 = vpop.f32.mrf.mxu0
        %v3450 = vadd.f32 0.0, %v3449
        %v3451 = vpop.f32.mrf.mxu0
        %3452 = vdwg.mxu0
        %v3453 = vpack.c.bf16 %v3450, %v3447
        %s3454 = scalar_lea.vmem [#allocation19], 64
        %v3455 = vld [vmem:[%s3454] sm:$0xf]
        %v3456 = vld [vmem:[%s3454 + $0x4] sm:$0xf]
        %v3457 = vld [vmem:[%s3454 + $0x8] sm:$0xf]
        %v3458 = vld [vmem:[%s3454 + $0xc] sm:$0xf]
        %v3459 = vld [vmem:[%s3454 + $0x10] sm:$0xf]
        %v3460 = vld [vmem:[%s3454 + $0x14] sm:$0xf]
        %v3461 = vld [vmem:[%s3454 + $0x18] sm:$0xf]
        %v3462 = vld [vmem:[%s3454 + $0x1c] sm:$0xf]
        %v3463 = vld [vmem:[%s3454 + $0x20] sm:$0xf]
        %v3464 = vld [vmem:[%s3454 + $0x24] sm:$0xf]
        %v3465 = vld [vmem:[%s3454 + $0x28] sm:$0xf]
        %v3466 = vld [vmem:[%s3454 + $0x2c] sm:$0xf]
        %v3467 = vld [vmem:[%s3454 + $0x30] sm:$0xf]
        %v3468 = vld [vmem:[%s3454 + $0x34] sm:$0xf]
        %v3469 = vld [vmem:[%s3454 + $0x38] sm:$0xf]
        %v3470 = vld [vmem:[%s3454 + $0x3c] sm:$0xf]
        %v3487 = vunpack.c.l.b16 %v3455
        %v3488 = vunpack.c.l.b16 %v3456
        %v3489 = vunpack.c.l.b16 %v3457
        %v3490 = vunpack.c.l.b16 %v3458
        %v3491 = vunpack.c.l.b16 %v3459
        %v3492 = vunpack.c.l.b16 %v3460
        %v3493 = vunpack.c.l.b16 %v3461
        %v3494 = vunpack.c.l.b16 %v3462
        %v3495 = vunpack.c.l.b16 %v3463
        %v3496 = vunpack.c.l.b16 %v3464
        %v3497 = vunpack.c.l.b16 %v3465
        %v3498 = vunpack.c.l.b16 %v3466
        %v3499 = vunpack.c.l.b16 %v3467
        %v3500 = vunpack.c.l.b16 %v3468
        %v3501 = vunpack.c.l.b16 %v3469
        %v3502 = vunpack.c.l.b16 %v3470
        %v3503 = vpack.c.b16 %v3488, %v3487
        %v3504 = vpack.c.b16 %v3490, %v3489
        %v3505 = vpack.c.b16 %v3492, %v3491
        %v3506 = vpack.c.b16 %v3494, %v3493
        %v3507 = vpack.c.b16 %v3496, %v3495
        %v3508 = vpack.c.b16 %v3498, %v3497
        %v3509 = vpack.c.b16 %v3500, %v3499
        %v3510 = vpack.c.b16 %v3502, %v3501
        %3519 = vmatprep.subr.bf16.mxu0 0
        %3520 = vmatpush1.bf16.msra.mxu0 %v3510
        %3521 = vmatprep.subr.bf16.mxu0 0
        %3522 = vmatpush1.bf16.msra.mxu0 %v3509
        %3523 = vmatprep.subr.bf16.mxu0 0
        %3524 = vmatpush1.bf16.msra.mxu0 %v3508
        %3525 = vmatprep.subr.bf16.mxu0 0
        %3526 = vmatpush1.bf16.msra.mxu0 %v3507
        %3527 = vmatprep.subr.bf16.mxu0 0
        %3528 = vmatpush1.bf16.msra.mxu0 %v3506
        %3529 = vmatprep.subr.bf16.mxu0 0
        %3530 = vmatpush1.bf16.msra.mxu0 %v3505
        %3531 = vmatprep.subr.bf16.mxu0 0
        %3532 = vmatpush1.bf16.msra.mxu0 %v3504
        %3533 = vmatprep.subr.bf16.mxu0 0
        %3534 = vmatpush1.bf16.msra.mxu0 %v3503
        %3535 = vmatprep.subr.bf16.mxu0 0
        %3536 = vmatpush2.bf16.msra.mxu0 0
        %3537 = vmatprep.subr.bf16.mxu0 0
        %3538 = vmatpush2.bf16.msra.mxu0 0
        %3539 = vmatprep.subr.bf16.mxu0 0
        %3540 = vmatpush2.bf16.msra.mxu0 0
        %3541 = vmatprep.subr.bf16.mxu0 0
        %3542 = vmatpush2.bf16.msra.mxu0 0
        %3543 = vmatprep.subr.bf16.mxu0 0
        %3544 = vmatpush2.bf16.msra.mxu0 0
        %3545 = vmatprep.subr.bf16.mxu0 0
        %3546 = vmatpush2.bf16.msra.mxu0 0
        %3547 = vmatprep.subr.bf16.mxu0 0
        %3548 = vmatpush2.bf16.msra.mxu0 0
        %3549 = vmatprep.subr.bf16.mxu0 0
        %3550 = vmatpush2.bf16.msra.mxu0 0
        %3551 = vmatprep.mubr.bf16.mxu0 0
        %3552 = vmatmul.mubr.bf16.gmra.mxu0 %v3453
        %v3553 = vpop.f32.mrf.mxu0
        %v3554 = vadd.f32 0.0, %v3553
        %v3555 = vpop.f32.mrf.mxu0
        %v3556 = vpop.f32.mrf.mxu0
        %v3557 = vadd.f32 0.0, %v3556
        %v3558 = vpop.f32.mrf.mxu0
        %3559 = vdwg.mxu0
        %v3576 = vunpack.c.l.b16 %v3386
        %v3577 = vunpack.c.l.b16 %v3387
        %v3578 = vunpack.c.l.b16 %v3388
        %v3579 = vunpack.c.l.b16 %v3389
        %v3580 = vunpack.c.l.b16 %v3390
        %v3581 = vunpack.c.l.b16 %v3391
        %v3582 = vunpack.c.l.b16 %v3392
        %v3583 = vunpack.c.l.b16 %v3393
        %v3584 = vunpack.c.l.b16 %v3394
        %v3585 = vunpack.c.l.b16 %v3395
        %v3586 = vunpack.c.l.b16 %v3396
        %v3587 = vunpack.c.l.b16 %v3397
        %v3588 = vunpack.c.l.b16 %v3398
        %v3589 = vunpack.c.l.b16 %v3399
        %v3590 = vunpack.c.l.b16 %v3400
        %v3591 = vunpack.c.l.b16 %v3401
        %v3592 = vpack.c.b16 %v3577, %v3576
        %v3593 = vpack.c.b16 %v3579, %v3578
        %v3594 = vpack.c.b16 %v3581, %v3580
        %v3595 = vpack.c.b16 %v3583, %v3582
        %v3596 = vpack.c.b16 %v3585, %v3584
        %v3597 = vpack.c.b16 %v3587, %v3586
        %v3598 = vpack.c.b16 %v3589, %v3588
        %v3599 = vpack.c.b16 %v3591, %v3590
        %3608 = vmatprep.subr.bf16.mxu0 0
        %3609 = vmatpush1.bf16.msra.mxu0 %v3599
        %3610 = vmatprep.subr.bf16.mxu0 0
        %3611 = vmatpush1.bf16.msra.mxu0 %v3598
        %3612 = vmatprep.subr.bf16.mxu0 0
        %3613 = vmatpush1.bf16.msra.mxu0 %v3597
        %3614 = vmatprep.subr.bf16.mxu0 0
        %3615 = vmatpush1.bf16.msra.mxu0 %v3596
        %3616 = vmatprep.subr.bf16.mxu0 0
        %3617 = vmatpush1.bf16.msra.mxu0 %v3595
        %3618 = vmatprep.subr.bf16.mxu0 0
        %3619 = vmatpush1.bf16.msra.mxu0 %v3594
        %3620 = vmatprep.subr.bf16.mxu0 0
        %3621 = vmatpush1.bf16.msra.mxu0 %v3593
        %3622 = vmatprep.subr.bf16.mxu0 0
        %3623 = vmatpush1.bf16.msra.mxu0 %v3592
        %3624 = vmatprep.subr.bf16.mxu0 0
        %3625 = vmatpush2.bf16.msra.mxu0 0
        %3626 = vmatprep.subr.bf16.mxu0 0
        %3627 = vmatpush2.bf16.msra.mxu0 0
        %3628 = vmatprep.subr.bf16.mxu0 0
        %3629 = vmatpush2.bf16.msra.mxu0 0
        %3630 = vmatprep.subr.bf16.mxu0 0
        %3631 = vmatpush2.bf16.msra.mxu0 0
        %3632 = vmatprep.subr.bf16.mxu0 0
        %3633 = vmatpush2.bf16.msra.mxu0 0
        %3634 = vmatprep.subr.bf16.mxu0 0
        %3635 = vmatpush2.bf16.msra.mxu0 0
        %3636 = vmatprep.subr.bf16.mxu0 0
        %3637 = vmatpush2.bf16.msra.mxu0 0
        %3638 = vmatprep.subr.bf16.mxu0 0
        %3639 = vmatpush2.bf16.msra.mxu0 0
        %3640 = vmatprep.mubr.bf16.mxu0 0
        %3641 = vmatmul.mubr.bf16.gmra.mxu0 %v3385
        %v3642 = vpop.f32.mrf.mxu0
        %v3643 = vadd.f32 %v3554, %v3642
        %v3644 = vpop.f32.mrf.mxu0
        %v3645 = vpop.f32.mrf.mxu0
        %v3646 = vadd.f32 %v3557, %v3645
        %v3647 = vpop.f32.mrf.mxu0
        %3648 = vdwg.mxu0
        %v3649 = vld [vmem:[#allocation17] sm:$0xf]
        %v3650 = vld [vmem:[#allocation17 + $0x4] sm:$0x3]
        %v3653 = vunpack.c.l.b16 %v3649
        %v3654 = vunpack.c.l.b16 %v3650
        %v3655 = vpack.c.b16 %v3654, %v3653
        %v3657 = vsel %vm3337, %v3655, 0
        %3659 = vmatprep.subr.bf16.mxu0 0
        %3660 = vmatpush1.bf16.msra.mxu0 0
        %3661 = vmatprep.subr.bf16.mxu0 0
        %3662 = vmatpush1.bf16.msra.mxu0 0
        %3663 = vmatprep.subr.bf16.mxu0 0
        %3664 = vmatpush1.bf16.msra.mxu0 0
        %3665 = vmatprep.subr.bf16.mxu0 0
        %3666 = vmatpush1.bf16.msra.mxu0 0
        %3667 = vmatprep.subr.bf16.mxu0 0
        %3668 = vmatpush1.bf16.msra.mxu0 0
        %3669 = vmatprep.subr.bf16.mxu0 0
        %3670 = vmatpush1.bf16.msra.mxu0 0
        %3671 = vmatprep.subr.bf16.mxu0 0
        %3672 = vmatpush1.bf16.msra.mxu0 0
        %3673 = vmatprep.subr.bf16.mxu0 0
        %3674 = vmatpush1.bf16.msra.mxu0 %v3342
        %3675 = vmatprep.subr.bf16.mxu0 0
        %3676 = vmatpush2.bf16.msra.mxu0 0
        %3677 = vmatprep.subr.bf16.mxu0 0
        %3678 = vmatpush2.bf16.msra.mxu0 0
        %3679 = vmatprep.subr.bf16.mxu0 0
        %3680 = vmatpush2.bf16.msra.mxu0 0
        %3681 = vmatprep.subr.bf16.mxu0 0
        %3682 = vmatpush2.bf16.msra.mxu0 0
        %3683 = vmatprep.subr.bf16.mxu0 0
        %3684 = vmatpush2.bf16.msra.mxu0 0
        %3685 = vmatprep.subr.bf16.mxu0 0
        %3686 = vmatpush2.bf16.msra.mxu0 0
        %3687 = vmatprep.subr.bf16.mxu0 0
        %3688 = vmatpush2.bf16.msra.mxu0 0
        %3689 = vmatprep.subr.bf16.mxu0 0
        %3690 = vmatpush2.bf16.msra.mxu0 0
        %3691 = vmatprep.mubr.bf16.mxu0 0
        %3692 = vmatmul.mubr.bf16.gmra.mxu0 %v3657
        %v3693 = vpop.f32.mrf.mxu0
        %v3694 = vadd.f32 0.0, %v3693
        %v3695 = vpop.f32.mrf.mxu0
        %v3696 = vpop.f32.mrf.mxu0
        %v3697 = vadd.f32 0.0, %v3696
        %v3698 = vpop.f32.mrf.mxu0
        %3699 = vdwg.mxu0
        %v3700 = vpack.c.bf16 %v3697, %v3694
        %s3701 = scalar_lea.vmem [#allocation19], 128
        %v3702 = vld [vmem:[%s3701] sm:$0xf]
        %v3703 = vld [vmem:[%s3701 + $0x4] sm:$0xf]
        %v3704 = vld [vmem:[%s3701 + $0x8] sm:$0xf]
        %v3705 = vld [vmem:[%s3701 + $0xc] sm:$0xf]
        %v3706 = vld [vmem:[%s3701 + $0x10] sm:$0xf]
        %v3707 = vld [vmem:[%s3701 + $0x14] sm:$0xf]
        %v3708 = vld [vmem:[%s3701 + $0x18] sm:$0xf]
        %v3709 = vld [vmem:[%s3701 + $0x1c] sm:$0xf]
        %v3710 = vld [vmem:[%s3701 + $0x20] sm:$0xf]
        %v3711 = vld [vmem:[%s3701 + $0x24] sm:$0xf]
        %v3712 = vld [vmem:[%s3701 + $0x28] sm:$0xf]
        %v3713 = vld [vmem:[%s3701 + $0x2c] sm:$0xf]
        %v3714 = vld [vmem:[%s3701 + $0x30] sm:$0xf]
        %v3715 = vld [vmem:[%s3701 + $0x34] sm:$0xf]
        %v3716 = vld [vmem:[%s3701 + $0x38] sm:$0xf]
        %v3717 = vld [vmem:[%s3701 + $0x3c] sm:$0xf]
        %v3734 = vunpack.c.l.b16 %v3702
        %v3735 = vunpack.c.l.b16 %v3703
        %v3736 = vunpack.c.l.b16 %v3704
        %v3737 = vunpack.c.l.b16 %v3705
        %v3738 = vunpack.c.l.b16 %v3706
        %v3739 = vunpack.c.l.b16 %v3707
        %v3740 = vunpack.c.l.b16 %v3708
        %v3741 = vunpack.c.l.b16 %v3709
        %v3742 = vunpack.c.l.b16 %v3710
        %v3743 = vunpack.c.l.b16 %v3711
        %v3744 = vunpack.c.l.b16 %v3712
        %v3745 = vunpack.c.l.b16 %v3713
        %v3746 = vunpack.c.l.b16 %v3714
        %v3747 = vunpack.c.l.b16 %v3715
        %v3748 = vunpack.c.l.b16 %v3716
        %v3749 = vunpack.c.l.b16 %v3717
        %v3750 = vpack.c.b16 %v3735, %v3734
        %v3751 = vpack.c.b16 %v3737, %v3736
        %v3752 = vpack.c.b16 %v3739, %v3738
        %v3753 = vpack.c.b16 %v3741, %v3740
        %v3754 = vpack.c.b16 %v3743, %v3742
        %v3755 = vpack.c.b16 %v3745, %v3744
        %v3756 = vpack.c.b16 %v3747, %v3746
        %v3757 = vpack.c.b16 %v3749, %v3748
        %3766 = vmatprep.subr.bf16.mxu0 0
        %3767 = vmatpush1.bf16.msra.mxu0 %v3757
        %3768 = vmatprep.subr.bf16.mxu0 0
        %3769 = vmatpush1.bf16.msra.mxu0 %v3756
        %3770 = vmatprep.subr.bf16.mxu0 0
        %3771 = vmatpush1.bf16.msra.mxu0 %v3755
        %3772 = vmatprep.subr.bf16.mxu0 0
        %3773 = vmatpush1.bf16.msra.mxu0 %v3754
        %3774 = vmatprep.subr.bf16.mxu0 0
        %3775 = vmatpush1.bf16.msra.mxu0 %v3753
        %3776 = vmatprep.subr.bf16.mxu0 0
        %3777 = vmatpush1.bf16.msra.mxu0 %v3752
        %3778 = vmatprep.subr.bf16.mxu0 0
        %3779 = vmatpush1.bf16.msra.mxu0 %v3751
        %3780 = vmatprep.subr.bf16.mxu0 0
        %3781 = vmatpush1.bf16.msra.mxu0 %v3750
        %3782 = vmatprep.subr.bf16.mxu0 0
        %3783 = vmatpush2.bf16.msra.mxu0 0
        %3784 = vmatprep.subr.bf16.mxu0 0
        %3785 = vmatpush2.bf16.msra.mxu0 0
        %3786 = vmatprep.subr.bf16.mxu0 0
        %3787 = vmatpush2.bf16.msra.mxu0 0
        %3788 = vmatprep.subr.bf16.mxu0 0
        %3789 = vmatpush2.bf16.msra.mxu0 0
        %3790 = vmatprep.subr.bf16.mxu0 0
        %3791 = vmatpush2.bf16.msra.mxu0 0
        %3792 = vmatprep.subr.bf16.mxu0 0
        %3793 = vmatpush2.bf16.msra.mxu0 0
        %3794 = vmatprep.subr.bf16.mxu0 0
        %3795 = vmatpush2.bf16.msra.mxu0 0
        %3796 = vmatprep.subr.bf16.mxu0 0
        %3797 = vmatpush2.bf16.msra.mxu0 0
        %3798 = vmatprep.mubr.bf16.mxu0 0
        %3799 = vmatmul.mubr.bf16.gmra.mxu0 %v3700
        %v3800 = vpop.f32.mrf.mxu0
        %v3801 = vadd.f32 0.0, %v3800
        %v3802 = vpop.f32.mrf.mxu0
        %v3803 = vpop.f32.mrf.mxu0
        %v3804 = vadd.f32 0.0, %v3803
        %v3805 = vpop.f32.mrf.mxu0
        %3806 = vdwg.mxu0
        %v3807 = vadd.f32 %v3643, %v3801
        %v3808 = vadd.f32 %v3646, %v3804
        %v3809 = vld [vmem:[%s47] sm:$0x1]
        %v3811 = vlaneseq
        %v3812 = vshrl.u32 %v3811, 7
        %v3813 = vsub.s32 0, %v3812
        %v3814 = vrot.slane %v3809, %v3813
        %v3816 = vadd.f32 %v3807, %v3814
        %v3817 = vadd.f32 %v3808, %v3814
        %vm3818 = vcmp.gt.f32.partialorder %v3816, 0.0
        %vm3819 = vcmp.gt.f32.partialorder %v3817, 0.0
        %v3820 = vmul.f32 %v3816, 0.01
        %v3821 = vmul.f32 %v3817, 0.01
        %v3822 = vsel %vm3818, %v3816, %v3820
        %v3823 = vsel %vm3819, %v3817, %v3821
        %v3824 = vpack.c.bf16 %v3823, %v3822
        %v3825 = vld [vmem:[#allocation20] sm:$0x7]
        %vm3826 = vcmask 97280
        %v3828 = vsel %vm3826, %v3825, 0
        %v3831 = vsel %vm2504, %v3824, 0
        %3833 = vmatprep.subr.bf16.mxu0 0
        %3834 = vmatpush1.bf16.msra.mxu0 0
        %3835 = vmatprep.subr.bf16.mxu0 0
        %3836 = vmatpush1.bf16.msra.mxu0 0
        %3837 = vmatprep.subr.bf16.mxu0 0
        %3838 = vmatpush1.bf16.msra.mxu0 0
        %3839 = vmatprep.subr.bf16.mxu0 0
        %3840 = vmatpush1.bf16.msra.mxu0 0
        %3841 = vmatprep.subr.bf16.mxu0 0
        %3842 = vmatpush1.bf16.msra.mxu0 0
        %3843 = vmatprep.subr.bf16.mxu0 0
        %3844 = vmatpush1.bf16.msra.mxu0 0
        %3845 = vmatprep.subr.bf16.mxu0 0
        %3846 = vmatpush1.bf16.msra.mxu0 0
        %3847 = vmatprep.subr.bf16.mxu0 0
        %3848 = vmatpush1.bf16.msra.mxu0 %v3831
        %3849 = vmatprep.subr.bf16.mxu0 0
        %3850 = vmatpush2.bf16.msra.mxu0 0
        %3851 = vmatprep.subr.bf16.mxu0 0
        %3852 = vmatpush2.bf16.msra.mxu0 0
        %3853 = vmatprep.subr.bf16.mxu0 0
        %3854 = vmatpush2.bf16.msra.mxu0 0
        %3855 = vmatprep.subr.bf16.mxu0 0
        %3856 = vmatpush2.bf16.msra.mxu0 0
        %3857 = vmatprep.subr.bf16.mxu0 0
        %3858 = vmatpush2.bf16.msra.mxu0 0
        %3859 = vmatprep.subr.bf16.mxu0 0
        %3860 = vmatpush2.bf16.msra.mxu0 0
        %3861 = vmatprep.subr.bf16.mxu0 0
        %3862 = vmatpush2.bf16.msra.mxu0 0
        %3863 = vmatprep.subr.bf16.mxu0 0
        %3864 = vmatpush2.bf16.msra.mxu0 0
        %3865 = vmatprep.mubr.bf16.mxu0 0
        %3866 = vmatmul.mubr.bf16.gmra.mxu0 %v3828
        %v3867 = vpop.f32.mrf.mxu0
        %v3868 = vadd.f32 0.0, %v3867
        %v3869 = vpop.f32.mrf.mxu0
        %v3870 = vpop.f32.mrf.mxu0
        %v3871 = vpop.f32.mrf.mxu0
        %3872 = vdwg.mxu0
        %v3873 = vld [vmem:[#allocation22] sm:$0x7]
        %v3875 = vsel %vm3826, %v3873, 0
        %3877 = vmatprep.subr.bf16.mxu0 0
        %3878 = vmatpush1.bf16.msra.mxu0 0
        %3879 = vmatprep.subr.bf16.mxu0 0
        %3880 = vmatpush1.bf16.msra.mxu0 0
        %3881 = vmatprep.subr.bf16.mxu0 0
        %3882 = vmatpush1.bf16.msra.mxu0 0
        %3883 = vmatprep.subr.bf16.mxu0 0
        %3884 = vmatpush1.bf16.msra.mxu0 0
        %3885 = vmatprep.subr.bf16.mxu0 0
        %3886 = vmatpush1.bf16.msra.mxu0 0
        %3887 = vmatprep.subr.bf16.mxu0 0
        %3888 = vmatpush1.bf16.msra.mxu0 0
        %3889 = vmatprep.subr.bf16.mxu0 0
        %3890 = vmatpush1.bf16.msra.mxu0 0
        %3891 = vmatprep.subr.bf16.mxu0 0
        %3892 = vmatpush1.bf16.msra.mxu0 %v3831
        %3893 = vmatprep.subr.bf16.mxu0 0
        %3894 = vmatpush2.bf16.msra.mxu0 0
        %3895 = vmatprep.subr.bf16.mxu0 0
        %3896 = vmatpush2.bf16.msra.mxu0 0
        %3897 = vmatprep.subr.bf16.mxu0 0
        %3898 = vmatpush2.bf16.msra.mxu0 0
        %3899 = vmatprep.subr.bf16.mxu0 0
        %3900 = vmatpush2.bf16.msra.mxu0 0
        %3901 = vmatprep.subr.bf16.mxu0 0
        %3902 = vmatpush2.bf16.msra.mxu0 0
        %3903 = vmatprep.subr.bf16.mxu0 0
        %3904 = vmatpush2.bf16.msra.mxu0 0
        %3905 = vmatprep.subr.bf16.mxu0 0
        %3906 = vmatpush2.bf16.msra.mxu0 0
        %3907 = vmatprep.subr.bf16.mxu0 0
        %3908 = vmatpush2.bf16.msra.mxu0 0
        %3909 = vmatprep.mubr.bf16.mxu0 0
        %3910 = vmatmul.mubr.bf16.gmra.mxu0 %v3875
        %v3911 = vpop.f32.mrf.mxu0
        %v3912 = vadd.f32 0.0, %v3911
        %v3913 = vpop.f32.mrf.mxu0
        %v3914 = vpop.f32.mrf.mxu0
        %v3915 = vpop.f32.mrf.mxu0
        %3916 = vdwg.mxu0
        %v3917 = vmax.f32 %v3868, %v3912
        %v3918 = vpack.c.bf16 %v3917, %v3917
        %v3919 = vld [vmem:[#allocation23] sm:$0x3]
        %vm3920 = vcmask 48128
        %v3922 = vsel %vm3920, %v3919, 0
        %vm3924 = vcmask 1042432
        %v3926 = vsel %vm3924, %v3918, 0
        %3928 = vmatprep.subr.bf16.mxu0 0
        %3929 = vmatpush1.bf16.msra.mxu0 0
        %3930 = vmatprep.subr.bf16.mxu0 0
        %3931 = vmatpush1.bf16.msra.mxu0 0
        %3932 = vmatprep.subr.bf16.mxu0 0
        %3933 = vmatpush1.bf16.msra.mxu0 0
        %3934 = vmatprep.subr.bf16.mxu0 0
        %3935 = vmatpush1.bf16.msra.mxu0 0
        %3936 = vmatprep.subr.bf16.mxu0 0
        %3937 = vmatpush1.bf16.msra.mxu0 0
        %3938 = vmatprep.subr.bf16.mxu0 0
        %3939 = vmatpush1.bf16.msra.mxu0 0
        %3940 = vmatprep.subr.bf16.mxu0 0
        %3941 = vmatpush1.bf16.msra.mxu0 0
        %3942 = vmatprep.subr.bf16.mxu0 0
        %3943 = vmatpush1.bf16.msra.mxu0 %v3926
        %3944 = vmatprep.subr.bf16.mxu0 0
        %3945 = vmatpush2.bf16.msra.mxu0 0
        %3946 = vmatprep.subr.bf16.mxu0 0
        %3947 = vmatpush2.bf16.msra.mxu0 0
        %3948 = vmatprep.subr.bf16.mxu0 0
        %3949 = vmatpush2.bf16.msra.mxu0 0
        %3950 = vmatprep.subr.bf16.mxu0 0
        %3951 = vmatpush2.bf16.msra.mxu0 0
        %3952 = vmatprep.subr.bf16.mxu0 0
        %3953 = vmatpush2.bf16.msra.mxu0 0
        %3954 = vmatprep.subr.bf16.mxu0 0
        %3955 = vmatpush2.bf16.msra.mxu0 0
        %3956 = vmatprep.subr.bf16.mxu0 0
        %3957 = vmatpush2.bf16.msra.mxu0 0
        %3958 = vmatprep.subr.bf16.mxu0 0
        %3959 = vmatpush2.bf16.msra.mxu0 0
        %3960 = vmatprep.mubr.bf16.mxu0 0
        %3961 = vmatmul.mubr.bf16.gmra.mxu0 %v3922
        %v3962 = vpop.f32.mrf.mxu0
        %v3963 = vadd.f32 0.0, %v3962
        %v3964 = vpop.f32.mrf.mxu0
        %v3965 = vpop.f32.mrf.mxu0
        %v3966 = vpop.f32.mrf.mxu0
        %3967 = vdwg.mxu0
        %v3968 = vpack.c.bf16 %v3963, %v3963
        %v3969 = vld [vmem:[#allocation28] sm:$0xf]
        %v3970 = vld [vmem:[#allocation28 + $0x4] sm:$0xf]
        %v3971 = vld [vmem:[#allocation28 + $0x8] sm:$0xf]
        %v3972 = vld [vmem:[#allocation28 + $0xc] sm:$0xf]
        %v3973 = vld [vmem:[#allocation28 + $0x10] sm:$0xf]
        %v3974 = vld [vmem:[#allocation28 + $0x14] sm:$0xf]
        %v3975 = vld [vmem:[#allocation28 + $0x18] sm:$0xf]
        %v3976 = vld [vmem:[#allocation28 + $0x1c] sm:$0xf]
        %v3977 = vld [vmem:[#allocation28 + $0x20] sm:$0xf]
        %v3978 = vld [vmem:[#allocation28 + $0x24] sm:$0xf]
        %v3979 = vld [vmem:[#allocation28 + $0x28] sm:$0xf]
        %v3980 = vld [vmem:[#allocation28 + $0x2c] sm:$0xf]
        %v3981 = vld [vmem:[#allocation28 + $0x30] sm:$0xf]
        %v3982 = vld [vmem:[#allocation28 + $0x34] sm:$0xf]
        %v3983 = vld [vmem:[#allocation28 + $0x38] sm:$0xf]
        %v3984 = vld [vmem:[#allocation28 + $0x3c] sm:$0xf]
        %v3985 = vld [vmem:[#allocation25] sm:$0x3]
        %v3987 = vsel %vm3920, %v3985, 0
        %3989 = vmatprep.subr.bf16.mxu0 0
        %3990 = vmatpush1.bf16.msra.mxu0 0
        %3991 = vmatprep.subr.bf16.mxu0 0
        %3992 = vmatpush1.bf16.msra.mxu0 0
        %3993 = vmatprep.subr.bf16.mxu0 0
        %3994 = vmatpush1.bf16.msra.mxu0 0
        %3995 = vmatprep.subr.bf16.mxu0 0
        %3996 = vmatpush1.bf16.msra.mxu0 0
        %3997 = vmatprep.subr.bf16.mxu0 0
        %3998 = vmatpush1.bf16.msra.mxu0 0
        %3999 = vmatprep.subr.bf16.mxu0 0
        %4000 = vmatpush1.bf16.msra.mxu0 0
        %4001 = vmatprep.subr.bf16.mxu0 0
        %4002 = vmatpush1.bf16.msra.mxu0 0
        %4003 = vmatprep.subr.bf16.mxu0 0
        %4004 = vmatpush1.bf16.msra.mxu0 %v3926
        %4005 = vmatprep.subr.bf16.mxu0 0
        %4006 = vmatpush2.bf16.msra.mxu0 0
        %4007 = vmatprep.subr.bf16.mxu0 0
        %4008 = vmatpush2.bf16.msra.mxu0 0
        %4009 = vmatprep.subr.bf16.mxu0 0
        %4010 = vmatpush2.bf16.msra.mxu0 0
        %4011 = vmatprep.subr.bf16.mxu0 0
        %4012 = vmatpush2.bf16.msra.mxu0 0
        %4013 = vmatprep.subr.bf16.mxu0 0
        %4014 = vmatpush2.bf16.msra.mxu0 0
        %4015 = vmatprep.subr.bf16.mxu0 0
        %4016 = vmatpush2.bf16.msra.mxu0 0
        %4017 = vmatprep.subr.bf16.mxu0 0
        %4018 = vmatpush2.bf16.msra.mxu0 0
        %4019 = vmatprep.subr.bf16.mxu0 0
        %4020 = vmatpush2.bf16.msra.mxu0 0
        %4021 = vmatprep.mubr.bf16.mxu0 0
        %4022 = vmatmul.mubr.bf16.gmra.mxu0 %v3987
        %v4023 = vpop.f32.mrf.mxu0
        %v4024 = vadd.f32 0.0, %v4023
        %v4025 = vpop.f32.mrf.mxu0
        %v4026 = vpop.f32.mrf.mxu0
        %v4027 = vpop.f32.mrf.mxu0
        %4028 = vdwg.mxu0
        %v4029 = vpack.c.bf16 %v4024, %v4024
        %s4030 = scalar_lea.vmem [#allocation28], 64
        %v4031 = vld [vmem:[%s4030] sm:$0xf]
        %v4032 = vld [vmem:[%s4030 + $0x4] sm:$0xf]
        %v4033 = vld [vmem:[%s4030 + $0x8] sm:$0xf]
        %v4034 = vld [vmem:[%s4030 + $0xc] sm:$0xf]
        %v4035 = vld [vmem:[%s4030 + $0x10] sm:$0xf]
        %v4036 = vld [vmem:[%s4030 + $0x14] sm:$0xf]
        %v4037 = vld [vmem:[%s4030 + $0x18] sm:$0xf]
        %v4038 = vld [vmem:[%s4030 + $0x1c] sm:$0xf]
        %v4039 = vld [vmem:[%s4030 + $0x20] sm:$0xf]
        %v4040 = vld [vmem:[%s4030 + $0x24] sm:$0xf]
        %v4041 = vld [vmem:[%s4030 + $0x28] sm:$0xf]
        %v4042 = vld [vmem:[%s4030 + $0x2c] sm:$0xf]
        %v4043 = vld [vmem:[%s4030 + $0x30] sm:$0xf]
        %v4044 = vld [vmem:[%s4030 + $0x34] sm:$0xf]
        %v4045 = vld [vmem:[%s4030 + $0x38] sm:$0xf]
        %v4046 = vld [vmem:[%s4030 + $0x3c] sm:$0xf]
        %v4063 = vunpack.c.l.b16 %v4031
        %v4064 = vunpack.c.l.b16 %v4032
        %v4065 = vunpack.c.l.b16 %v4033
        %v4066 = vunpack.c.l.b16 %v4034
        %v4067 = vunpack.c.l.b16 %v4035
        %v4068 = vunpack.c.l.b16 %v4036
        %v4069 = vunpack.c.l.b16 %v4037
        %v4070 = vunpack.c.l.b16 %v4038
        %v4071 = vunpack.c.l.b16 %v4039
        %v4072 = vunpack.c.l.b16 %v4040
        %v4073 = vunpack.c.l.b16 %v4041
        %v4074 = vunpack.c.l.b16 %v4042
        %v4075 = vunpack.c.l.b16 %v4043
        %v4076 = vunpack.c.l.b16 %v4044
        %v4077 = vunpack.c.l.b16 %v4045
        %v4078 = vunpack.c.l.b16 %v4046
        %v4079 = vpack.c.b16 %v4064, %v4063
        %v4080 = vpack.c.b16 %v4066, %v4065
        %v4081 = vpack.c.b16 %v4068, %v4067
        %v4082 = vpack.c.b16 %v4070, %v4069
        %v4083 = vpack.c.b16 %v4072, %v4071
        %v4084 = vpack.c.b16 %v4074, %v4073
        %v4085 = vpack.c.b16 %v4076, %v4075
        %v4086 = vpack.c.b16 %v4078, %v4077
        %4095 = vmatprep.subr.bf16.mxu0 0
        %4096 = vmatpush1.bf16.msra.mxu0 %v4086
        %4097 = vmatprep.subr.bf16.mxu0 0
        %4098 = vmatpush1.bf16.msra.mxu0 %v4085
        %4099 = vmatprep.subr.bf16.mxu0 0
        %4100 = vmatpush1.bf16.msra.mxu0 %v4084
        %4101 = vmatprep.subr.bf16.mxu0 0
        %4102 = vmatpush1.bf16.msra.mxu0 %v4083
        %4103 = vmatprep.subr.bf16.mxu0 0
        %4104 = vmatpush1.bf16.msra.mxu0 %v4082
        %4105 = vmatprep.subr.bf16.mxu0 0
        %4106 = vmatpush1.bf16.msra.mxu0 %v4081
        %4107 = vmatprep.subr.bf16.mxu0 0
        %4108 = vmatpush1.bf16.msra.mxu0 %v4080
        %4109 = vmatprep.subr.bf16.mxu0 0
        %4110 = vmatpush1.bf16.msra.mxu0 %v4079
        %4111 = vmatprep.subr.bf16.mxu0 0
        %4112 = vmatpush2.bf16.msra.mxu0 0
        %4113 = vmatprep.subr.bf16.mxu0 0
        %4114 = vmatpush2.bf16.msra.mxu0 0
        %4115 = vmatprep.subr.bf16.mxu0 0
        %4116 = vmatpush2.bf16.msra.mxu0 0
        %4117 = vmatprep.subr.bf16.mxu0 0
        %4118 = vmatpush2.bf16.msra.mxu0 0
        %4119 = vmatprep.subr.bf16.mxu0 0
        %4120 = vmatpush2.bf16.msra.mxu0 0
        %4121 = vmatprep.subr.bf16.mxu0 0
        %4122 = vmatpush2.bf16.msra.mxu0 0
        %4123 = vmatprep.subr.bf16.mxu0 0
        %4124 = vmatpush2.bf16.msra.mxu0 0
        %4125 = vmatprep.subr.bf16.mxu0 0
        %4126 = vmatpush2.bf16.msra.mxu0 0
        %4127 = vmatprep.mubr.bf16.mxu0 0
        %4128 = vmatmul.mubr.bf16.gmra.mxu0 %v4029
        %v4129 = vpop.f32.mrf.mxu0
        %v4130 = vadd.f32 0.0, %v4129
        %v4131 = vpop.f32.mrf.mxu0
        %v4132 = vpop.f32.mrf.mxu0
        %v4133 = vpop.f32.mrf.mxu0
        %4134 = vdwg.mxu0
        %v4151 = vunpack.c.l.b16 %v3969
        %v4152 = vunpack.c.l.b16 %v3970
        %v4153 = vunpack.c.l.b16 %v3971
        %v4154 = vunpack.c.l.b16 %v3972
        %v4155 = vunpack.c.l.b16 %v3973
        %v4156 = vunpack.c.l.b16 %v3974
        %v4157 = vunpack.c.l.b16 %v3975
        %v4158 = vunpack.c.l.b16 %v3976
        %v4159 = vunpack.c.l.b16 %v3977
        %v4160 = vunpack.c.l.b16 %v3978
        %v4161 = vunpack.c.l.b16 %v3979
        %v4162 = vunpack.c.l.b16 %v3980
        %v4163 = vunpack.c.l.b16 %v3981
        %v4164 = vunpack.c.l.b16 %v3982
        %v4165 = vunpack.c.l.b16 %v3983
        %v4166 = vunpack.c.l.b16 %v3984
        %v4167 = vpack.c.b16 %v4152, %v4151
        %v4168 = vpack.c.b16 %v4154, %v4153
        %v4169 = vpack.c.b16 %v4156, %v4155
        %v4170 = vpack.c.b16 %v4158, %v4157
        %v4171 = vpack.c.b16 %v4160, %v4159
        %v4172 = vpack.c.b16 %v4162, %v4161
        %v4173 = vpack.c.b16 %v4164, %v4163
        %v4174 = vpack.c.b16 %v4166, %v4165
        %4183 = vmatprep.subr.bf16.mxu0 0
        %4184 = vmatpush1.bf16.msra.mxu0 %v4174
        %4185 = vmatprep.subr.bf16.mxu0 0
        %4186 = vmatpush1.bf16.msra.mxu0 %v4173
        %4187 = vmatprep.subr.bf16.mxu0 0
        %4188 = vmatpush1.bf16.msra.mxu0 %v4172
        %4189 = vmatprep.subr.bf16.mxu0 0
        %4190 = vmatpush1.bf16.msra.mxu0 %v4171
        %4191 = vmatprep.subr.bf16.mxu0 0
        %4192 = vmatpush1.bf16.msra.mxu0 %v4170
        %4193 = vmatprep.subr.bf16.mxu0 0
        %4194 = vmatpush1.bf16.msra.mxu0 %v4169
        %4195 = vmatprep.subr.bf16.mxu0 0
        %4196 = vmatpush1.bf16.msra.mxu0 %v4168
        %4197 = vmatprep.subr.bf16.mxu0 0
        %4198 = vmatpush1.bf16.msra.mxu0 %v4167
        %4199 = vmatprep.subr.bf16.mxu0 0
        %4200 = vmatpush2.bf16.msra.mxu0 0
        %4201 = vmatprep.subr.bf16.mxu0 0
        %4202 = vmatpush2.bf16.msra.mxu0 0
        %4203 = vmatprep.subr.bf16.mxu0 0
        %4204 = vmatpush2.bf16.msra.mxu0 0
        %4205 = vmatprep.subr.bf16.mxu0 0
        %4206 = vmatpush2.bf16.msra.mxu0 0
        %4207 = vmatprep.subr.bf16.mxu0 0
        %4208 = vmatpush2.bf16.msra.mxu0 0
        %4209 = vmatprep.subr.bf16.mxu0 0
        %4210 = vmatpush2.bf16.msra.mxu0 0
        %4211 = vmatprep.subr.bf16.mxu0 0
        %4212 = vmatpush2.bf16.msra.mxu0 0
        %4213 = vmatprep.subr.bf16.mxu0 0
        %4214 = vmatpush2.bf16.msra.mxu0 0
        %4215 = vmatprep.mubr.bf16.mxu0 0
        %4216 = vmatmul.mubr.bf16.gmra.mxu0 %v3968
        %v4217 = vpop.f32.mrf.mxu0
        %v4218 = vadd.f32 %v4130, %v4217
        %v4219 = vpop.f32.mrf.mxu0
        %v4220 = vpop.f32.mrf.mxu0
        %v4221 = vpop.f32.mrf.mxu0
        %4222 = vdwg.mxu0
        %v4223 = vld [vmem:[#allocation26] sm:$0x3]
        %v4225 = vsel %vm3920, %v4223, 0
        %4227 = vmatprep.subr.bf16.mxu0 0
        %4228 = vmatpush1.bf16.msra.mxu0 0
        %4229 = vmatprep.subr.bf16.mxu0 0
        %4230 = vmatpush1.bf16.msra.mxu0 0
        %4231 = vmatprep.subr.bf16.mxu0 0
        %4232 = vmatpush1.bf16.msra.mxu0 0
        %4233 = vmatprep.subr.bf16.mxu0 0
        %4234 = vmatpush1.bf16.msra.mxu0 0
        %4235 = vmatprep.subr.bf16.mxu0 0
        %4236 = vmatpush1.bf16.msra.mxu0 0
        %4237 = vmatprep.subr.bf16.mxu0 0
        %4238 = vmatpush1.bf16.msra.mxu0 0
        %4239 = vmatprep.subr.bf16.mxu0 0
        %4240 = vmatpush1.bf16.msra.mxu0 0
        %4241 = vmatprep.subr.bf16.mxu0 0
        %4242 = vmatpush1.bf16.msra.mxu0 %v3926
        %4243 = vmatprep.subr.bf16.mxu0 0
        %4244 = vmatpush2.bf16.msra.mxu0 0
        %4245 = vmatprep.subr.bf16.mxu0 0
        %4246 = vmatpush2.bf16.msra.mxu0 0
        %4247 = vmatprep.subr.bf16.mxu0 0
        %4248 = vmatpush2.bf16.msra.mxu0 0
        %4249 = vmatprep.subr.bf16.mxu0 0
        %4250 = vmatpush2.bf16.msra.mxu0 0
        %4251 = vmatprep.subr.bf16.mxu0 0
        %4252 = vmatpush2.bf16.msra.mxu0 0
        %4253 = vmatprep.subr.bf16.mxu0 0
        %4254 = vmatpush2.bf16.msra.mxu0 0
        %4255 = vmatprep.subr.bf16.mxu0 0
        %4256 = vmatpush2.bf16.msra.mxu0 0
        %4257 = vmatprep.subr.bf16.mxu0 0
        %4258 = vmatpush2.bf16.msra.mxu0 0
        %4259 = vmatprep.mubr.bf16.mxu0 0
        %4260 = vmatmul.mubr.bf16.gmra.mxu0 %v4225
        %v4261 = vpop.f32.mrf.mxu0
        %v4262 = vadd.f32 0.0, %v4261
        %v4263 = vpop.f32.mrf.mxu0
        %v4264 = vpop.f32.mrf.mxu0
        %v4265 = vpop.f32.mrf.mxu0
        %4266 = vdwg.mxu0
        %v4267 = vpack.c.bf16 %v4262, %v4262
        %s4268 = scalar_lea.vmem [#allocation28], 128
        %v4269 = vld [vmem:[%s4268] sm:$0xf]
        %v4270 = vld [vmem:[%s4268 + $0x4] sm:$0xf]
        %v4271 = vld [vmem:[%s4268 + $0x8] sm:$0xf]
        %v4272 = vld [vmem:[%s4268 + $0xc] sm:$0xf]
        %v4273 = vld [vmem:[%s4268 + $0x10] sm:$0xf]
        %v4274 = vld [vmem:[%s4268 + $0x14] sm:$0xf]
        %v4275 = vld [vmem:[%s4268 + $0x18] sm:$0xf]
        %v4276 = vld [vmem:[%s4268 + $0x1c] sm:$0xf]
        %v4277 = vld [vmem:[%s4268 + $0x20] sm:$0xf]
        %v4278 = vld [vmem:[%s4268 + $0x24] sm:$0xf]
        %v4279 = vld [vmem:[%s4268 + $0x28] sm:$0xf]
        %v4280 = vld [vmem:[%s4268 + $0x2c] sm:$0xf]
        %v4281 = vld [vmem:[%s4268 + $0x30] sm:$0xf]
        %v4282 = vld [vmem:[%s4268 + $0x34] sm:$0xf]
        %v4283 = vld [vmem:[%s4268 + $0x38] sm:$0xf]
        %v4284 = vld [vmem:[%s4268 + $0x3c] sm:$0xf]
        %v4301 = vunpack.c.l.b16 %v4269
        %v4302 = vunpack.c.l.b16 %v4270
        %v4303 = vunpack.c.l.b16 %v4271
        %v4304 = vunpack.c.l.b16 %v4272
        %v4305 = vunpack.c.l.b16 %v4273
        %v4306 = vunpack.c.l.b16 %v4274
        %v4307 = vunpack.c.l.b16 %v4275
        %v4308 = vunpack.c.l.b16 %v4276
        %v4309 = vunpack.c.l.b16 %v4277
        %v4310 = vunpack.c.l.b16 %v4278
        %v4311 = vunpack.c.l.b16 %v4279
        %v4312 = vunpack.c.l.b16 %v4280
        %v4313 = vunpack.c.l.b16 %v4281
        %v4314 = vunpack.c.l.b16 %v4282
        %v4315 = vunpack.c.l.b16 %v4283
        %v4316 = vunpack.c.l.b16 %v4284
        %v4317 = vpack.c.b16 %v4302, %v4301
        %v4318 = vpack.c.b16 %v4304, %v4303
        %v4319 = vpack.c.b16 %v4306, %v4305
        %v4320 = vpack.c.b16 %v4308, %v4307
        %v4321 = vpack.c.b16 %v4310, %v4309
        %v4322 = vpack.c.b16 %v4312, %v4311
        %v4323 = vpack.c.b16 %v4314, %v4313
        %v4324 = vpack.c.b16 %v4316, %v4315
        %4333 = vmatprep.subr.bf16.mxu0 0
        %4334 = vmatpush1.bf16.msra.mxu0 %v4324
        %4335 = vmatprep.subr.bf16.mxu0 0
        %4336 = vmatpush1.bf16.msra.mxu0 %v4323
        %4337 = vmatprep.subr.bf16.mxu0 0
        %4338 = vmatpush1.bf16.msra.mxu0 %v4322
        %4339 = vmatprep.subr.bf16.mxu0 0
        %4340 = vmatpush1.bf16.msra.mxu0 %v4321
        %4341 = vmatprep.subr.bf16.mxu0 0
        %4342 = vmatpush1.bf16.msra.mxu0 %v4320
        %4343 = vmatprep.subr.bf16.mxu0 0
        %4344 = vmatpush1.bf16.msra.mxu0 %v4319
        %4345 = vmatprep.subr.bf16.mxu0 0
        %4346 = vmatpush1.bf16.msra.mxu0 %v4318
        %4347 = vmatprep.subr.bf16.mxu0 0
        %4348 = vmatpush1.bf16.msra.mxu0 %v4317
        %4349 = vmatprep.subr.bf16.mxu0 0
        %4350 = vmatpush2.bf16.msra.mxu0 0
        %4351 = vmatprep.subr.bf16.mxu0 0
        %4352 = vmatpush2.bf16.msra.mxu0 0
        %4353 = vmatprep.subr.bf16.mxu0 0
        %4354 = vmatpush2.bf16.msra.mxu0 0
        %4355 = vmatprep.subr.bf16.mxu0 0
        %4356 = vmatpush2.bf16.msra.mxu0 0
        %4357 = vmatprep.subr.bf16.mxu0 0
        %4358 = vmatpush2.bf16.msra.mxu0 0
        %4359 = vmatprep.subr.bf16.mxu0 0
        %4360 = vmatpush2.bf16.msra.mxu0 0
        %4361 = vmatprep.subr.bf16.mxu0 0
        %4362 = vmatpush2.bf16.msra.mxu0 0
        %4363 = vmatprep.subr.bf16.mxu0 0
        %4364 = vmatpush2.bf16.msra.mxu0 0
        %4365 = vmatprep.mubr.bf16.mxu0 0
        %4366 = vmatmul.mubr.bf16.gmra.mxu0 %v4267
        %v4367 = vpop.f32.mrf.mxu0
        %v4368 = vadd.f32 0.0, %v4367
        %v4369 = vpop.f32.mrf.mxu0
        %v4370 = vpop.f32.mrf.mxu0
        %v4371 = vpop.f32.mrf.mxu0
        %4372 = vdwg.mxu0
        %v4373 = vadd.f32 %v4218, %v4368
        %v4374 = vld [vmem:[%s61] sm:$0x1]
        %v4376 = vlaneseq
        %v4377 = vshrl.u32 %v4376, 7
        %v4378 = vsub.s32 0, %v4377
        %v4379 = vrot.slane %v4374, %v4378
        %v4381 = vadd.f32 %v4373, %v4379
        %vm4382 = vcmask 1043456
        %v4383 = vsel %vm4382, %v4381, 0.0
        %v4384 = vrot.slane %v4383, 4
        %v4385 = vadd.f32 %v4383, %v4384
        %v4386 = vrot.slane %v4385, 2
        %v4387 = vadd.f32 %v4385, %v4386
        %v4388 = vrot.slane %v4387, 1
        %v4389 = vadd.f32 %v4387, %v4388
        %v4390 = vrcp.pop 4.0
        %v4391 = vmul.f32 %v4389, %v4390
        %4392 = vst [vmem:[%s1187] sm:$0x1] %v4391
        %s4393 = sand.u32 %s750, 1
        %s4394 = scalar_lea.sflag [#allocation4], %s4393
        %s4395 = sand.u32 %s750, 1
        %s4396 = scalar_lea.vmem [#allocation29], %s4395
        // Predicated region
        $region213: #{_lambda_.1} parent=143 // pred_check
          %p4397 = pneg %p760
        $region214: #{_lambda_.1} parent=143 // pred_check_branch
          %4399 = sbr.rel (%p4397) target = $region216
        $region215: #{_lambda_.1} parent=143 // pred_region
          %s4401 = ssub.s32 16, 16
          %4402 = vsyncadd %s4394, %s4401
          %s4403 = smul.addr %s86, 16
          %s4404 = scalar_lea.hbm %s63, %s4403
          %s4406 = sshll.u32 %s4396, 4
          %s4407 = int_to_ptr.vmem [resolvable:$true] %s4406
          %4409 = dma.vmem_to_hbm [thread:$0]  %s4407, 16, %s4404, %s4394
        $region216: #{_lambda_.1} parent=143 // pred_fallthru
          _
      $region144: #{_lambda_.1} parent=5 // pred_fallthru
        _
      %p4410 = scmp.le.s32.totalorder 2, %s81
      // Predicated region
      $region217: #{_lambda_.1} parent=5 // pred_check
        %p4411 = pneg %p4410
      $region218: #{_lambda_.1} parent=5 // pred_check_branch
        %4413 = sbr.rel (%p4411) target = $region220
      $region219: #{_lambda_.1} parent=5 // pred_region
        %s4414 = ssub.s32 %s81, 2
        // Predicated region
        $region221: #{_lambda_.1} parent=219 // pred_check
          %p4415 = pneg %p766
        $region222: #{_lambda_.1} parent=219 // pred_check_branch
          %4417 = sbr.rel (%p4415) target = $region224
        $region223: #{_lambda_.1} parent=219 // pred_region
          %s4418 = sand.u32 %s751, 1
          %s4419 = scalar_lea.sflag [#allocation4], %s4418
          %s4420 = sand.u32 %s751, 1
          %s4421 = scalar_lea.vmem [#allocation29], %s4420
          %4422 = dma.done %s4419, 16
        $region224: #{_lambda_.1} parent=219 // pred_fallthru
          _
      $region220: #{_lambda_.1} parent=5 // pred_fallthru
        _
    $region6: #{_lambda_.1} parent=1 // loop_footer
      %s85 = sadd.s32 1, %s81
    $region7: #{_lambda_.1} parent=1 // loop_footer_branch
      %80 = sbr.rel target = $region3
    $region8: #{_lambda_.1} parent=1 // loop_exit
      _
    %4423 = vsyncpa [#allocation3], 1
    %s4424 = scalar_lea.sflag [#allocation3], 1
    %4425 = vsyncpa %s4424, 1
    %4426 = vsyncpa [#allocation6], 1
    %4427 = vsyncpa [#allocation9], 1
    %4428 = vsyncpa [#allocation12], 1
    %4429 = vsyncpa [#allocation15], 1
    %4430 = vsyncpa [#allocation18], 1
    %4431 = vsyncpa [#allocation21], 1
    %4432 = vsyncpa [#allocation24], 1
    %4433 = vsyncpa [#allocation27], 1
    %4434 = vsyncpa [#allocation4], 1
    %s4435 = scalar_lea.sflag [#allocation4], 1
    %4436 = vsyncpa %s4435, 1

</llo_original>
